<compile_context>
chip_gen: v7x
topology: tpu7x:2x2x1
jax: 0.10.0
libtpu: 0.0.40
codegen_flags: <defaults>
</compile_context>

<pallas_src>
import functools

import jax
import jax.numpy as jnp
from jax.experimental import pallas as pl
from jax.experimental.pallas import tpu as pltpu


def _fused_mlp_kernel(x_ref, w1_ref, b1_ref, *rest, n_tail):
    """Fused MLP forward.

    Grid axis 0 streams the K (reduction) dimension of the first (large)
    layer; acc_ref holds the running (B, H1) partial product in VMEM.  On the
    last K step the bias + ReLU chain and all small VMEM-resident tail layers
    run and the final (B, C) result is written once.  With the default bf16
    configuration the grid collapses to a single step.

    rest = (w2_ref, b2_ref, ..., wL_ref, bL_ref, o_ref, acc_ref)
    """
    o_ref = rest[2 * n_tail]
    acc_ref = rest[2 * n_tail + 1]
    tail_refs = rest[: 2 * n_tail]

    k = pl.program_id(0)

    @pl.when(k == 0)
    def _():
        acc_ref[...] = jnp.zeros_like(acc_ref)

    # Layer-1 partial product on the MXU.  Operands are fed in their native
    # (possibly bf16) dtype -- no in-kernel f32 upcast of the weight tile --
    # and accumulation stays f32 via preferred_element_type.
    acc_ref[...] += jnp.dot(
        x_ref[...], w1_ref[...], preferred_element_type=jnp.float32
    )

    @pl.when(k == pl.num_programs(0) - 1)
    def _():
        h = acc_ref[...] + b1_ref[...].astype(jnp.float32)
        if n_tail > 0:
            h = jnp.maximum(h, 0.0)                      # ReLU after layer 1
        for i in range(n_tail):
            w_ref = tail_refs[2 * i]
            b_ref = tail_refs[2 * i + 1]
            # Feed the (tiny) activations in the weights' dtype so the MXU
            # stays on its native low-precision path; accumulate in f32.
            h = jnp.dot(
                h.astype(w_ref.dtype), w_ref[...],
                preferred_element_type=jnp.float32,
            ) + b_ref[...].astype(jnp.float32)
            if i < n_tail - 1:
                h = jnp.maximum(h, 0.0)                  # ReLU between hidden layers
        o_ref[...] = h.astype(o_ref.dtype)


def _pick_tk(K, H1, itemsize):
    """K-tile for streaming w1^T.

    bf16 default: the full-K tile (~3 MB) is small enough -> one grid step.
    f32 fallback: cap the per-buffer tile at ~3.25 MB so the double-buffered
    pair still fits v5e's ~16 MiB default scoped VMEM (K=6144 -> tk=3072).
    """
    full_bytes = K * H1 * itemsize
    if full_bytes <= (4 << 20):
        return K
    budget = int(3.25 * (1 << 20))
    for cand in range(K - (K % 128), 0, -128):
        if K % cand == 0 and cand * H1 * itemsize <= budget:
            return cand
    return min(K, 128)


def mlp_forward_fused(x, params_t):
    """Whole-MLP forward in one pallas_call.

    params_t: list of (w_t, b) with w_t already transposed to (in, out);
              first entry is the big input layer, the rest stay VMEM-resident.
    """
    B, K = x.shape
    (w1, b1), tail = params_t[0], list(params_t[1:])
    assert w1.shape[0] == K, (w1.shape, K)
    H1 = w1.shape[1]
    C = tail[-1][0].shape[1] if tail else H1

    # Cast x ONCE to the streaming dtype (outside the reduction) so the MXU
    # receives uniform native-dtype operands; output stays in x's dtype.
    x_in = x.astype(w1.dtype)

    tk = _pick_tk(K, H1, jnp.dtype(w1.dtype).itemsize)
    n_steps = K // tk
    assert tk * n_steps == K, (K, tk)

    in_specs = [
        # x: with the default single-step grid this is a single full-array DMA
        # (de-facto VMEM-resident); in the f32 fallback it streams 24 KB/step.
        pl.BlockSpec((B, tk), lambda k: (0, k)),
        pl.BlockSpec((tk, H1), lambda k: (k, 0)),   # w1^T: streamed along K
        pl.BlockSpec((1, H1), lambda k: (0, 0)),    # b1: resident
    ]
    operands = [x_in, w1, b1.reshape(1, H1)]
    for (w, b) in tail:                             # tiny tail layers: resident
        din, dout = w.shape
        in_specs.append(pl.BlockSpec((din, dout), lambda k: (0, 0)))
        in_specs.append(pl.BlockSpec((1, dout), lambda k: (0, 0)))
        operands.append(w)
        operands.append(b.reshape(1, dout))

    kernel = functools.partial(_fused_mlp_kernel, n_tail=len(tail))

    return pl.pallas_call(
        kernel,
        out_shape=jax.ShapeDtypeStruct((B, C), x.dtype),
        grid_spec=pltpu.PrefetchScalarGridSpec(
            num_scalar_prefetch=0,
            grid=(n_steps,),
            in_specs=in_specs,
            out_specs=pl.BlockSpec((B, C), lambda k: (0, 0)),
            scratch_shapes=[pltpu.VMEM((B, H1), jnp.float32)],
        ),
        compiler_params=pltpu.CompilerParams(
            dimension_semantics=("arbitrary",),     # K is a reduction axis
        ),
    )(*operands)


# Single jitted entry point: one XLA program, no per-layer dispatch overhead.
mlp_forward = jax.jit(mlp_forward_fused)


def init_mlp_params(key, hidden_dim, num_classes, in_features=2048 * 3):
    """PyTorch nn.Linear default init: U(-1/sqrt(fan_in), 1/sqrt(fan_in))."""
    dims = [in_features] + list(hidden_dim) + [num_classes]
    params = []
    for i in range(len(dims) - 1):
        fan_in, fan_out = dims[i], dims[i + 1]
        key, kw, kb = jax.random.split(key, 3)
        bound = 1.0 / (fan_in ** 0.5)
        w = jax.random.uniform(kw, (fan_out, fan_in), jnp.float32, -bound, bound)
        b = jax.random.uniform(kb, (fan_out,), jnp.float32, -bound, bound)
        params.append((w, b))
    return params


def prepare_params(params, weight_dtype=jnp.bfloat16):
    """One-time glue (NOT on the hot path): transpose weights to (in, out) and
    cast them for streaming (bf16 by default -> half the HBM bytes on this
    bandwidth-bound kernel).  Biases stay f32; accumulation is always f32."""
    return [(jnp.asarray(w.T, dtype=weight_dtype), b) for (w, b) in params]


def mlp_reference(x, params):
    """Pure-JAX reference matching the PyTorch module exactly."""
    h = x
    n = len(params)
    for i, (w, b) in enumerate(params):
        h = h @ w.T + b
        if i < n - 1:
            h = jnp.maximum(h, 0.0)
    return h


if __name__ == "__main__":
    key = jax.random.PRNGKey(0)
    hidden_dim = [256, 128]
    num_classes = 16
    batch = 2
    in_features = 2048 * 3  # 6144, fixed by the module definition

    key, kx = jax.random.split(key)
    x = jax.random.normal(kx, (batch, in_features), jnp.float32)
    params = init_mlp_params(key, hidden_dim, num_classes)

    # --- default fast path: bf16 weight streaming, single K step, f32 acc ---
    params_bf16 = prepare_params(params)            # bf16 by default
    out = jax.block_until_ready(mlp_forward(x, params_bf16))
    # Reference uses the same bf16-rounded weights AND bf16-rounded x so the
    # check isolates the kernel math (only accumulation-order / intermediate
    # bf16 activation rounding remain).
    params_bf16_ref = [
        (w.astype(jnp.bfloat16).astype(jnp.float32), b) for (w, b) in params
    ]
    ref_bf16 = mlp_reference(x.astype(jnp.bfloat16).astype(jnp.float32),
                             params_bf16_ref)
    assert out.shape == (batch, num_classes)
    assert out.dtype == x.dtype
    assert jnp.allclose(out, ref_bf16, atol=1e-2, rtol=5e-2)

    # --- exact-semantics path: f32 weights (exercises the 2-step K grid) ----
    params_f32 = prepare_params(params, jnp.float32)
    out_f32 = jax.block_until_ready(mlp_forward(x, params_f32))
    ref = mlp_reference(x, params)
    assert out_f32.shape == (batch, num_classes)
    assert jnp.allclose(out_f32, ref, atol=1e-4, rtol=1e-4)

    print("KERNEL_OK")
</pallas_src>

<mosaic_0001>
module attributes {stable_mosaic.version = 11 : i64} {
  func.func @_fused_mlp_kernel(%arg0: i32, %arg1: memref<2x6144xbf16, #tpu.memory_space<vmem>>, %arg2: memref<6144x256xbf16, #tpu.memory_space<vmem>>, %arg3: memref<1x256xf32, #tpu.memory_space<vmem>>, %arg4: memref<256x128xbf16, #tpu.memory_space<vmem>>, %arg5: memref<1x128xf32, #tpu.memory_space<vmem>>, %arg6: memref<128x16xbf16, #tpu.memory_space<vmem>>, %arg7: memref<1x16xf32, #tpu.memory_space<vmem>>, %arg8: memref<2x16xf32, #tpu.memory_space<vmem>>, %arg9: memref<2x256xf32, #tpu.memory_space<vmem>>) attributes {dimension_semantics = [#tpu.dimension_semantics<arbitrary>], iteration_bounds = array<i64: 1>, scalar_prefetch = 0 : i64, scratch_operands = 1 : i64, tpu.core_type = #tpu.core_type<tc>, window_params = [{transform_indices = @transform_0, window_bounds = array<i64: 2, 6144>}, {transform_indices = @transform_1, window_bounds = array<i64: 6144, 256>}, {pipeline_mode = #tpu.pipeline_mode<synchronous>, transform_indices = @transform_2, window_bounds = array<i64: 1, 256>}, {pipeline_mode = #tpu.pipeline_mode<synchronous>, transform_indices = @transform_3, window_bounds = array<i64: 256, 128>}, {pipeline_mode = #tpu.pipeline_mode<synchronous>, transform_indices = @transform_4, window_bounds = array<i64: 1, 128>}, {pipeline_mode = #tpu.pipeline_mode<synchronous>, transform_indices = @transform_5, window_bounds = array<i64: 128, 16>}, {pipeline_mode = #tpu.pipeline_mode<synchronous>, transform_indices = @transform_6, window_bounds = array<i64: 1, 16>}, {pipeline_mode = #tpu.pipeline_mode<synchronous>, transform_indices = @transform_7, window_bounds = array<i64: 2, 16>}]} {
    %c0_i32 = arith.constant 0 : i32
    %0 = arith.cmpi eq, %arg0, %c0_i32 : i32
    %1 = arith.extui %0 : i1 to i32
    %c0_i32_0 = arith.constant 0 : i32
    %2 = arith.cmpi ne, %1, %c0_i32_0 : i32
    scf.if %2 {
      %cst_10 = arith.constant 0.000000e+00 : f32
      %12 = vector.broadcast %cst_10 : f32 to vector<2x256xf32>
      %c0_11 = arith.constant 0 : index
      %c0_12 = arith.constant 0 : index
      %13 = vector.load %arg9[%c0_11, %c0_12] : memref<2x256xf32, #tpu.memory_space<vmem>>, vector<2x256xf32>
      tpu.vector_store %arg9[%c0_11, %c0_12], %12 {strides = array<i32>} : memref<2x256xf32, #tpu.memory_space<vmem>>, vector<2x256xf32>,
    } else {
    }
    %c0 = arith.constant 0 : index
    %c0_1 = arith.constant 0 : index
    %3 = vector.load %arg9[%c0, %c0_1] : memref<2x256xf32, #tpu.memory_space<vmem>>, vector<2x256xf32>
    %c0_2 = arith.constant 0 : index
    %c0_3 = arith.constant 0 : index
    %4 = vector.load %arg1[%c0_2, %c0_3] : memref<2x6144xbf16, #tpu.memory_space<vmem>>, vector<2x6144xbf16>
    %c0_4 = arith.constant 0 : index
    %c0_5 = arith.constant 0 : index
    %5 = vector.load %arg2[%c0_4, %c0_5] : memref<6144x256xbf16, #tpu.memory_space<vmem>>, vector<6144x256xbf16>
    %cst = arith.constant dense<0.000000e+00> : vector<2x256xf32>
    %6 = tpu.matmul %4, %5, %cst {dimension_numbers = #tpu.dot_dimension_numbers<[1], [0], [0], [1], [0, 0, 1, 1], [], []>} : vector<2x6144xbf16>, vector<6144x256xbf16>, vector<2x256xf32> -> vector<2x256xf32>
    %7 = arith.addf %3, %6 : vector<2x256xf32>
    %c0_6 = arith.constant 0 : index
    %c0_7 = arith.constant 0 : index
    %8 = vector.load %arg9[%c0_6, %c0_7] : memref<2x256xf32, #tpu.memory_space<vmem>>, vector<2x256xf32>
    tpu.vector_store %arg9[%c0_6, %c0_7], %7 {strides = array<i32>} : memref<2x256xf32, #tpu.memory_space<vmem>>, vector<2x256xf32>,
    %c0_i32_8 = arith.constant 0 : i32
    %9 = arith.cmpi eq, %arg0, %c0_i32_8 : i32
    %10 = arith.extui %9 : i1 to i32
    %c0_i32_9 = arith.constant 0 : i32
    %11 = arith.cmpi ne, %10, %c0_i32_9 : i32
    scf.if %11 {
      %c0_10 = arith.constant 0 : index
      %c0_11 = arith.constant 0 : index
      %12 = vector.load %arg9[%c0_10, %c0_11] : memref<2x256xf32, #tpu.memory_space<vmem>>, vector<2x256xf32>
      %c0_12 = arith.constant 0 : index
      %c0_13 = arith.constant 0 : index
      %13 = vector.load %arg3[%c0_12, %c0_13] : memref<1x256xf32, #tpu.memory_space<vmem>>, vector<1x256xf32>
      %14 = vector.broadcast %13 : vector<1x256xf32> to vector<2x256xf32>
      %15 = arith.addf %12, %14 : vector<2x256xf32>
      %cst_14 = arith.constant 0.000000e+00 : f32
      %16 = vector.broadcast %cst_14 : f32 to vector<2x256xf32>
      %17 = arith.maximumf %15, %16 : vector<2x256xf32>
      %18 = arith.truncf %17 : vector<2x256xf32> to vector<2x256xbf16>
      %c0_15 = arith.constant 0 : index
      %c0_16 = arith.constant 0 : index
      %19 = vector.load %arg4[%c0_15, %c0_16] : memref<256x128xbf16, #tpu.memory_space<vmem>>, vector<256x128xbf16>
      %cst_17 = arith.constant dense<0.000000e+00> : vector<2x128xf32>
      %20 = tpu.matmul %18, %19, %cst_17 {dimension_numbers = #tpu.dot_dimension_numbers<[1], [0], [0], [1], [0, 0, 1, 1], [], []>} : vector<2x256xbf16>, vector<256x128xbf16>, vector<2x128xf32> -> vector<2x128xf32>
      %c0_18 = arith.constant 0 : index
      %c0_19 = arith.constant 0 : index
      %21 = vector.load %arg5[%c0_18, %c0_19] : memref<1x128xf32, #tpu.memory_space<vmem>>, vector<1x128xf32>
      %22 = vector.broadcast %21 : vector<1x128xf32> to vector<2x128xf32>
      %23 = arith.addf %20, %22 : vector<2x128xf32>
      %cst_20 = arith.constant 0.000000e+00 : f32
      %24 = vector.broadcast %cst_20 : f32 to vector<2x128xf32>
      %25 = arith.maximumf %23, %24 : vector<2x128xf32>
      %26 = arith.truncf %25 : vector<2x128xf32> to vector<2x128xbf16>
      %c0_21 = arith.constant 0 : index
      %c0_22 = arith.constant 0 : index
      %27 = vector.load %arg6[%c0_21, %c0_22] : memref<128x16xbf16, #tpu.memory_space<vmem>>, vector<128x16xbf16>
      %cst_23 = arith.constant dense<0.000000e+00> : vector<2x16xf32>
      %28 = tpu.matmul %26, %27, %cst_23 {dimension_numbers = #tpu.dot_dimension_numbers<[1], [0], [0], [1], [0, 0, 1, 1], [], []>} : vector<2x128xbf16>, vector<128x16xbf16>, vector<2x16xf32> -> vector<2x16xf32>
      %c0_24 = arith.constant 0 : index
      %c0_25 = arith.constant 0 : index
      %29 = vector.load %arg7[%c0_24, %c0_25] : memref<1x16xf32, #tpu.memory_space<vmem>>, vector<1x16xf32>
      %30 = vector.broadcast %29 : vector<1x16xf32> to vector<2x16xf32>
      %31 = arith.addf %28, %30 : vector<2x16xf32>
      %c0_26 = arith.constant 0 : index
      %c0_27 = arith.constant 0 : index
      %32 = vector.load %arg8[%c0_26, %c0_27] : memref<2x16xf32, #tpu.memory_space<vmem>>, vector<2x16xf32>
      tpu.vector_store %arg8[%c0_26, %c0_27], %31 {strides = array<i32>} : memref<2x16xf32, #tpu.memory_space<vmem>>, vector<2x16xf32>,
    } else {
    }
    return
  }
  func.func @transform_0(%arg0: i32) -> (i32, i32) {
    %c0_i32 = arith.constant 0 : i32
    %c0_i32_0 = arith.constant 0 : i32
    return %c0_i32, %arg0 : i32, i32
  }
  func.func @transform_1(%arg0: i32) -> (i32, i32) {
    %c0_i32 = arith.constant 0 : i32
    %c0_i32_0 = arith.constant 0 : i32
    return %arg0, %c0_i32 : i32, i32
  }
  func.func @transform_2(%arg0: i32) -> (i32, i32) {
    %c0_i32 = arith.constant 0 : i32
    %c0_i32_0 = arith.constant 0 : i32
    %c0_i32_1 = arith.constant 0 : i32
    return %c0_i32, %c0_i32_0 : i32, i32
  }
  func.func @transform_3(%arg0: i32) -> (i32, i32) {
    %c0_i32 = arith.constant 0 : i32
    %c0_i32_0 = arith.constant 0 : i32
    %c0_i32_1 = arith.constant 0 : i32
    return %c0_i32, %c0_i32_0 : i32, i32
  }
  func.func @transform_4(%arg0: i32) -> (i32, i32) {
    %c0_i32 = arith.constant 0 : i32
    %c0_i32_0 = arith.constant 0 : i32
    %c0_i32_1 = arith.constant 0 : i32
    return %c0_i32, %c0_i32_0 : i32, i32
  }
  func.func @transform_5(%arg0: i32) -> (i32, i32) {
    %c0_i32 = arith.constant 0 : i32
    %c0_i32_0 = arith.constant 0 : i32
    %c0_i32_1 = arith.constant 0 : i32
    return %c0_i32, %c0_i32_0 : i32, i32
  }
  func.func @transform_6(%arg0: i32) -> (i32, i32) {
    %c0_i32 = arith.constant 0 : i32
    %c0_i32_0 = arith.constant 0 : i32
    %c0_i32_1 = arith.constant 0 : i32
    return %c0_i32, %c0_i32_0 : i32, i32
  }
  func.func @transform_7(%arg0: i32) -> (i32, i32) {
    %c0_i32 = arith.constant 0 : i32
    %c0_i32_0 = arith.constant 0 : i32
    %c0_i32_1 = arith.constant 0 : i32
    return %c0_i32, %c0_i32_0 : i32, i32
  }
}

</mosaic_0001>

<llo_original>
// kernel: mlp_forward_fused.1
$region0: #{mlp_forward_fused.1}
  #allocation0 [shape = 'u32[]', space=smem, size = 0x4, offset = 0x4, fixed_abs, tag = 'smem constant byte address 0x4 - core index']
  #allocation1 [shape = 'u32[144,128]{1,0:T(1,128)}', space=vmem, size = 0x12000, scoped, tag = 'internal scratch']
  #allocation2 [shape = 'f32[2,256]{1,0:T(2,128)}', space=vmem, size = 0x800, scoped, tag = 'scratch operand']
  %s0 = inlined_call_operand.vmem [shape: bf16[2,6144], index: 0, kind: input, shape index: {}]
  %s1 = inlined_call_operand.hbm [shape: bf16[6144,256], index: 1, kind: input, shape index: {}]
  %s2 = inlined_call_operand.hbm [shape: f32[1,256], index: 2, kind: input, shape index: {}]
  %s3 = inlined_call_operand.hbm [shape: bf16[256,128], index: 3, kind: input, shape index: {}]
  %s4 = inlined_call_operand.hbm [shape: f32[1,128], index: 4, kind: input, shape index: {}]
  %s5 = inlined_call_operand.vmem [shape: bf16[128,16], index: 5, kind: input, shape index: {}]
  %s6 = inlined_call_operand.hbm [shape: f32[1,16], index: 6, kind: input, shape index: {}]
  %s7 = inlined_call_operand.hbm [shape: f32[2,16], index: 7, kind: output, shape index: {}]
  %s8 = sld [smem:[#allocation0]]
  $region66: #{mlp_forward_fused.1} parent=0
    _
  %s10 = ssub.s32 1, %s8
  %s11 = scalar_select 0, %s10, %s8
  $region1: #{mlp_forward_fused.1} parent=0
    #allocation3 [shape = 'u8[3145728]{0}', space=vmem, size = 0x300000, scoped, tag = 'input window, operand 1, single buffered']
    #allocation4 [shape = 's32[1]{0}', space=sflag, size = 0x4, scoped, tag = 'scoped memory for mlp_forward_fused.1']
    #allocation5 [shape = 's32[1]{0}', space=sflag, size = 0x4, scoped, tag = 'scoped memory for mlp_forward_fused.1']
    #allocation6 [shape = 'u8[1024]{0}', space=vmem, size = 0x400, scoped, tag = 'input window, operand 2, single buffered']
    #allocation7 [shape = 's32[1]{0}', space=sflag, size = 0x4, scoped, tag = 'scoped memory for mlp_forward_fused.1']
    #allocation8 [shape = 'u8[65536]{0}', space=vmem, size = 0x10000, scoped, tag = 'input window, operand 3, single buffered']
    #allocation9 [shape = 'u8[512]{0}', space=vmem, size = 0x400, scoped, tag = 'input window, operand 4, single buffered']
    #allocation10 [shape = 's32[1]{0}', space=sflag, size = 0x4, scoped, tag = 'scoped memory for mlp_forward_fused.1']
    #allocation11 [shape = 'u8[512]{0}', space=vmem, size = 0x400, scoped, tag = 'input window, operand 6, single buffered']
    #allocation12 [shape = 'u8[1024]{0}', space=vmem, size = 0x400, scoped, tag = 'output window, operand 0, single buffered']
    %12 = vsyncpa [#allocation4], 0
    %13 = vsyncpa [#allocation7], 0
    %14 = vsyncpa [#allocation10], 0
    %15 = vsyncpa [#allocation5], 0
    // Predicated region
    $region2: #{mlp_forward_fused.1} parent=1 // pred_check
      _
    $region3: #{mlp_forward_fused.1} parent=1 // pred_check_branch
      %17 = sbr.rel (0) target = $region5
    $region4: #{mlp_forward_fused.1} parent=1 // pred_region
      _
    $region5: #{mlp_forward_fused.1} parent=1 // pred_fallthru
      _
    // Predicated region
    $region6: #{mlp_forward_fused.1} parent=1 // pred_check
      _
    $region7: #{mlp_forward_fused.1} parent=1 // pred_check_branch
      %19 = sbr.rel (0) target = $region9
    $region8: #{mlp_forward_fused.1} parent=1 // pred_region
      %s21 = ssub.s32 98304, 98304
      %22 = vsyncadd [#allocation4], %s21
      %s23 = sshll.u32 [#allocation3], 4
      %s24 = int_to_ptr.vmem [resolvable:$true] %s23
      %29 = dma.hbm_to_vmem [thread:$0]  %s1, 98304, %s24, [#allocation4], 128, 128, 8
    $region9: #{mlp_forward_fused.1} parent=1 // pred_fallthru
      _
    // Predicated region
    $region10: #{mlp_forward_fused.1} parent=1 // pred_check
      _
    $region11: #{mlp_forward_fused.1} parent=1 // pred_check_branch
      %31 = sbr.rel (0) target = $region13
    $region12: #{mlp_forward_fused.1} parent=1 // pred_region
      %s33 = ssub.s32 32, 32
      %34 = vsyncadd [#allocation7], %s33
      %s36 = sshll.u32 [#allocation6], 4
      %s37 = int_to_ptr.vmem [resolvable:$true] %s36
      %39 = dma.hbm_to_vmem [thread:$0]  %s2, 32, %s37, [#allocation7]
    $region13: #{mlp_forward_fused.1} parent=1 // pred_fallthru
      _
    // Predicated region
    $region14: #{mlp_forward_fused.1} parent=1 // pred_check
      _
    $region15: #{mlp_forward_fused.1} parent=1 // pred_check_branch
      %41 = sbr.rel (0) target = $region17
    $region16: #{mlp_forward_fused.1} parent=1 // pred_region
      %s43 = ssub.s32 2048, 2048
      %44 = vsyncadd [#allocation7], %s43
      %s45 = sshll.u32 [#allocation8], 4
      %s46 = int_to_ptr.vmem [resolvable:$true] %s45
      %51 = dma.hbm_to_vmem [thread:$0]  %s3, 2048, %s46, [#allocation7], 64, 64, 4
    $region17: #{mlp_forward_fused.1} parent=1 // pred_fallthru
      _
    // Predicated region
    $region18: #{mlp_forward_fused.1} parent=1 // pred_check
      _
    $region19: #{mlp_forward_fused.1} parent=1 // pred_check_branch
      %53 = sbr.rel (0) target = $region21
    $region20: #{mlp_forward_fused.1} parent=1 // pred_region
      %s55 = ssub.s32 16, 16
      %56 = vsyncadd [#allocation10], %s55
      %s58 = sshll.u32 [#allocation9], 4
      %s59 = int_to_ptr.vmem [resolvable:$true] %s58
      %61 = dma.hbm_to_vmem [thread:$0]  %s4, 16, %s59, [#allocation10]
    $region21: #{mlp_forward_fused.1} parent=1 // pred_fallthru
      _
    // Predicated region
    $region22: #{mlp_forward_fused.1} parent=1 // pred_check
      _
    $region23: #{mlp_forward_fused.1} parent=1 // pred_check_branch
      %63 = sbr.rel (0) target = $region25
    $region24: #{mlp_forward_fused.1} parent=1 // pred_region
      _
    $region25: #{mlp_forward_fused.1} parent=1 // pred_fallthru
      _
    // Predicated region
    $region26: #{mlp_forward_fused.1} parent=1 // pred_check
      _
    $region27: #{mlp_forward_fused.1} parent=1 // pred_check_branch
      %65 = sbr.rel (0) target = $region29
    $region28: #{mlp_forward_fused.1} parent=1 // pred_region
      %s67 = ssub.s32 16, 16
      %68 = vsyncadd [#allocation10], %s67
      %s70 = sshll.u32 [#allocation11], 4
      %s71 = int_to_ptr.vmem [resolvable:$true] %s70
      %73 = dma.hbm_to_vmem [thread:$0]  %s6, 16, %s71, [#allocation10]
    $region29: #{mlp_forward_fused.1} parent=1 // pred_fallthru
      _
    // Predicated region
    $region30: #{mlp_forward_fused.1} parent=1 // pred_check
      _
    $region31: #{mlp_forward_fused.1} parent=1 // pred_check_branch
      %75 = sbr.rel (0) target = $region33
    $region32: #{mlp_forward_fused.1} parent=1 // pred_region
      %76 = dma.done [#allocation4], 98304
    $region33: #{mlp_forward_fused.1} parent=1 // pred_fallthru
      _
    // Predicated region
    $region34: #{mlp_forward_fused.1} parent=1 // pred_check
      _
    $region35: #{mlp_forward_fused.1} parent=1 // pred_check_branch
      %78 = sbr.rel (0) target = $region37
    $region36: #{mlp_forward_fused.1} parent=1 // pred_region
      %79 = dma.done [#allocation7], 32
    $region37: #{mlp_forward_fused.1} parent=1 // pred_fallthru
      _
    // Predicated region
    $region38: #{mlp_forward_fused.1} parent=1 // pred_check
      _
    $region39: #{mlp_forward_fused.1} parent=1 // pred_check_branch
      %81 = sbr.rel (0) target = $region41
    $region40: #{mlp_forward_fused.1} parent=1 // pred_region
      %82 = dma.done [#allocation7], 2048
    $region41: #{mlp_forward_fused.1} parent=1 // pred_fallthru
      _
    // Predicated region
    $region42: #{mlp_forward_fused.1} parent=1 // pred_check
      _
    $region43: #{mlp_forward_fused.1} parent=1 // pred_check_branch
      %84 = sbr.rel (0) target = $region45
    $region44: #{mlp_forward_fused.1} parent=1 // pred_region
      %85 = dma.done [#allocation10], 16
    $region45: #{mlp_forward_fused.1} parent=1 // pred_fallthru
      _
    // Predicated region
    $region46: #{mlp_forward_fused.1} parent=1 // pred_check
      _
    $region47: #{mlp_forward_fused.1} parent=1 // pred_check_branch
      %87 = sbr.rel (0) target = $region49
    $region48: #{mlp_forward_fused.1} parent=1 // pred_region
      %88 = dma.done [#allocation10], 16
    $region49: #{mlp_forward_fused.1} parent=1 // pred_fallthru
      _
    %p90 = scmp.eq.s32.totalorder 0, 0
    // Predicated region
    $region50: #{mlp_forward_fused.1} parent=1 // pred_check
      %p91 = pneg %p90
    $region51: #{mlp_forward_fused.1} parent=1 // pred_check_branch
      %93 = sbr.rel (%p91) target = $region53
    $region52: #{mlp_forward_fused.1} parent=1 // pred_region
      %94 = vst [vmem:[#allocation2] sm:$0xf] 0.0
    $region53: #{mlp_forward_fused.1} parent=1 // pred_fallthru
      _
    %v95 = vld [vmem:[#allocation2] sm:$0xf]
    %v96 = vld [vmem:[%s0] sm:$0xff]
    %v97 = vld [vmem:[%s0 + $0x8] sm:$0xff]
    %v98 = vld [vmem:[%s0 + $0x10] sm:$0xff]
    %v99 = vld [vmem:[%s0 + $0x18] sm:$0xff]
    %v100 = vld [vmem:[%s0 + $0x20] sm:$0xff]
    %v101 = vld [vmem:[%s0 + $0x28] sm:$0xff]
    %v102 = vld [vmem:[#allocation3] sm:$0xff]
    %v103 = vld [vmem:[#allocation3 + $0x8] sm:$0xff]
    %v104 = vld [vmem:[#allocation3 + $0x10] sm:$0xff]
    %v105 = vld [vmem:[#allocation3 + $0x18] sm:$0xff]
    %v106 = vld [vmem:[#allocation3 + $0x20] sm:$0xff]
    %v107 = vld [vmem:[#allocation3 + $0x28] sm:$0xff]
    %v108 = vld [vmem:[#allocation3 + $0x30] sm:$0xff]
    %v109 = vld [vmem:[#allocation3 + $0x38] sm:$0xff]
    %v110 = vld [vmem:[#allocation3 + $0x40] sm:$0xff]
    %v111 = vld [vmem:[#allocation3 + $0x48] sm:$0xff]
    %v112 = vld [vmem:[#allocation3 + $0x50] sm:$0xff]
    %v113 = vld [vmem:[#allocation3 + $0x58] sm:$0xff]
    %v114 = vld [vmem:[#allocation3 + $0x60] sm:$0xff]
    %v115 = vld [vmem:[#allocation3 + $0x68] sm:$0xff]
    %v116 = vld [vmem:[#allocation3 + $0x70] sm:$0xff]
    %v117 = vld [vmem:[#allocation3 + $0x78] sm:$0xff]
    %v118 = vld [vmem:[#allocation3 + $0x80] sm:$0xff]
    %v119 = vld [vmem:[#allocation3 + $0x88] sm:$0xff]
    %v120 = vld [vmem:[#allocation3 + $0x90] sm:$0xff]
    %v121 = vld [vmem:[#allocation3 + $0x98] sm:$0xff]
    %v122 = vld [vmem:[#allocation3 + $0xa0] sm:$0xff]
    %v123 = vld [vmem:[#allocation3 + $0xa8] sm:$0xff]
    %v124 = vld [vmem:[#allocation3 + $0xb0] sm:$0xff]
    %v125 = vld [vmem:[#allocation3 + $0xb8] sm:$0xff]
    %v126 = vld [vmem:[#allocation3 + $0xc0] sm:$0xff]
    %v127 = vld [vmem:[#allocation3 + $0xc8] sm:$0xff]
    %v128 = vld [vmem:[#allocation3 + $0xd0] sm:$0xff]
    %v129 = vld [vmem:[#allocation3 + $0xd8] sm:$0xff]
    %v130 = vld [vmem:[#allocation3 + $0xe0] sm:$0xff]
    %v131 = vld [vmem:[#allocation3 + $0xe8] sm:$0xff]
    %v132 = vld [vmem:[#allocation3 + $0xf0] sm:$0xff]
    %v133 = vld [vmem:[#allocation3 + $0xf8] sm:$0xff]
    %v134 = vld [vmem:[#allocation3 + $0x100] sm:$0xff]
    %v135 = vld [vmem:[#allocation3 + $0x108] sm:$0xff]
    %v136 = vld [vmem:[#allocation3 + $0x110] sm:$0xff]
    %v137 = vld [vmem:[#allocation3 + $0x118] sm:$0xff]
    %v138 = vld [vmem:[#allocation3 + $0x120] sm:$0xff]
    %v139 = vld [vmem:[#allocation3 + $0x128] sm:$0xff]
    %v140 = vld [vmem:[#allocation3 + $0x130] sm:$0xff]
    %v141 = vld [vmem:[#allocation3 + $0x138] sm:$0xff]
    %v142 = vld [vmem:[#allocation3 + $0x140] sm:$0xff]
    %v143 = vld [vmem:[#allocation3 + $0x148] sm:$0xff]
    %v144 = vld [vmem:[#allocation3 + $0x150] sm:$0xff]
    %v145 = vld [vmem:[#allocation3 + $0x158] sm:$0xff]
    %v146 = vld [vmem:[#allocation3 + $0x160] sm:$0xff]
    %v147 = vld [vmem:[#allocation3 + $0x168] sm:$0xff]
    %v148 = vld [vmem:[#allocation3 + $0x170] sm:$0xff]
    %v149 = vld [vmem:[#allocation3 + $0x178] sm:$0xff]
    %v150 = vld [vmem:[#allocation3 + $0x180] sm:$0xff]
    %v151 = vld [vmem:[#allocation3 + $0x188] sm:$0xff]
    %v152 = vld [vmem:[#allocation3 + $0x190] sm:$0xff]
    %v153 = vld [vmem:[#allocation3 + $0x198] sm:$0xff]
    %v154 = vld [vmem:[#allocation3 + $0x1a0] sm:$0xff]
    %v155 = vld [vmem:[#allocation3 + $0x1a8] sm:$0xff]
    %v156 = vld [vmem:[#allocation3 + $0x1b0] sm:$0xff]
    %v157 = vld [vmem:[#allocation3 + $0x1b8] sm:$0xff]
    %v158 = vld [vmem:[#allocation3 + $0x1c0] sm:$0xff]
    %v159 = vld [vmem:[#allocation3 + $0x1c8] sm:$0xff]
    %v160 = vld [vmem:[#allocation3 + $0x1d0] sm:$0xff]
    %v161 = vld [vmem:[#allocation3 + $0x1d8] sm:$0xff]
    %v162 = vld [vmem:[#allocation3 + $0x1e0] sm:$0xff]
    %v163 = vld [vmem:[#allocation3 + $0x1e8] sm:$0xff]
    %v164 = vld [vmem:[#allocation3 + $0x1f0] sm:$0xff]
    %v165 = vld [vmem:[#allocation3 + $0x1f8] sm:$0xff]
    %v166 = vld [vmem:[#allocation3 + $0x200] sm:$0xff]
    %v167 = vld [vmem:[#allocation3 + $0x208] sm:$0xff]
    %v168 = vld [vmem:[#allocation3 + $0x210] sm:$0xff]
    %v169 = vld [vmem:[#allocation3 + $0x218] sm:$0xff]
    %v170 = vld [vmem:[#allocation3 + $0x220] sm:$0xff]
    %v171 = vld [vmem:[#allocation3 + $0x228] sm:$0xff]
    %v172 = vld [vmem:[#allocation3 + $0x230] sm:$0xff]
    %v173 = vld [vmem:[#allocation3 + $0x238] sm:$0xff]
    %v174 = vld [vmem:[#allocation3 + $0x240] sm:$0xff]
    %v175 = vld [vmem:[#allocation3 + $0x248] sm:$0xff]
    %v176 = vld [vmem:[#allocation3 + $0x250] sm:$0xff]
    %v177 = vld [vmem:[#allocation3 + $0x258] sm:$0xff]
    %v178 = vld [vmem:[#allocation3 + $0x260] sm:$0xff]
    %v179 = vld [vmem:[#allocation3 + $0x268] sm:$0xff]
    %v180 = vld [vmem:[#allocation3 + $0x270] sm:$0xff]
    %v181 = vld [vmem:[#allocation3 + $0x278] sm:$0xff]
    %v182 = vld [vmem:[#allocation3 + $0x280] sm:$0xff]
    %v183 = vld [vmem:[#allocation3 + $0x288] sm:$0xff]
    %v184 = vld [vmem:[#allocation3 + $0x290] sm:$0xff]
    %v185 = vld [vmem:[#allocation3 + $0x298] sm:$0xff]
    %v186 = vld [vmem:[#allocation3 + $0x2a0] sm:$0xff]
    %v187 = vld [vmem:[#allocation3 + $0x2a8] sm:$0xff]
    %v188 = vld [vmem:[#allocation3 + $0x2b0] sm:$0xff]
    %v189 = vld [vmem:[#allocation3 + $0x2b8] sm:$0xff]
    %v190 = vld [vmem:[#allocation3 + $0x2c0] sm:$0xff]
    %v191 = vld [vmem:[#allocation3 + $0x2c8] sm:$0xff]
    %v192 = vld [vmem:[#allocation3 + $0x2d0] sm:$0xff]
    %v193 = vld [vmem:[#allocation3 + $0x2d8] sm:$0xff]
    %v194 = vld [vmem:[#allocation3 + $0x2e0] sm:$0xff]
    %v195 = vld [vmem:[#allocation3 + $0x2e8] sm:$0xff]
    %v196 = vld [vmem:[#allocation3 + $0x2f0] sm:$0xff]
    %v197 = vld [vmem:[#allocation3 + $0x2f8] sm:$0xff]
    %v198 = vld [vmem:[#allocation3 + $0x300] sm:$0xff]
    %v199 = vld [vmem:[#allocation3 + $0x308] sm:$0xff]
    %v200 = vld [vmem:[#allocation3 + $0x310] sm:$0xff]
    %v201 = vld [vmem:[#allocation3 + $0x318] sm:$0xff]
    %v202 = vld [vmem:[#allocation3 + $0x320] sm:$0xff]
    %v203 = vld [vmem:[#allocation3 + $0x328] sm:$0xff]
    %v204 = vld [vmem:[#allocation3 + $0x330] sm:$0xff]
    %v205 = vld [vmem:[#allocation3 + $0x338] sm:$0xff]
    %v206 = vld [vmem:[#allocation3 + $0x340] sm:$0xff]
    %v207 = vld [vmem:[#allocation3 + $0x348] sm:$0xff]
    %v208 = vld [vmem:[#allocation3 + $0x350] sm:$0xff]
    %v209 = vld [vmem:[#allocation3 + $0x358] sm:$0xff]
    %v210 = vld [vmem:[#allocation3 + $0x360] sm:$0xff]
    %v211 = vld [vmem:[#allocation3 + $0x368] sm:$0xff]
    %v212 = vld [vmem:[#allocation3 + $0x370] sm:$0xff]
    %v213 = vld [vmem:[#allocation3 + $0x378] sm:$0xff]
    %v214 = vld [vmem:[#allocation3 + $0x380] sm:$0xff]
    %v215 = vld [vmem:[#allocation3 + $0x388] sm:$0xff]
    %v216 = vld [vmem:[#allocation3 + $0x390] sm:$0xff]
    %v217 = vld [vmem:[#allocation3 + $0x398] sm:$0xff]
    %v218 = vld [vmem:[#allocation3 + $0x3a0] sm:$0xff]
    %v219 = vld [vmem:[#allocation3 + $0x3a8] sm:$0xff]
    %v220 = vld [vmem:[#allocation3 + $0x3b0] sm:$0xff]
    %v221 = vld [vmem:[#allocation3 + $0x3b8] sm:$0xff]
    %v222 = vld [vmem:[#allocation3 + $0x3c0] sm:$0xff]
    %v223 = vld [vmem:[#allocation3 + $0x3c8] sm:$0xff]
    %v224 = vld [vmem:[#allocation3 + $0x3d0] sm:$0xff]
    %v225 = vld [vmem:[#allocation3 + $0x3d8] sm:$0xff]
    %v226 = vld [vmem:[#allocation3 + $0x3e0] sm:$0xff]
    %v227 = vld [vmem:[#allocation3 + $0x3e8] sm:$0xff]
    %v228 = vld [vmem:[#allocation3 + $0x3f0] sm:$0xff]
    %v229 = vld [vmem:[#allocation3 + $0x3f8] sm:$0xff]
    %v230 = vld [vmem:[#allocation3 + $0x400] sm:$0xff]
    %v231 = vld [vmem:[#allocation3 + $0x408] sm:$0xff]
    %v232 = vld [vmem:[#allocation3 + $0x410] sm:$0xff]
    %v233 = vld [vmem:[#allocation3 + $0x418] sm:$0xff]
    %v234 = vld [vmem:[#allocation3 + $0x420] sm:$0xff]
    %v235 = vld [vmem:[#allocation3 + $0x428] sm:$0xff]
    %v236 = vld [vmem:[#allocation3 + $0x430] sm:$0xff]
    %v237 = vld [vmem:[#allocation3 + $0x438] sm:$0xff]
    %v238 = vld [vmem:[#allocation3 + $0x440] sm:$0xff]
    %v239 = vld [vmem:[#allocation3 + $0x448] sm:$0xff]
    %v240 = vld [vmem:[#allocation3 + $0x450] sm:$0xff]
    %v241 = vld [vmem:[#allocation3 + $0x458] sm:$0xff]
    %v242 = vld [vmem:[#allocation3 + $0x460] sm:$0xff]
    %v243 = vld [vmem:[#allocation3 + $0x468] sm:$0xff]
    %v244 = vld [vmem:[#allocation3 + $0x470] sm:$0xff]
    %v245 = vld [vmem:[#allocation3 + $0x478] sm:$0xff]
    %v246 = vld [vmem:[#allocation3 + $0x480] sm:$0xff]
    %v247 = vld [vmem:[#allocation3 + $0x488] sm:$0xff]
    %v248 = vld [vmem:[#allocation3 + $0x490] sm:$0xff]
    %v249 = vld [vmem:[#allocation3 + $0x498] sm:$0xff]
    %v250 = vld [vmem:[#allocation3 + $0x4a0] sm:$0xff]
    %v251 = vld [vmem:[#allocation3 + $0x4a8] sm:$0xff]
    %v252 = vld [vmem:[#allocation3 + $0x4b0] sm:$0xff]
    %v253 = vld [vmem:[#allocation3 + $0x4b8] sm:$0xff]
    %v254 = vld [vmem:[#allocation3 + $0x4c0] sm:$0xff]
    %v255 = vld [vmem:[#allocation3 + $0x4c8] sm:$0xff]
    %v256 = vld [vmem:[#allocation3 + $0x4d0] sm:$0xff]
    %v257 = vld [vmem:[#allocation3 + $0x4d8] sm:$0xff]
    %v258 = vld [vmem:[#allocation3 + $0x4e0] sm:$0xff]
    %v259 = vld [vmem:[#allocation3 + $0x4e8] sm:$0xff]
    %v260 = vld [vmem:[#allocation3 + $0x4f0] sm:$0xff]
    %v261 = vld [vmem:[#allocation3 + $0x4f8] sm:$0xff]
    %v262 = vld [vmem:[#allocation3 + $0x500] sm:$0xff]
    %v263 = vld [vmem:[#allocation3 + $0x508] sm:$0xff]
    %v264 = vld [vmem:[#allocation3 + $0x510] sm:$0xff]
    %v265 = vld [vmem:[#allocation3 + $0x518] sm:$0xff]
    %v266 = vld [vmem:[#allocation3 + $0x520] sm:$0xff]
    %v267 = vld [vmem:[#allocation3 + $0x528] sm:$0xff]
    %v268 = vld [vmem:[#allocation3 + $0x530] sm:$0xff]
    %v269 = vld [vmem:[#allocation3 + $0x538] sm:$0xff]
    %v270 = vld [vmem:[#allocation3 + $0x540] sm:$0xff]
    %v271 = vld [vmem:[#allocation3 + $0x548] sm:$0xff]
    %v272 = vld [vmem:[#allocation3 + $0x550] sm:$0xff]
    %v273 = vld [vmem:[#allocation3 + $0x558] sm:$0xff]
    %v274 = vld [vmem:[#allocation3 + $0x560] sm:$0xff]
    %v275 = vld [vmem:[#allocation3 + $0x568] sm:$0xff]
    %v276 = vld [vmem:[#allocation3 + $0x570] sm:$0xff]
    %v277 = vld [vmem:[#allocation3 + $0x578] sm:$0xff]
    %v278 = vld [vmem:[#allocation3 + $0x580] sm:$0xff]
    %v279 = vld [vmem:[#allocation3 + $0x588] sm:$0xff]
    %v280 = vld [vmem:[#allocation3 + $0x590] sm:$0xff]
    %v281 = vld [vmem:[#allocation3 + $0x598] sm:$0xff]
    %v282 = vld [vmem:[#allocation3 + $0x5a0] sm:$0xff]
    %v283 = vld [vmem:[#allocation3 + $0x5a8] sm:$0xff]
    %v284 = vld [vmem:[#allocation3 + $0x5b0] sm:$0xff]
    %v285 = vld [vmem:[#allocation3 + $0x5b8] sm:$0xff]
    %v286 = vld [vmem:[#allocation3 + $0x5c0] sm:$0xff]
    %v287 = vld [vmem:[#allocation3 + $0x5c8] sm:$0xff]
    %v288 = vld [vmem:[#allocation3 + $0x5d0] sm:$0xff]
    %v289 = vld [vmem:[#allocation3 + $0x5d8] sm:$0xff]
    %v290 = vld [vmem:[#allocation3 + $0x5e0] sm:$0xff]
    %v291 = vld [vmem:[#allocation3 + $0x5e8] sm:$0xff]
    %v292 = vld [vmem:[#allocation3 + $0x5f0] sm:$0xff]
    %v293 = vld [vmem:[#allocation3 + $0x5f8] sm:$0xff]
    %v294 = vld [vmem:[#allocation3 + $0x600] sm:$0xff]
    %v295 = vld [vmem:[#allocation3 + $0x608] sm:$0xff]
    %v296 = vld [vmem:[#allocation3 + $0x610] sm:$0xff]
    %v297 = vld [vmem:[#allocation3 + $0x618] sm:$0xff]
    %v298 = vld [vmem:[#allocation3 + $0x620] sm:$0xff]
    %v299 = vld [vmem:[#allocation3 + $0x628] sm:$0xff]
    %v300 = vld [vmem:[#allocation3 + $0x630] sm:$0xff]
    %v301 = vld [vmem:[#allocation3 + $0x638] sm:$0xff]
    %v302 = vld [vmem:[#allocation3 + $0x640] sm:$0xff]
    %v303 = vld [vmem:[#allocation3 + $0x648] sm:$0xff]
    %v304 = vld [vmem:[#allocation3 + $0x650] sm:$0xff]
    %v305 = vld [vmem:[#allocation3 + $0x658] sm:$0xff]
    %v306 = vld [vmem:[#allocation3 + $0x660] sm:$0xff]
    %v307 = vld [vmem:[#allocation3 + $0x668] sm:$0xff]
    %v308 = vld [vmem:[#allocation3 + $0x670] sm:$0xff]
    %v309 = vld [vmem:[#allocation3 + $0x678] sm:$0xff]
    %v310 = vld [vmem:[#allocation3 + $0x680] sm:$0xff]
    %v311 = vld [vmem:[#allocation3 + $0x688] sm:$0xff]
    %v312 = vld [vmem:[#allocation3 + $0x690] sm:$0xff]
    %v313 = vld [vmem:[#allocation3 + $0x698] sm:$0xff]
    %v314 = vld [vmem:[#allocation3 + $0x6a0] sm:$0xff]
    %v315 = vld [vmem:[#allocation3 + $0x6a8] sm:$0xff]
    %v316 = vld [vmem:[#allocation3 + $0x6b0] sm:$0xff]
    %v317 = vld [vmem:[#allocation3 + $0x6b8] sm:$0xff]
    %v318 = vld [vmem:[#allocation3 + $0x6c0] sm:$0xff]
    %v319 = vld [vmem:[#allocation3 + $0x6c8] sm:$0xff]
    %v320 = vld [vmem:[#allocation3 + $0x6d0] sm:$0xff]
    %v321 = vld [vmem:[#allocation3 + $0x6d8] sm:$0xff]
    %v322 = vld [vmem:[#allocation3 + $0x6e0] sm:$0xff]
    %v323 = vld [vmem:[#allocation3 + $0x6e8] sm:$0xff]
    %v324 = vld [vmem:[#allocation3 + $0x6f0] sm:$0xff]
    %v325 = vld [vmem:[#allocation3 + $0x6f8] sm:$0xff]
    %v326 = vld [vmem:[#allocation3 + $0x700] sm:$0xff]
    %v327 = vld [vmem:[#allocation3 + $0x708] sm:$0xff]
    %v328 = vld [vmem:[#allocation3 + $0x710] sm:$0xff]
    %v329 = vld [vmem:[#allocation3 + $0x718] sm:$0xff]
    %v330 = vld [vmem:[#allocation3 + $0x720] sm:$0xff]
    %v331 = vld [vmem:[#allocation3 + $0x728] sm:$0xff]
    %v332 = vld [vmem:[#allocation3 + $0x730] sm:$0xff]
    %v333 = vld [vmem:[#allocation3 + $0x738] sm:$0xff]
    %v334 = vld [vmem:[#allocation3 + $0x740] sm:$0xff]
    %v335 = vld [vmem:[#allocation3 + $0x748] sm:$0xff]
    %v336 = vld [vmem:[#allocation3 + $0x750] sm:$0xff]
    %v337 = vld [vmem:[#allocation3 + $0x758] sm:$0xff]
    %v338 = vld [vmem:[#allocation3 + $0x760] sm:$0xff]
    %v339 = vld [vmem:[#allocation3 + $0x768] sm:$0xff]
    %v340 = vld [vmem:[#allocation3 + $0x770] sm:$0xff]
    %v341 = vld [vmem:[#allocation3 + $0x778] sm:$0xff]
    %v342 = vld [vmem:[#allocation3 + $0x780] sm:$0xff]
    %v343 = vld [vmem:[#allocation3 + $0x788] sm:$0xff]
    %v344 = vld [vmem:[#allocation3 + $0x790] sm:$0xff]
    %v345 = vld [vmem:[#allocation3 + $0x798] sm:$0xff]
    %v346 = vld [vmem:[#allocation3 + $0x7a0] sm:$0xff]
    %v347 = vld [vmem:[#allocation3 + $0x7a8] sm:$0xff]
    %v348 = vld [vmem:[#allocation3 + $0x7b0] sm:$0xff]
    %v349 = vld [vmem:[#allocation3 + $0x7b8] sm:$0xff]
    %v350 = vld [vmem:[#allocation3 + $0x7c0] sm:$0xff]
    %v351 = vld [vmem:[#allocation3 + $0x7c8] sm:$0xff]
    %v352 = vld [vmem:[#allocation3 + $0x7d0] sm:$0xff]
    %v353 = vld [vmem:[#allocation3 + $0x7d8] sm:$0xff]
    %v354 = vld [vmem:[#allocation3 + $0x7e0] sm:$0xff]
    %v355 = vld [vmem:[#allocation3 + $0x7e8] sm:$0xff]
    %v356 = vld [vmem:[#allocation3 + $0x7f0] sm:$0xff]
    %v357 = vld [vmem:[#allocation3 + $0x7f8] sm:$0xff]
    %v358 = vld [vmem:[#allocation3 + $0x800] sm:$0xff]
    %v359 = vld [vmem:[#allocation3 + $0x808] sm:$0xff]
    %v360 = vld [vmem:[#allocation3 + $0x810] sm:$0xff]
    %v361 = vld [vmem:[#allocation3 + $0x818] sm:$0xff]
    %v362 = vld [vmem:[#allocation3 + $0x820] sm:$0xff]
    %v363 = vld [vmem:[#allocation3 + $0x828] sm:$0xff]
    %v364 = vld [vmem:[#allocation3 + $0x830] sm:$0xff]
    %v365 = vld [vmem:[#allocation3 + $0x838] sm:$0xff]
    %v366 = vld [vmem:[#allocation3 + $0x840] sm:$0xff]
    %v367 = vld [vmem:[#allocation3 + $0x848] sm:$0xff]
    %v368 = vld [vmem:[#allocation3 + $0x850] sm:$0xff]
    %v369 = vld [vmem:[#allocation3 + $0x858] sm:$0xff]
    %v370 = vld [vmem:[#allocation3 + $0x860] sm:$0xff]
    %v371 = vld [vmem:[#allocation3 + $0x868] sm:$0xff]
    %v372 = vld [vmem:[#allocation3 + $0x870] sm:$0xff]
    %v373 = vld [vmem:[#allocation3 + $0x878] sm:$0xff]
    %v374 = vld [vmem:[#allocation3 + $0x880] sm:$0xff]
    %v375 = vld [vmem:[#allocation3 + $0x888] sm:$0xff]
    %v376 = vld [vmem:[#allocation3 + $0x890] sm:$0xff]
    %v377 = vld [vmem:[#allocation3 + $0x898] sm:$0xff]
    %v378 = vld [vmem:[#allocation3 + $0x8a0] sm:$0xff]
    %v379 = vld [vmem:[#allocation3 + $0x8a8] sm:$0xff]
    %v380 = vld [vmem:[#allocation3 + $0x8b0] sm:$0xff]
    %v381 = vld [vmem:[#allocation3 + $0x8b8] sm:$0xff]
    %v382 = vld [vmem:[#allocation3 + $0x8c0] sm:$0xff]
    %v383 = vld [vmem:[#allocation3 + $0x8c8] sm:$0xff]
    %v384 = vld [vmem:[#allocation3 + $0x8d0] sm:$0xff]
    %v385 = vld [vmem:[#allocation3 + $0x8d8] sm:$0xff]
    %v386 = vld [vmem:[#allocation3 + $0x8e0] sm:$0xff]
    %v387 = vld [vmem:[#allocation3 + $0x8e8] sm:$0xff]
    %v388 = vld [vmem:[#allocation3 + $0x8f0] sm:$0xff]
    %v389 = vld [vmem:[#allocation3 + $0x8f8] sm:$0xff]
    %v390 = vld [vmem:[#allocation3 + $0x900] sm:$0xff]
    %v391 = vld [vmem:[#allocation3 + $0x908] sm:$0xff]
    %v392 = vld [vmem:[#allocation3 + $0x910] sm:$0xff]
    %v393 = vld [vmem:[#allocation3 + $0x918] sm:$0xff]
    %v394 = vld [vmem:[#allocation3 + $0x920] sm:$0xff]
    %v395 = vld [vmem:[#allocation3 + $0x928] sm:$0xff]
    %v396 = vld [vmem:[#allocation3 + $0x930] sm:$0xff]
    %v397 = vld [vmem:[#allocation3 + $0x938] sm:$0xff]
    %v398 = vld [vmem:[#allocation3 + $0x940] sm:$0xff]
    %v399 = vld [vmem:[#allocation3 + $0x948] sm:$0xff]
    %v400 = vld [vmem:[#allocation3 + $0x950] sm:$0xff]
    %v401 = vld [vmem:[#allocation3 + $0x958] sm:$0xff]
    %v402 = vld [vmem:[#allocation3 + $0x960] sm:$0xff]
    %v403 = vld [vmem:[#allocation3 + $0x968] sm:$0xff]
    %v404 = vld [vmem:[#allocation3 + $0x970] sm:$0xff]
    %v405 = vld [vmem:[#allocation3 + $0x978] sm:$0xff]
    %v406 = vld [vmem:[#allocation3 + $0x980] sm:$0xff]
    %v407 = vld [vmem:[#allocation3 + $0x988] sm:$0xff]
    %v408 = vld [vmem:[#allocation3 + $0x990] sm:$0xff]
    %v409 = vld [vmem:[#allocation3 + $0x998] sm:$0xff]
    %v410 = vld [vmem:[#allocation3 + $0x9a0] sm:$0xff]
    %v411 = vld [vmem:[#allocation3 + $0x9a8] sm:$0xff]
    %v412 = vld [vmem:[#allocation3 + $0x9b0] sm:$0xff]
    %v413 = vld [vmem:[#allocation3 + $0x9b8] sm:$0xff]
    %v414 = vld [vmem:[#allocation3 + $0x9c0] sm:$0xff]
    %v415 = vld [vmem:[#allocation3 + $0x9c8] sm:$0xff]
    %v416 = vld [vmem:[#allocation3 + $0x9d0] sm:$0xff]
    %v417 = vld [vmem:[#allocation3 + $0x9d8] sm:$0xff]
    %v418 = vld [vmem:[#allocation3 + $0x9e0] sm:$0xff]
    %v419 = vld [vmem:[#allocation3 + $0x9e8] sm:$0xff]
    %v420 = vld [vmem:[#allocation3 + $0x9f0] sm:$0xff]
    %v421 = vld [vmem:[#allocation3 + $0x9f8] sm:$0xff]
    %v422 = vld [vmem:[#allocation3 + $0xa00] sm:$0xff]
    %v423 = vld [vmem:[#allocation3 + $0xa08] sm:$0xff]
    %v424 = vld [vmem:[#allocation3 + $0xa10] sm:$0xff]
    %v425 = vld [vmem:[#allocation3 + $0xa18] sm:$0xff]
    %v426 = vld [vmem:[#allocation3 + $0xa20] sm:$0xff]
    %v427 = vld [vmem:[#allocation3 + $0xa28] sm:$0xff]
    %v428 = vld [vmem:[#allocation3 + $0xa30] sm:$0xff]
    %v429 = vld [vmem:[#allocation3 + $0xa38] sm:$0xff]
    %v430 = vld [vmem:[#allocation3 + $0xa40] sm:$0xff]
    %v431 = vld [vmem:[#allocation3 + $0xa48] sm:$0xff]
    %v432 = vld [vmem:[#allocation3 + $0xa50] sm:$0xff]
    %v433 = vld [vmem:[#allocation3 + $0xa58] sm:$0xff]
    %v434 = vld [vmem:[#allocation3 + $0xa60] sm:$0xff]
    %v435 = vld [vmem:[#allocation3 + $0xa68] sm:$0xff]
    %v436 = vld [vmem:[#allocation3 + $0xa70] sm:$0xff]
    %v437 = vld [vmem:[#allocation3 + $0xa78] sm:$0xff]
    %v438 = vld [vmem:[#allocation3 + $0xa80] sm:$0xff]
    %v439 = vld [vmem:[#allocation3 + $0xa88] sm:$0xff]
    %v440 = vld [vmem:[#allocation3 + $0xa90] sm:$0xff]
    %v441 = vld [vmem:[#allocation3 + $0xa98] sm:$0xff]
    %v442 = vld [vmem:[#allocation3 + $0xaa0] sm:$0xff]
    %v443 = vld [vmem:[#allocation3 + $0xaa8] sm:$0xff]
    %v444 = vld [vmem:[#allocation3 + $0xab0] sm:$0xff]
    %v445 = vld [vmem:[#allocation3 + $0xab8] sm:$0xff]
    %v446 = vld [vmem:[#allocation3 + $0xac0] sm:$0xff]
    %v447 = vld [vmem:[#allocation3 + $0xac8] sm:$0xff]
    %v448 = vld [vmem:[#allocation3 + $0xad0] sm:$0xff]
    %v449 = vld [vmem:[#allocation3 + $0xad8] sm:$0xff]
    %v450 = vld [vmem:[#allocation3 + $0xae0] sm:$0xff]
    %v451 = vld [vmem:[#allocation3 + $0xae8] sm:$0xff]
    %v452 = vld [vmem:[#allocation3 + $0xaf0] sm:$0xff]
    %v453 = vld [vmem:[#allocation3 + $0xaf8] sm:$0xff]
    %v454 = vld [vmem:[#allocation3 + $0xb00] sm:$0xff]
    %v455 = vld [vmem:[#allocation3 + $0xb08] sm:$0xff]
    %v456 = vld [vmem:[#allocation3 + $0xb10] sm:$0xff]
    %v457 = vld [vmem:[#allocation3 + $0xb18] sm:$0xff]
    %v458 = vld [vmem:[#allocation3 + $0xb20] sm:$0xff]
    %v459 = vld [vmem:[#allocation3 + $0xb28] sm:$0xff]
    %v460 = vld [vmem:[#allocation3 + $0xb30] sm:$0xff]
    %v461 = vld [vmem:[#allocation3 + $0xb38] sm:$0xff]
    %v462 = vld [vmem:[#allocation3 + $0xb40] sm:$0xff]
    %v463 = vld [vmem:[#allocation3 + $0xb48] sm:$0xff]
    %v464 = vld [vmem:[#allocation3 + $0xb50] sm:$0xff]
    %v465 = vld [vmem:[#allocation3 + $0xb58] sm:$0xff]
    %v466 = vld [vmem:[#allocation3 + $0xb60] sm:$0xff]
    %v467 = vld [vmem:[#allocation3 + $0xb68] sm:$0xff]
    %v468 = vld [vmem:[#allocation3 + $0xb70] sm:$0xff]
    %v469 = vld [vmem:[#allocation3 + $0xb78] sm:$0xff]
    %v470 = vld [vmem:[#allocation3 + $0xb80] sm:$0xff]
    %v471 = vld [vmem:[#allocation3 + $0xb88] sm:$0xff]
    %v472 = vld [vmem:[#allocation3 + $0xb90] sm:$0xff]
    %v473 = vld [vmem:[#allocation3 + $0xb98] sm:$0xff]
    %v474 = vld [vmem:[#allocation3 + $0xba0] sm:$0xff]
    %v475 = vld [vmem:[#allocation3 + $0xba8] sm:$0xff]
    %v476 = vld [vmem:[#allocation3 + $0xbb0] sm:$0xff]
    %v477 = vld [vmem:[#allocation3 + $0xbb8] sm:$0xff]
    %v478 = vld [vmem:[#allocation3 + $0xbc0] sm:$0xff]
    %v479 = vld [vmem:[#allocation3 + $0xbc8] sm:$0xff]
    %v480 = vld [vmem:[#allocation3 + $0xbd0] sm:$0xff]
    %v481 = vld [vmem:[#allocation3 + $0xbd8] sm:$0xff]
    %v482 = vld [vmem:[#allocation3 + $0xbe0] sm:$0xff]
    %v483 = vld [vmem:[#allocation3 + $0xbe8] sm:$0xff]
    %v484 = vld [vmem:[#allocation3 + $0xbf0] sm:$0xff]
    %v485 = vld [vmem:[#allocation3 + $0xbf8] sm:$0xff]
    %v486 = vld [vmem:[#allocation3 + $0xc00] sm:$0xff]
    %v487 = vld [vmem:[#allocation3 + $0xc08] sm:$0xff]
    %v488 = vld [vmem:[#allocation3 + $0xc10] sm:$0xff]
    %v489 = vld [vmem:[#allocation3 + $0xc18] sm:$0xff]
    %v490 = vld [vmem:[#allocation3 + $0xc20] sm:$0xff]
    %v491 = vld [vmem:[#allocation3 + $0xc28] sm:$0xff]
    %v492 = vld [vmem:[#allocation3 + $0xc30] sm:$0xff]
    %v493 = vld [vmem:[#allocation3 + $0xc38] sm:$0xff]
    %v494 = vld [vmem:[#allocation3 + $0xc40] sm:$0xff]
    %v495 = vld [vmem:[#allocation3 + $0xc48] sm:$0xff]
    %v496 = vld [vmem:[#allocation3 + $0xc50] sm:$0xff]
    %v497 = vld [vmem:[#allocation3 + $0xc58] sm:$0xff]
    %v498 = vld [vmem:[#allocation3 + $0xc60] sm:$0xff]
    %v499 = vld [vmem:[#allocation3 + $0xc68] sm:$0xff]
    %v500 = vld [vmem:[#allocation3 + $0xc70] sm:$0xff]
    %v501 = vld [vmem:[#allocation3 + $0xc78] sm:$0xff]
    %v502 = vld [vmem:[#allocation3 + $0xc80] sm:$0xff]
    %v503 = vld [vmem:[#allocation3 + $0xc88] sm:$0xff]
    %v504 = vld [vmem:[#allocation3 + $0xc90] sm:$0xff]
    %v505 = vld [vmem:[#allocation3 + $0xc98] sm:$0xff]
    %v506 = vld [vmem:[#allocation3 + $0xca0] sm:$0xff]
    %v507 = vld [vmem:[#allocation3 + $0xca8] sm:$0xff]
    %v508 = vld [vmem:[#allocation3 + $0xcb0] sm:$0xff]
    %v509 = vld [vmem:[#allocation3 + $0xcb8] sm:$0xff]
    %v510 = vld [vmem:[#allocation3 + $0xcc0] sm:$0xff]
    %v511 = vld [vmem:[#allocation3 + $0xcc8] sm:$0xff]
    %v512 = vld [vmem:[#allocation3 + $0xcd0] sm:$0xff]
    %v513 = vld [vmem:[#allocation3 + $0xcd8] sm:$0xff]
    %v514 = vld [vmem:[#allocation3 + $0xce0] sm:$0xff]
    %v515 = vld [vmem:[#allocation3 + $0xce8] sm:$0xff]
    %v516 = vld [vmem:[#allocation3 + $0xcf0] sm:$0xff]
    %v517 = vld [vmem:[#allocation3 + $0xcf8] sm:$0xff]
    %v518 = vld [vmem:[#allocation3 + $0xd00] sm:$0xff]
    %v519 = vld [vmem:[#allocation3 + $0xd08] sm:$0xff]
    %v520 = vld [vmem:[#allocation3 + $0xd10] sm:$0xff]
    %v521 = vld [vmem:[#allocation3 + $0xd18] sm:$0xff]
    %v522 = vld [vmem:[#allocation3 + $0xd20] sm:$0xff]
    %v523 = vld [vmem:[#allocation3 + $0xd28] sm:$0xff]
    %v524 = vld [vmem:[#allocation3 + $0xd30] sm:$0xff]
    %v525 = vld [vmem:[#allocation3 + $0xd38] sm:$0xff]
    %v526 = vld [vmem:[#allocation3 + $0xd40] sm:$0xff]
    %v527 = vld [vmem:[#allocation3 + $0xd48] sm:$0xff]
    %v528 = vld [vmem:[#allocation3 + $0xd50] sm:$0xff]
    %v529 = vld [vmem:[#allocation3 + $0xd58] sm:$0xff]
    %v530 = vld [vmem:[#allocation3 + $0xd60] sm:$0xff]
    %v531 = vld [vmem:[#allocation3 + $0xd68] sm:$0xff]
    %v532 = vld [vmem:[#allocation3 + $0xd70] sm:$0xff]
    %v533 = vld [vmem:[#allocation3 + $0xd78] sm:$0xff]
    %v534 = vld [vmem:[#allocation3 + $0xd80] sm:$0xff]
    %v535 = vld [vmem:[#allocation3 + $0xd88] sm:$0xff]
    %v536 = vld [vmem:[#allocation3 + $0xd90] sm:$0xff]
    %v537 = vld [vmem:[#allocation3 + $0xd98] sm:$0xff]
    %v538 = vld [vmem:[#allocation3 + $0xda0] sm:$0xff]
    %v539 = vld [vmem:[#allocation3 + $0xda8] sm:$0xff]
    %v540 = vld [vmem:[#allocation3 + $0xdb0] sm:$0xff]
    %v541 = vld [vmem:[#allocation3 + $0xdb8] sm:$0xff]
    %v542 = vld [vmem:[#allocation3 + $0xdc0] sm:$0xff]
    %v543 = vld [vmem:[#allocation3 + $0xdc8] sm:$0xff]
    %v544 = vld [vmem:[#allocation3 + $0xdd0] sm:$0xff]
    %v545 = vld [vmem:[#allocation3 + $0xdd8] sm:$0xff]
    %v546 = vld [vmem:[#allocation3 + $0xde0] sm:$0xff]
    %v547 = vld [vmem:[#allocation3 + $0xde8] sm:$0xff]
    %v548 = vld [vmem:[#allocation3 + $0xdf0] sm:$0xff]
    %v549 = vld [vmem:[#allocation3 + $0xdf8] sm:$0xff]
    %v550 = vld [vmem:[#allocation3 + $0xe00] sm:$0xff]
    %v551 = vld [vmem:[#allocation3 + $0xe08] sm:$0xff]
    %v552 = vld [vmem:[#allocation3 + $0xe10] sm:$0xff]
    %v553 = vld [vmem:[#allocation3 + $0xe18] sm:$0xff]
    %v554 = vld [vmem:[#allocation3 + $0xe20] sm:$0xff]
    %v555 = vld [vmem:[#allocation3 + $0xe28] sm:$0xff]
    %v556 = vld [vmem:[#allocation3 + $0xe30] sm:$0xff]
    %v557 = vld [vmem:[#allocation3 + $0xe38] sm:$0xff]
    %v558 = vld [vmem:[#allocation3 + $0xe40] sm:$0xff]
    %v559 = vld [vmem:[#allocation3 + $0xe48] sm:$0xff]
    %v560 = vld [vmem:[#allocation3 + $0xe50] sm:$0xff]
    %v561 = vld [vmem:[#allocation3 + $0xe58] sm:$0xff]
    %v562 = vld [vmem:[#allocation3 + $0xe60] sm:$0xff]
    %v563 = vld [vmem:[#allocation3 + $0xe68] sm:$0xff]
    %v564 = vld [vmem:[#allocation3 + $0xe70] sm:$0xff]
    %v565 = vld [vmem:[#allocation3 + $0xe78] sm:$0xff]
    %v566 = vld [vmem:[#allocation3 + $0xe80] sm:$0xff]
    %v567 = vld [vmem:[#allocation3 + $0xe88] sm:$0xff]
    %v568 = vld [vmem:[#allocation3 + $0xe90] sm:$0xff]
    %v569 = vld [vmem:[#allocation3 + $0xe98] sm:$0xff]
    %v570 = vld [vmem:[#allocation3 + $0xea0] sm:$0xff]
    %v571 = vld [vmem:[#allocation3 + $0xea8] sm:$0xff]
    %v572 = vld [vmem:[#allocation3 + $0xeb0] sm:$0xff]
    %v573 = vld [vmem:[#allocation3 + $0xeb8] sm:$0xff]
    %v574 = vld [vmem:[#allocation3 + $0xec0] sm:$0xff]
    %v575 = vld [vmem:[#allocation3 + $0xec8] sm:$0xff]
    %v576 = vld [vmem:[#allocation3 + $0xed0] sm:$0xff]
    %v577 = vld [vmem:[#allocation3 + $0xed8] sm:$0xff]
    %v578 = vld [vmem:[#allocation3 + $0xee0] sm:$0xff]
    %v579 = vld [vmem:[#allocation3 + $0xee8] sm:$0xff]
    %v580 = vld [vmem:[#allocation3 + $0xef0] sm:$0xff]
    %v581 = vld [vmem:[#allocation3 + $0xef8] sm:$0xff]
    %v582 = vld [vmem:[#allocation3 + $0xf00] sm:$0xff]
    %v583 = vld [vmem:[#allocation3 + $0xf08] sm:$0xff]
    %v584 = vld [vmem:[#allocation3 + $0xf10] sm:$0xff]
    %v585 = vld [vmem:[#allocation3 + $0xf18] sm:$0xff]
    %v586 = vld [vmem:[#allocation3 + $0xf20] sm:$0xff]
    %v587 = vld [vmem:[#allocation3 + $0xf28] sm:$0xff]
    %v588 = vld [vmem:[#allocation3 + $0xf30] sm:$0xff]
    %v589 = vld [vmem:[#allocation3 + $0xf38] sm:$0xff]
    %v590 = vld [vmem:[#allocation3 + $0xf40] sm:$0xff]
    %v591 = vld [vmem:[#allocation3 + $0xf48] sm:$0xff]
    %v592 = vld [vmem:[#allocation3 + $0xf50] sm:$0xff]
    %v593 = vld [vmem:[#allocation3 + $0xf58] sm:$0xff]
    %v594 = vld [vmem:[#allocation3 + $0xf60] sm:$0xff]
    %v595 = vld [vmem:[#allocation3 + $0xf68] sm:$0xff]
    %v596 = vld [vmem:[#allocation3 + $0xf70] sm:$0xff]
    %v597 = vld [vmem:[#allocation3 + $0xf78] sm:$0xff]
    %v598 = vld [vmem:[#allocation3 + $0xf80] sm:$0xff]
    %v599 = vld [vmem:[#allocation3 + $0xf88] sm:$0xff]
    %v600 = vld [vmem:[#allocation3 + $0xf90] sm:$0xff]
    %v601 = vld [vmem:[#allocation3 + $0xf98] sm:$0xff]
    %v602 = vld [vmem:[#allocation3 + $0xfa0] sm:$0xff]
    %v603 = vld [vmem:[#allocation3 + $0xfa8] sm:$0xff]
    %v604 = vld [vmem:[#allocation3 + $0xfb0] sm:$0xff]
    %v605 = vld [vmem:[#allocation3 + $0xfb8] sm:$0xff]
    %v606 = vld [vmem:[#allocation3 + $0xfc0] sm:$0xff]
    %v607 = vld [vmem:[#allocation3 + $0xfc8] sm:$0xff]
    %v608 = vld [vmem:[#allocation3 + $0xfd0] sm:$0xff]
    %v609 = vld [vmem:[#allocation3 + $0xfd8] sm:$0xff]
    %v610 = vld [vmem:[#allocation3 + $0xfe0] sm:$0xff]
    %v611 = vld [vmem:[#allocation3 + $0xfe8] sm:$0xff]
    %v612 = vld [vmem:[#allocation3 + $0xff0] sm:$0xff]
    %v613 = vld [vmem:[#allocation3 + $0xff8] sm:$0xff]
    %v614 = vld [vmem:[#allocation3 + $0x1000] sm:$0xff]
    %v615 = vld [vmem:[#allocation3 + $0x1008] sm:$0xff]
    %v616 = vld [vmem:[#allocation3 + $0x1010] sm:$0xff]
    %v617 = vld [vmem:[#allocation3 + $0x1018] sm:$0xff]
    %v618 = vld [vmem:[#allocation3 + $0x1020] sm:$0xff]
    %v619 = vld [vmem:[#allocation3 + $0x1028] sm:$0xff]
    %v620 = vld [vmem:[#allocation3 + $0x1030] sm:$0xff]
    %v621 = vld [vmem:[#allocation3 + $0x1038] sm:$0xff]
    %v622 = vld [vmem:[#allocation3 + $0x1040] sm:$0xff]
    %v623 = vld [vmem:[#allocation3 + $0x1048] sm:$0xff]
    %v624 = vld [vmem:[#allocation3 + $0x1050] sm:$0xff]
    %v625 = vld [vmem:[#allocation3 + $0x1058] sm:$0xff]
    %v626 = vld [vmem:[#allocation3 + $0x1060] sm:$0xff]
    %v627 = vld [vmem:[#allocation3 + $0x1068] sm:$0xff]
    %v628 = vld [vmem:[#allocation3 + $0x1070] sm:$0xff]
    %v629 = vld [vmem:[#allocation3 + $0x1078] sm:$0xff]
    %v630 = vld [vmem:[#allocation3 + $0x1080] sm:$0xff]
    %v631 = vld [vmem:[#allocation3 + $0x1088] sm:$0xff]
    %v632 = vld [vmem:[#allocation3 + $0x1090] sm:$0xff]
    %v633 = vld [vmem:[#allocation3 + $0x1098] sm:$0xff]
    %v634 = vld [vmem:[#allocation3 + $0x10a0] sm:$0xff]
    %v635 = vld [vmem:[#allocation3 + $0x10a8] sm:$0xff]
    %v636 = vld [vmem:[#allocation3 + $0x10b0] sm:$0xff]
    %v637 = vld [vmem:[#allocation3 + $0x10b8] sm:$0xff]
    %v638 = vld [vmem:[#allocation3 + $0x10c0] sm:$0xff]
    %v639 = vld [vmem:[#allocation3 + $0x10c8] sm:$0xff]
    %v640 = vld [vmem:[#allocation3 + $0x10d0] sm:$0xff]
    %v641 = vld [vmem:[#allocation3 + $0x10d8] sm:$0xff]
    %v642 = vld [vmem:[#allocation3 + $0x10e0] sm:$0xff]
    %v643 = vld [vmem:[#allocation3 + $0x10e8] sm:$0xff]
    %v644 = vld [vmem:[#allocation3 + $0x10f0] sm:$0xff]
    %v645 = vld [vmem:[#allocation3 + $0x10f8] sm:$0xff]
    %v646 = vld [vmem:[#allocation3 + $0x1100] sm:$0xff]
    %v647 = vld [vmem:[#allocation3 + $0x1108] sm:$0xff]
    %v648 = vld [vmem:[#allocation3 + $0x1110] sm:$0xff]
    %v649 = vld [vmem:[#allocation3 + $0x1118] sm:$0xff]
    %v650 = vld [vmem:[#allocation3 + $0x1120] sm:$0xff]
    %v651 = vld [vmem:[#allocation3 + $0x1128] sm:$0xff]
    %v652 = vld [vmem:[#allocation3 + $0x1130] sm:$0xff]
    %v653 = vld [vmem:[#allocation3 + $0x1138] sm:$0xff]
    %v654 = vld [vmem:[#allocation3 + $0x1140] sm:$0xff]
    %v655 = vld [vmem:[#allocation3 + $0x1148] sm:$0xff]
    %v656 = vld [vmem:[#allocation3 + $0x1150] sm:$0xff]
    %v657 = vld [vmem:[#allocation3 + $0x1158] sm:$0xff]
    %v658 = vld [vmem:[#allocation3 + $0x1160] sm:$0xff]
    %v659 = vld [vmem:[#allocation3 + $0x1168] sm:$0xff]
    %v660 = vld [vmem:[#allocation3 + $0x1170] sm:$0xff]
    %v661 = vld [vmem:[#allocation3 + $0x1178] sm:$0xff]
    %v662 = vld [vmem:[#allocation3 + $0x1180] sm:$0xff]
    %v663 = vld [vmem:[#allocation3 + $0x1188] sm:$0xff]
    %v664 = vld [vmem:[#allocation3 + $0x1190] sm:$0xff]
    %v665 = vld [vmem:[#allocation3 + $0x1198] sm:$0xff]
    %v666 = vld [vmem:[#allocation3 + $0x11a0] sm:$0xff]
    %v667 = vld [vmem:[#allocation3 + $0x11a8] sm:$0xff]
    %v668 = vld [vmem:[#allocation3 + $0x11b0] sm:$0xff]
    %v669 = vld [vmem:[#allocation3 + $0x11b8] sm:$0xff]
    %v670 = vld [vmem:[#allocation3 + $0x11c0] sm:$0xff]
    %v671 = vld [vmem:[#allocation3 + $0x11c8] sm:$0xff]
    %v672 = vld [vmem:[#allocation3 + $0x11d0] sm:$0xff]
    %v673 = vld [vmem:[#allocation3 + $0x11d8] sm:$0xff]
    %v674 = vld [vmem:[#allocation3 + $0x11e0] sm:$0xff]
    %v675 = vld [vmem:[#allocation3 + $0x11e8] sm:$0xff]
    %v676 = vld [vmem:[#allocation3 + $0x11f0] sm:$0xff]
    %v677 = vld [vmem:[#allocation3 + $0x11f8] sm:$0xff]
    %v678 = vld [vmem:[#allocation3 + $0x1200] sm:$0xff]
    %v679 = vld [vmem:[#allocation3 + $0x1208] sm:$0xff]
    %v680 = vld [vmem:[#allocation3 + $0x1210] sm:$0xff]
    %v681 = vld [vmem:[#allocation3 + $0x1218] sm:$0xff]
    %v682 = vld [vmem:[#allocation3 + $0x1220] sm:$0xff]
    %v683 = vld [vmem:[#allocation3 + $0x1228] sm:$0xff]
    %v684 = vld [vmem:[#allocation3 + $0x1230] sm:$0xff]
    %v685 = vld [vmem:[#allocation3 + $0x1238] sm:$0xff]
    %v686 = vld [vmem:[#allocation3 + $0x1240] sm:$0xff]
    %v687 = vld [vmem:[#allocation3 + $0x1248] sm:$0xff]
    %v688 = vld [vmem:[#allocation3 + $0x1250] sm:$0xff]
    %v689 = vld [vmem:[#allocation3 + $0x1258] sm:$0xff]
    %v690 = vld [vmem:[#allocation3 + $0x1260] sm:$0xff]
    %v691 = vld [vmem:[#allocation3 + $0x1268] sm:$0xff]
    %v692 = vld [vmem:[#allocation3 + $0x1270] sm:$0xff]
    %v693 = vld [vmem:[#allocation3 + $0x1278] sm:$0xff]
    %v694 = vld [vmem:[#allocation3 + $0x1280] sm:$0xff]
    %v695 = vld [vmem:[#allocation3 + $0x1288] sm:$0xff]
    %v696 = vld [vmem:[#allocation3 + $0x1290] sm:$0xff]
    %v697 = vld [vmem:[#allocation3 + $0x1298] sm:$0xff]
    %v698 = vld [vmem:[#allocation3 + $0x12a0] sm:$0xff]
    %v699 = vld [vmem:[#allocation3 + $0x12a8] sm:$0xff]
    %v700 = vld [vmem:[#allocation3 + $0x12b0] sm:$0xff]
    %v701 = vld [vmem:[#allocation3 + $0x12b8] sm:$0xff]
    %v702 = vld [vmem:[#allocation3 + $0x12c0] sm:$0xff]
    %v703 = vld [vmem:[#allocation3 + $0x12c8] sm:$0xff]
    %v704 = vld [vmem:[#allocation3 + $0x12d0] sm:$0xff]
    %v705 = vld [vmem:[#allocation3 + $0x12d8] sm:$0xff]
    %v706 = vld [vmem:[#allocation3 + $0x12e0] sm:$0xff]
    %v707 = vld [vmem:[#allocation3 + $0x12e8] sm:$0xff]
    %v708 = vld [vmem:[#allocation3 + $0x12f0] sm:$0xff]
    %v709 = vld [vmem:[#allocation3 + $0x12f8] sm:$0xff]
    %v710 = vld [vmem:[#allocation3 + $0x1300] sm:$0xff]
    %v711 = vld [vmem:[#allocation3 + $0x1308] sm:$0xff]
    %v712 = vld [vmem:[#allocation3 + $0x1310] sm:$0xff]
    %v713 = vld [vmem:[#allocation3 + $0x1318] sm:$0xff]
    %v714 = vld [vmem:[#allocation3 + $0x1320] sm:$0xff]
    %v715 = vld [vmem:[#allocation3 + $0x1328] sm:$0xff]
    %v716 = vld [vmem:[#allocation3 + $0x1330] sm:$0xff]
    %v717 = vld [vmem:[#allocation3 + $0x1338] sm:$0xff]
    %v718 = vld [vmem:[#allocation3 + $0x1340] sm:$0xff]
    %v719 = vld [vmem:[#allocation3 + $0x1348] sm:$0xff]
    %v720 = vld [vmem:[#allocation3 + $0x1350] sm:$0xff]
    %v721 = vld [vmem:[#allocation3 + $0x1358] sm:$0xff]
    %v722 = vld [vmem:[#allocation3 + $0x1360] sm:$0xff]
    %v723 = vld [vmem:[#allocation3 + $0x1368] sm:$0xff]
    %v724 = vld [vmem:[#allocation3 + $0x1370] sm:$0xff]
    %v725 = vld [vmem:[#allocation3 + $0x1378] sm:$0xff]
    %v726 = vld [vmem:[#allocation3 + $0x1380] sm:$0xff]
    %v727 = vld [vmem:[#allocation3 + $0x1388] sm:$0xff]
    %v728 = vld [vmem:[#allocation3 + $0x1390] sm:$0xff]
    %v729 = vld [vmem:[#allocation3 + $0x1398] sm:$0xff]
    %v730 = vld [vmem:[#allocation3 + $0x13a0] sm:$0xff]
    %v731 = vld [vmem:[#allocation3 + $0x13a8] sm:$0xff]
    %v732 = vld [vmem:[#allocation3 + $0x13b0] sm:$0xff]
    %v733 = vld [vmem:[#allocation3 + $0x13b8] sm:$0xff]
    %v734 = vld [vmem:[#allocation3 + $0x13c0] sm:$0xff]
    %v735 = vld [vmem:[#allocation3 + $0x13c8] sm:$0xff]
    %v736 = vld [vmem:[#allocation3 + $0x13d0] sm:$0xff]
    %v737 = vld [vmem:[#allocation3 + $0x13d8] sm:$0xff]
    %v738 = vld [vmem:[#allocation3 + $0x13e0] sm:$0xff]
    %v739 = vld [vmem:[#allocation3 + $0x13e8] sm:$0xff]
    %v740 = vld [vmem:[#allocation3 + $0x13f0] sm:$0xff]
    %v741 = vld [vmem:[#allocation3 + $0x13f8] sm:$0xff]
    %v742 = vld [vmem:[#allocation3 + $0x1400] sm:$0xff]
    %v743 = vld [vmem:[#allocation3 + $0x1408] sm:$0xff]
    %v744 = vld [vmem:[#allocation3 + $0x1410] sm:$0xff]
    %v745 = vld [vmem:[#allocation3 + $0x1418] sm:$0xff]
    %v746 = vld [vmem:[#allocation3 + $0x1420] sm:$0xff]
    %v747 = vld [vmem:[#allocation3 + $0x1428] sm:$0xff]
    %v748 = vld [vmem:[#allocation3 + $0x1430] sm:$0xff]
    %v749 = vld [vmem:[#allocation3 + $0x1438] sm:$0xff]
    %v750 = vld [vmem:[#allocation3 + $0x1440] sm:$0xff]
    %v751 = vld [vmem:[#allocation3 + $0x1448] sm:$0xff]
    %v752 = vld [vmem:[#allocation3 + $0x1450] sm:$0xff]
    %v753 = vld [vmem:[#allocation3 + $0x1458] sm:$0xff]
    %v754 = vld [vmem:[#allocation3 + $0x1460] sm:$0xff]
    %v755 = vld [vmem:[#allocation3 + $0x1468] sm:$0xff]
    %v756 = vld [vmem:[#allocation3 + $0x1470] sm:$0xff]
    %v757 = vld [vmem:[#allocation3 + $0x1478] sm:$0xff]
    %v758 = vld [vmem:[#allocation3 + $0x1480] sm:$0xff]
    %v759 = vld [vmem:[#allocation3 + $0x1488] sm:$0xff]
    %v760 = vld [vmem:[#allocation3 + $0x1490] sm:$0xff]
    %v761 = vld [vmem:[#allocation3 + $0x1498] sm:$0xff]
    %v762 = vld [vmem:[#allocation3 + $0x14a0] sm:$0xff]
    %v763 = vld [vmem:[#allocation3 + $0x14a8] sm:$0xff]
    %v764 = vld [vmem:[#allocation3 + $0x14b0] sm:$0xff]
    %v765 = vld [vmem:[#allocation3 + $0x14b8] sm:$0xff]
    %v766 = vld [vmem:[#allocation3 + $0x14c0] sm:$0xff]
    %v767 = vld [vmem:[#allocation3 + $0x14c8] sm:$0xff]
    %v768 = vld [vmem:[#allocation3 + $0x14d0] sm:$0xff]
    %v769 = vld [vmem:[#allocation3 + $0x14d8] sm:$0xff]
    %v770 = vld [vmem:[#allocation3 + $0x14e0] sm:$0xff]
    %v771 = vld [vmem:[#allocation3 + $0x14e8] sm:$0xff]
    %v772 = vld [vmem:[#allocation3 + $0x14f0] sm:$0xff]
    %v773 = vld [vmem:[#allocation3 + $0x14f8] sm:$0xff]
    %v774 = vld [vmem:[#allocation3 + $0x1500] sm:$0xff]
    %v775 = vld [vmem:[#allocation3 + $0x1508] sm:$0xff]
    %v776 = vld [vmem:[#allocation3 + $0x1510] sm:$0xff]
    %v777 = vld [vmem:[#allocation3 + $0x1518] sm:$0xff]
    %v778 = vld [vmem:[#allocation3 + $0x1520] sm:$0xff]
    %v779 = vld [vmem:[#allocation3 + $0x1528] sm:$0xff]
    %v780 = vld [vmem:[#allocation3 + $0x1530] sm:$0xff]
    %v781 = vld [vmem:[#allocation3 + $0x1538] sm:$0xff]
    %v782 = vld [vmem:[#allocation3 + $0x1540] sm:$0xff]
    %v783 = vld [vmem:[#allocation3 + $0x1548] sm:$0xff]
    %v784 = vld [vmem:[#allocation3 + $0x1550] sm:$0xff]
    %v785 = vld [vmem:[#allocation3 + $0x1558] sm:$0xff]
    %v786 = vld [vmem:[#allocation3 + $0x1560] sm:$0xff]
    %v787 = vld [vmem:[#allocation3 + $0x1568] sm:$0xff]
    %v788 = vld [vmem:[#allocation3 + $0x1570] sm:$0xff]
    %v789 = vld [vmem:[#allocation3 + $0x1578] sm:$0xff]
    %v790 = vld [vmem:[#allocation3 + $0x1580] sm:$0xff]
    %v791 = vld [vmem:[#allocation3 + $0x1588] sm:$0xff]
    %v792 = vld [vmem:[#allocation3 + $0x1590] sm:$0xff]
    %v793 = vld [vmem:[#allocation3 + $0x1598] sm:$0xff]
    %v794 = vld [vmem:[#allocation3 + $0x15a0] sm:$0xff]
    %v795 = vld [vmem:[#allocation3 + $0x15a8] sm:$0xff]
    %v796 = vld [vmem:[#allocation3 + $0x15b0] sm:$0xff]
    %v797 = vld [vmem:[#allocation3 + $0x15b8] sm:$0xff]
    %v798 = vld [vmem:[#allocation3 + $0x15c0] sm:$0xff]
    %v799 = vld [vmem:[#allocation3 + $0x15c8] sm:$0xff]
    %v800 = vld [vmem:[#allocation3 + $0x15d0] sm:$0xff]
    %v801 = vld [vmem:[#allocation3 + $0x15d8] sm:$0xff]
    %v802 = vld [vmem:[#allocation3 + $0x15e0] sm:$0xff]
    %v803 = vld [vmem:[#allocation3 + $0x15e8] sm:$0xff]
    %v804 = vld [vmem:[#allocation3 + $0x15f0] sm:$0xff]
    %v805 = vld [vmem:[#allocation3 + $0x15f8] sm:$0xff]
    %v806 = vld [vmem:[#allocation3 + $0x1600] sm:$0xff]
    %v807 = vld [vmem:[#allocation3 + $0x1608] sm:$0xff]
    %v808 = vld [vmem:[#allocation3 + $0x1610] sm:$0xff]
    %v809 = vld [vmem:[#allocation3 + $0x1618] sm:$0xff]
    %v810 = vld [vmem:[#allocation3 + $0x1620] sm:$0xff]
    %v811 = vld [vmem:[#allocation3 + $0x1628] sm:$0xff]
    %v812 = vld [vmem:[#allocation3 + $0x1630] sm:$0xff]
    %v813 = vld [vmem:[#allocation3 + $0x1638] sm:$0xff]
    %v814 = vld [vmem:[#allocation3 + $0x1640] sm:$0xff]
    %v815 = vld [vmem:[#allocation3 + $0x1648] sm:$0xff]
    %v816 = vld [vmem:[#allocation3 + $0x1650] sm:$0xff]
    %v817 = vld [vmem:[#allocation3 + $0x1658] sm:$0xff]
    %v818 = vld [vmem:[#allocation3 + $0x1660] sm:$0xff]
    %v819 = vld [vmem:[#allocation3 + $0x1668] sm:$0xff]
    %v820 = vld [vmem:[#allocation3 + $0x1670] sm:$0xff]
    %v821 = vld [vmem:[#allocation3 + $0x1678] sm:$0xff]
    %v822 = vld [vmem:[#allocation3 + $0x1680] sm:$0xff]
    %v823 = vld [vmem:[#allocation3 + $0x1688] sm:$0xff]
    %v824 = vld [vmem:[#allocation3 + $0x1690] sm:$0xff]
    %v825 = vld [vmem:[#allocation3 + $0x1698] sm:$0xff]
    %v826 = vld [vmem:[#allocation3 + $0x16a0] sm:$0xff]
    %v827 = vld [vmem:[#allocation3 + $0x16a8] sm:$0xff]
    %v828 = vld [vmem:[#allocation3 + $0x16b0] sm:$0xff]
    %v829 = vld [vmem:[#allocation3 + $0x16b8] sm:$0xff]
    %v830 = vld [vmem:[#allocation3 + $0x16c0] sm:$0xff]
    %v831 = vld [vmem:[#allocation3 + $0x16c8] sm:$0xff]
    %v832 = vld [vmem:[#allocation3 + $0x16d0] sm:$0xff]
    %v833 = vld [vmem:[#allocation3 + $0x16d8] sm:$0xff]
    %v834 = vld [vmem:[#allocation3 + $0x16e0] sm:$0xff]
    %v835 = vld [vmem:[#allocation3 + $0x16e8] sm:$0xff]
    %v836 = vld [vmem:[#allocation3 + $0x16f0] sm:$0xff]
    %v837 = vld [vmem:[#allocation3 + $0x16f8] sm:$0xff]
    %v838 = vld [vmem:[#allocation3 + $0x1700] sm:$0xff]
    %v839 = vld [vmem:[#allocation3 + $0x1708] sm:$0xff]
    %v840 = vld [vmem:[#allocation3 + $0x1710] sm:$0xff]
    %v841 = vld [vmem:[#allocation3 + $0x1718] sm:$0xff]
    %v842 = vld [vmem:[#allocation3 + $0x1720] sm:$0xff]
    %v843 = vld [vmem:[#allocation3 + $0x1728] sm:$0xff]
    %v844 = vld [vmem:[#allocation3 + $0x1730] sm:$0xff]
    %v845 = vld [vmem:[#allocation3 + $0x1738] sm:$0xff]
    %v846 = vld [vmem:[#allocation3 + $0x1740] sm:$0xff]
    %v847 = vld [vmem:[#allocation3 + $0x1748] sm:$0xff]
    %v848 = vld [vmem:[#allocation3 + $0x1750] sm:$0xff]
    %v849 = vld [vmem:[#allocation3 + $0x1758] sm:$0xff]
    %v850 = vld [vmem:[#allocation3 + $0x1760] sm:$0xff]
    %v851 = vld [vmem:[#allocation3 + $0x1768] sm:$0xff]
    %v852 = vld [vmem:[#allocation3 + $0x1770] sm:$0xff]
    %v853 = vld [vmem:[#allocation3 + $0x1778] sm:$0xff]
    %v854 = vld [vmem:[#allocation3 + $0x1780] sm:$0xff]
    %v855 = vld [vmem:[#allocation3 + $0x1788] sm:$0xff]
    %v856 = vld [vmem:[#allocation3 + $0x1790] sm:$0xff]
    %v857 = vld [vmem:[#allocation3 + $0x1798] sm:$0xff]
    %v858 = vld [vmem:[#allocation3 + $0x17a0] sm:$0xff]
    %v859 = vld [vmem:[#allocation3 + $0x17a8] sm:$0xff]
    %v860 = vld [vmem:[#allocation3 + $0x17b0] sm:$0xff]
    %v861 = vld [vmem:[#allocation3 + $0x17b8] sm:$0xff]
    %v862 = vld [vmem:[#allocation3 + $0x17c0] sm:$0xff]
    %v863 = vld [vmem:[#allocation3 + $0x17c8] sm:$0xff]
    %v864 = vld [vmem:[#allocation3 + $0x17d0] sm:$0xff]
    %v865 = vld [vmem:[#allocation3 + $0x17d8] sm:$0xff]
    %v866 = vld [vmem:[#allocation3 + $0x17e0] sm:$0xff]
    %v867 = vld [vmem:[#allocation3 + $0x17e8] sm:$0xff]
    %v868 = vld [vmem:[#allocation3 + $0x17f0] sm:$0xff]
    %v869 = vld [vmem:[#allocation3 + $0x17f8] sm:$0xff]
    %v876 = vcombine.high %v96, %v96
    %v878 = vunpack.c.l.s4 1966171168
    %v879 = vunpack.c.0.s8 %v878
    %v880 = vlaneseq
    %v881 = vshrl.u32 %v880, 7
    %v882 = vsub.s32 %v879, %v881
    %v883 = vrot.slane %v96, %v882
    %v885 = vunpack.c.l.s4 1966171168
    %v886 = vunpack.c.0.s8 %v885
    %v887 = vlaneseq
    %v888 = vshrl.u32 %v887, 7
    %v889 = vsub.s32 %v886, %v888
    %v890 = vrot.slane %v876, %v889
    %v891 = vcombine.high %v883, %v883
    %v892 = vcombine.high %v890, %v890
    %v894 = vunpack.c.l.s4 1966171168
    %v895 = vunpack.c.0.s8 %v894
    %v896 = vlaneseq
    %v897 = vshrl.u32 %v896, 7
    %v898 = vsub.s32 %v895, %v897
    %v899 = vrot.slane %v883, %v898
    %v901 = vunpack.c.l.s4 1966171168
    %v902 = vunpack.c.0.s8 %v901
    %v903 = vlaneseq
    %v904 = vshrl.u32 %v903, 7
    %v905 = vsub.s32 %v902, %v904
    %v906 = vrot.slane %v890, %v905
    %v908 = vunpack.c.l.s4 1966171168
    %v909 = vunpack.c.0.s8 %v908
    %v910 = vlaneseq
    %v911 = vshrl.u32 %v910, 7
    %v912 = vsub.s32 %v909, %v911
    %v913 = vrot.slane %v891, %v912
    %v915 = vunpack.c.l.s4 1966171168
    %v916 = vunpack.c.0.s8 %v915
    %v917 = vlaneseq
    %v918 = vshrl.u32 %v917, 7
    %v919 = vsub.s32 %v916, %v918
    %v920 = vrot.slane %v892, %v919
    %v921 = vcombine.high %v899, %v899
    %v922 = vcombine.high %v906, %v906
    %v923 = vcombine.high %v913, %v913
    %v924 = vcombine.high %v920, %v920
    %v925 = vcombine.high %v97, %v97
    %v927 = vunpack.c.l.s4 1966171168
    %v928 = vunpack.c.0.s8 %v927
    %v929 = vlaneseq
    %v930 = vshrl.u32 %v929, 7
    %v931 = vsub.s32 %v928, %v930
    %v932 = vrot.slane %v97, %v931
    %v934 = vunpack.c.l.s4 1966171168
    %v935 = vunpack.c.0.s8 %v934
    %v936 = vlaneseq
    %v937 = vshrl.u32 %v936, 7
    %v938 = vsub.s32 %v935, %v937
    %v939 = vrot.slane %v925, %v938
    %v940 = vcombine.high %v932, %v932
    %v941 = vcombine.high %v939, %v939
    %v943 = vunpack.c.l.s4 1966171168
    %v944 = vunpack.c.0.s8 %v943
    %v945 = vlaneseq
    %v946 = vshrl.u32 %v945, 7
    %v947 = vsub.s32 %v944, %v946
    %v948 = vrot.slane %v932, %v947
    %v950 = vunpack.c.l.s4 1966171168
    %v951 = vunpack.c.0.s8 %v950
    %v952 = vlaneseq
    %v953 = vshrl.u32 %v952, 7
    %v954 = vsub.s32 %v951, %v953
    %v955 = vrot.slane %v939, %v954
    %v957 = vunpack.c.l.s4 1966171168
    %v958 = vunpack.c.0.s8 %v957
    %v959 = vlaneseq
    %v960 = vshrl.u32 %v959, 7
    %v961 = vsub.s32 %v958, %v960
    %v962 = vrot.slane %v940, %v961
    %v964 = vunpack.c.l.s4 1966171168
    %v965 = vunpack.c.0.s8 %v964
    %v966 = vlaneseq
    %v967 = vshrl.u32 %v966, 7
    %v968 = vsub.s32 %v965, %v967
    %v969 = vrot.slane %v941, %v968
    %v970 = vcombine.high %v948, %v948
    %v971 = vcombine.high %v955, %v955
    %v972 = vcombine.high %v962, %v962
    %v973 = vcombine.high %v969, %v969
    %v974 = vcombine.high %v98, %v98
    %v976 = vunpack.c.l.s4 1966171168
    %v977 = vunpack.c.0.s8 %v976
    %v978 = vlaneseq
    %v979 = vshrl.u32 %v978, 7
    %v980 = vsub.s32 %v977, %v979
    %v981 = vrot.slane %v98, %v980
    %v983 = vunpack.c.l.s4 1966171168
    %v984 = vunpack.c.0.s8 %v983
    %v985 = vlaneseq
    %v986 = vshrl.u32 %v985, 7
    %v987 = vsub.s32 %v984, %v986
    %v988 = vrot.slane %v974, %v987
    %v989 = vcombine.high %v981, %v981
    %v990 = vcombine.high %v988, %v988
    %v992 = vunpack.c.l.s4 1966171168
    %v993 = vunpack.c.0.s8 %v992
    %v994 = vlaneseq
    %v995 = vshrl.u32 %v994, 7
    %v996 = vsub.s32 %v993, %v995
    %v997 = vrot.slane %v981, %v996
    %v999 = vunpack.c.l.s4 1966171168
    %v1000 = vunpack.c.0.s8 %v999
    %v1001 = vlaneseq
    %v1002 = vshrl.u32 %v1001, 7
    %v1003 = vsub.s32 %v1000, %v1002
    %v1004 = vrot.slane %v988, %v1003
    %v1006 = vunpack.c.l.s4 1966171168
    %v1007 = vunpack.c.0.s8 %v1006
    %v1008 = vlaneseq
    %v1009 = vshrl.u32 %v1008, 7
    %v1010 = vsub.s32 %v1007, %v1009
    %v1011 = vrot.slane %v989, %v1010
    %v1013 = vunpack.c.l.s4 1966171168
    %v1014 = vunpack.c.0.s8 %v1013
    %v1015 = vlaneseq
    %v1016 = vshrl.u32 %v1015, 7
    %v1017 = vsub.s32 %v1014, %v1016
    %v1018 = vrot.slane %v990, %v1017
    %v1019 = vcombine.high %v997, %v997
    %v1020 = vcombine.high %v1004, %v1004
    %v1021 = vcombine.high %v1011, %v1011
    %v1022 = vcombine.high %v1018, %v1018
    %v1023 = vcombine.high %v99, %v99
    %v1025 = vunpack.c.l.s4 1966171168
    %v1026 = vunpack.c.0.s8 %v1025
    %v1027 = vlaneseq
    %v1028 = vshrl.u32 %v1027, 7
    %v1029 = vsub.s32 %v1026, %v1028
    %v1030 = vrot.slane %v99, %v1029
    %v1032 = vunpack.c.l.s4 1966171168
    %v1033 = vunpack.c.0.s8 %v1032
    %v1034 = vlaneseq
    %v1035 = vshrl.u32 %v1034, 7
    %v1036 = vsub.s32 %v1033, %v1035
    %v1037 = vrot.slane %v1023, %v1036
    %v1038 = vcombine.high %v1030, %v1030
    %v1039 = vcombine.high %v1037, %v1037
    %v1041 = vunpack.c.l.s4 1966171168
    %v1042 = vunpack.c.0.s8 %v1041
    %v1043 = vlaneseq
    %v1044 = vshrl.u32 %v1043, 7
    %v1045 = vsub.s32 %v1042, %v1044
    %v1046 = vrot.slane %v1030, %v1045
    %v1048 = vunpack.c.l.s4 1966171168
    %v1049 = vunpack.c.0.s8 %v1048
    %v1050 = vlaneseq
    %v1051 = vshrl.u32 %v1050, 7
    %v1052 = vsub.s32 %v1049, %v1051
    %v1053 = vrot.slane %v1037, %v1052
    %v1055 = vunpack.c.l.s4 1966171168
    %v1056 = vunpack.c.0.s8 %v1055
    %v1057 = vlaneseq
    %v1058 = vshrl.u32 %v1057, 7
    %v1059 = vsub.s32 %v1056, %v1058
    %v1060 = vrot.slane %v1038, %v1059
    %v1062 = vunpack.c.l.s4 1966171168
    %v1063 = vunpack.c.0.s8 %v1062
    %v1064 = vlaneseq
    %v1065 = vshrl.u32 %v1064, 7
    %v1066 = vsub.s32 %v1063, %v1065
    %v1067 = vrot.slane %v1039, %v1066
    %v1068 = vcombine.high %v1046, %v1046
    %v1069 = vcombine.high %v1053, %v1053
    %v1070 = vcombine.high %v1060, %v1060
    %v1071 = vcombine.high %v1067, %v1067
    %v1072 = vcombine.high %v100, %v100
    %v1074 = vunpack.c.l.s4 1966171168
    %v1075 = vunpack.c.0.s8 %v1074
    %v1076 = vlaneseq
    %v1077 = vshrl.u32 %v1076, 7
    %v1078 = vsub.s32 %v1075, %v1077
    %v1079 = vrot.slane %v100, %v1078
    %v1081 = vunpack.c.l.s4 1966171168
    %v1082 = vunpack.c.0.s8 %v1081
    %v1083 = vlaneseq
    %v1084 = vshrl.u32 %v1083, 7
    %v1085 = vsub.s32 %v1082, %v1084
    %v1086 = vrot.slane %v1072, %v1085
    %v1087 = vcombine.high %v1079, %v1079
    %v1088 = vcombine.high %v1086, %v1086
    %v1090 = vunpack.c.l.s4 1966171168
    %v1091 = vunpack.c.0.s8 %v1090
    %v1092 = vlaneseq
    %v1093 = vshrl.u32 %v1092, 7
    %v1094 = vsub.s32 %v1091, %v1093
    %v1095 = vrot.slane %v1079, %v1094
    %v1097 = vunpack.c.l.s4 1966171168
    %v1098 = vunpack.c.0.s8 %v1097
    %v1099 = vlaneseq
    %v1100 = vshrl.u32 %v1099, 7
    %v1101 = vsub.s32 %v1098, %v1100
    %v1102 = vrot.slane %v1086, %v1101
    %v1104 = vunpack.c.l.s4 1966171168
    %v1105 = vunpack.c.0.s8 %v1104
    %v1106 = vlaneseq
    %v1107 = vshrl.u32 %v1106, 7
    %v1108 = vsub.s32 %v1105, %v1107
    %v1109 = vrot.slane %v1087, %v1108
    %v1111 = vunpack.c.l.s4 1966171168
    %v1112 = vunpack.c.0.s8 %v1111
    %v1113 = vlaneseq
    %v1114 = vshrl.u32 %v1113, 7
    %v1115 = vsub.s32 %v1112, %v1114
    %v1116 = vrot.slane %v1088, %v1115
    %v1117 = vcombine.high %v1095, %v1095
    %v1118 = vcombine.high %v1102, %v1102
    %v1119 = vcombine.high %v1109, %v1109
    %v1120 = vcombine.high %v1116, %v1116
    %v1121 = vcombine.high %v101, %v101
    %v1123 = vunpack.c.l.s4 1966171168
    %v1124 = vunpack.c.0.s8 %v1123
    %v1125 = vlaneseq
    %v1126 = vshrl.u32 %v1125, 7
    %v1127 = vsub.s32 %v1124, %v1126
    %v1128 = vrot.slane %v101, %v1127
    %v1130 = vunpack.c.l.s4 1966171168
    %v1131 = vunpack.c.0.s8 %v1130
    %v1132 = vlaneseq
    %v1133 = vshrl.u32 %v1132, 7
    %v1134 = vsub.s32 %v1131, %v1133
    %v1135 = vrot.slane %v1121, %v1134
    %v1136 = vcombine.high %v1128, %v1128
    %v1137 = vcombine.high %v1135, %v1135
    %v1139 = vunpack.c.l.s4 1966171168
    %v1140 = vunpack.c.0.s8 %v1139
    %v1141 = vlaneseq
    %v1142 = vshrl.u32 %v1141, 7
    %v1143 = vsub.s32 %v1140, %v1142
    %v1144 = vrot.slane %v1128, %v1143
    %v1146 = vunpack.c.l.s4 1966171168
    %v1147 = vunpack.c.0.s8 %v1146
    %v1148 = vlaneseq
    %v1149 = vshrl.u32 %v1148, 7
    %v1150 = vsub.s32 %v1147, %v1149
    %v1151 = vrot.slane %v1135, %v1150
    %v1153 = vunpack.c.l.s4 1966171168
    %v1154 = vunpack.c.0.s8 %v1153
    %v1155 = vlaneseq
    %v1156 = vshrl.u32 %v1155, 7
    %v1157 = vsub.s32 %v1154, %v1156
    %v1158 = vrot.slane %v1136, %v1157
    %v1160 = vunpack.c.l.s4 1966171168
    %v1161 = vunpack.c.0.s8 %v1160
    %v1162 = vlaneseq
    %v1163 = vshrl.u32 %v1162, 7
    %v1164 = vsub.s32 %v1161, %v1163
    %v1165 = vrot.slane %v1137, %v1164
    %v1166 = vcombine.high %v1144, %v1144
    %v1167 = vcombine.high %v1151, %v1151
    %v1168 = vcombine.high %v1158, %v1158
    %v1169 = vcombine.high %v1165, %v1165
    %v1986 = vunpack.c.l.b16 %v102
    %v1987 = vunpack.c.h.b16 %v102
    %v1988 = vunpack.c.l.b16 %v103
    %v1989 = vunpack.c.h.b16 %v103
    %v1990 = vunpack.c.l.b16 %v104
    %v1991 = vunpack.c.h.b16 %v104
    %v1992 = vunpack.c.l.b16 %v105
    %v1993 = vunpack.c.h.b16 %v105
    %v1994 = vunpack.c.l.b16 %v106
    %v1995 = vunpack.c.h.b16 %v106
    %v1996 = vunpack.c.l.b16 %v107
    %v1997 = vunpack.c.h.b16 %v107
    %v1998 = vunpack.c.l.b16 %v108
    %v1999 = vunpack.c.h.b16 %v108
    %v2000 = vunpack.c.l.b16 %v109
    %v2001 = vunpack.c.h.b16 %v109
    %v2002 = vunpack.c.l.b16 %v110
    %v2003 = vunpack.c.h.b16 %v110
    %v2004 = vunpack.c.l.b16 %v111
    %v2005 = vunpack.c.h.b16 %v111
    %v2006 = vunpack.c.l.b16 %v112
    %v2007 = vunpack.c.h.b16 %v112
    %v2008 = vunpack.c.l.b16 %v113
    %v2009 = vunpack.c.h.b16 %v113
    %v2010 = vunpack.c.l.b16 %v114
    %v2011 = vunpack.c.h.b16 %v114
    %v2012 = vunpack.c.l.b16 %v115
    %v2013 = vunpack.c.h.b16 %v115
    %v2014 = vunpack.c.l.b16 %v116
    %v2015 = vunpack.c.h.b16 %v116
    %v2016 = vunpack.c.l.b16 %v117
    %v2017 = vunpack.c.h.b16 %v117
    %v2018 = vunpack.c.l.b16 %v118
    %v2019 = vunpack.c.h.b16 %v118
    %v2020 = vunpack.c.l.b16 %v119
    %v2021 = vunpack.c.h.b16 %v119
    %v2022 = vunpack.c.l.b16 %v120
    %v2023 = vunpack.c.h.b16 %v120
    %v2024 = vunpack.c.l.b16 %v121
    %v2025 = vunpack.c.h.b16 %v121
    %v2026 = vunpack.c.l.b16 %v122
    %v2027 = vunpack.c.h.b16 %v122
    %v2028 = vunpack.c.l.b16 %v123
    %v2029 = vunpack.c.h.b16 %v123
    %v2030 = vunpack.c.l.b16 %v124
    %v2031 = vunpack.c.h.b16 %v124
    %v2032 = vunpack.c.l.b16 %v125
    %v2033 = vunpack.c.h.b16 %v125
    %v2034 = vunpack.c.l.b16 %v126
    %v2035 = vunpack.c.h.b16 %v126
    %v2036 = vunpack.c.l.b16 %v127
    %v2037 = vunpack.c.h.b16 %v127
    %v2038 = vunpack.c.l.b16 %v128
    %v2039 = vunpack.c.h.b16 %v128
    %v2040 = vunpack.c.l.b16 %v129
    %v2041 = vunpack.c.h.b16 %v129
    %v2042 = vunpack.c.l.b16 %v130
    %v2043 = vunpack.c.h.b16 %v130
    %v2044 = vunpack.c.l.b16 %v131
    %v2045 = vunpack.c.h.b16 %v131
    %v2046 = vunpack.c.l.b16 %v132
    %v2047 = vunpack.c.h.b16 %v132
    %v2048 = vunpack.c.l.b16 %v133
    %v2049 = vunpack.c.h.b16 %v133
    %v2050 = vunpack.c.l.b16 %v134
    %v2051 = vunpack.c.h.b16 %v134
    %v2052 = vunpack.c.l.b16 %v135
    %v2053 = vunpack.c.h.b16 %v135
    %v2054 = vunpack.c.l.b16 %v136
    %v2055 = vunpack.c.h.b16 %v136
    %v2056 = vunpack.c.l.b16 %v137
    %v2057 = vunpack.c.h.b16 %v137
    %v2058 = vunpack.c.l.b16 %v138
    %v2059 = vunpack.c.h.b16 %v138
    %v2060 = vunpack.c.l.b16 %v139
    %v2061 = vunpack.c.h.b16 %v139
    %v2062 = vunpack.c.l.b16 %v140
    %v2063 = vunpack.c.h.b16 %v140
    %v2064 = vunpack.c.l.b16 %v141
    %v2065 = vunpack.c.h.b16 %v141
    %v2066 = vunpack.c.l.b16 %v142
    %v2067 = vunpack.c.h.b16 %v142
    %v2068 = vunpack.c.l.b16 %v143
    %v2069 = vunpack.c.h.b16 %v143
    %v2070 = vunpack.c.l.b16 %v144
    %v2071 = vunpack.c.h.b16 %v144
    %v2072 = vunpack.c.l.b16 %v145
    %v2073 = vunpack.c.h.b16 %v145
    %v2074 = vunpack.c.l.b16 %v146
    %v2075 = vunpack.c.h.b16 %v146
    %v2076 = vunpack.c.l.b16 %v147
    %v2077 = vunpack.c.h.b16 %v147
    %v2078 = vunpack.c.l.b16 %v148
    %v2079 = vunpack.c.h.b16 %v148
    %v2080 = vunpack.c.l.b16 %v149
    %v2081 = vunpack.c.h.b16 %v149
    %v2082 = vunpack.c.l.b16 %v150
    %v2083 = vunpack.c.h.b16 %v150
    %v2084 = vunpack.c.l.b16 %v151
    %v2085 = vunpack.c.h.b16 %v151
    %v2086 = vunpack.c.l.b16 %v152
    %v2087 = vunpack.c.h.b16 %v152
    %v2088 = vunpack.c.l.b16 %v153
    %v2089 = vunpack.c.h.b16 %v153
    %v2090 = vunpack.c.l.b16 %v154
    %v2091 = vunpack.c.h.b16 %v154
    %v2092 = vunpack.c.l.b16 %v155
    %v2093 = vunpack.c.h.b16 %v155
    %v2094 = vunpack.c.l.b16 %v156
    %v2095 = vunpack.c.h.b16 %v156
    %v2096 = vunpack.c.l.b16 %v157
    %v2097 = vunpack.c.h.b16 %v157
    %v2098 = vunpack.c.l.b16 %v158
    %v2099 = vunpack.c.h.b16 %v158
    %v2100 = vunpack.c.l.b16 %v159
    %v2101 = vunpack.c.h.b16 %v159
    %v2102 = vunpack.c.l.b16 %v160
    %v2103 = vunpack.c.h.b16 %v160
    %v2104 = vunpack.c.l.b16 %v161
    %v2105 = vunpack.c.h.b16 %v161
    %v2106 = vunpack.c.l.b16 %v162
    %v2107 = vunpack.c.h.b16 %v162
    %v2108 = vunpack.c.l.b16 %v163
    %v2109 = vunpack.c.h.b16 %v163
    %v2110 = vunpack.c.l.b16 %v164
    %v2111 = vunpack.c.h.b16 %v164
    %v2112 = vunpack.c.l.b16 %v165
    %v2113 = vunpack.c.h.b16 %v165
    %v2114 = vunpack.c.l.b16 %v166
    %v2115 = vunpack.c.h.b16 %v166
    %v2116 = vunpack.c.l.b16 %v167
    %v2117 = vunpack.c.h.b16 %v167
    %v2118 = vunpack.c.l.b16 %v168
    %v2119 = vunpack.c.h.b16 %v168
    %v2120 = vunpack.c.l.b16 %v169
    %v2121 = vunpack.c.h.b16 %v169
    %v2122 = vunpack.c.l.b16 %v170
    %v2123 = vunpack.c.h.b16 %v170
    %v2124 = vunpack.c.l.b16 %v171
    %v2125 = vunpack.c.h.b16 %v171
    %v2126 = vunpack.c.l.b16 %v172
    %v2127 = vunpack.c.h.b16 %v172
    %v2128 = vunpack.c.l.b16 %v173
    %v2129 = vunpack.c.h.b16 %v173
    %v2130 = vunpack.c.l.b16 %v174
    %v2131 = vunpack.c.h.b16 %v174
    %v2132 = vunpack.c.l.b16 %v175
    %v2133 = vunpack.c.h.b16 %v175
    %v2134 = vunpack.c.l.b16 %v176
    %v2135 = vunpack.c.h.b16 %v176
    %v2136 = vunpack.c.l.b16 %v177
    %v2137 = vunpack.c.h.b16 %v177
    %v2138 = vunpack.c.l.b16 %v178
    %v2139 = vunpack.c.h.b16 %v178
    %v2140 = vunpack.c.l.b16 %v179
    %v2141 = vunpack.c.h.b16 %v179
    %v2142 = vunpack.c.l.b16 %v180
    %v2143 = vunpack.c.h.b16 %v180
    %v2144 = vunpack.c.l.b16 %v181
    %v2145 = vunpack.c.h.b16 %v181
    %v2146 = vunpack.c.l.b16 %v182
    %v2147 = vunpack.c.h.b16 %v182
    %v2148 = vunpack.c.l.b16 %v183
    %v2149 = vunpack.c.h.b16 %v183
    %v2150 = vunpack.c.l.b16 %v184
    %v2151 = vunpack.c.h.b16 %v184
    %v2152 = vunpack.c.l.b16 %v185
    %v2153 = vunpack.c.h.b16 %v185
    %v2154 = vunpack.c.l.b16 %v186
    %v2155 = vunpack.c.h.b16 %v186
    %v2156 = vunpack.c.l.b16 %v187
    %v2157 = vunpack.c.h.b16 %v187
    %v2158 = vunpack.c.l.b16 %v188
    %v2159 = vunpack.c.h.b16 %v188
    %v2160 = vunpack.c.l.b16 %v189
    %v2161 = vunpack.c.h.b16 %v189
    %v2162 = vunpack.c.l.b16 %v190
    %v2163 = vunpack.c.h.b16 %v190
    %v2164 = vunpack.c.l.b16 %v191
    %v2165 = vunpack.c.h.b16 %v191
    %v2166 = vunpack.c.l.b16 %v192
    %v2167 = vunpack.c.h.b16 %v192
    %v2168 = vunpack.c.l.b16 %v193
    %v2169 = vunpack.c.h.b16 %v193
    %v2170 = vunpack.c.l.b16 %v194
    %v2171 = vunpack.c.h.b16 %v194
    %v2172 = vunpack.c.l.b16 %v195
    %v2173 = vunpack.c.h.b16 %v195
    %v2174 = vunpack.c.l.b16 %v196
    %v2175 = vunpack.c.h.b16 %v196
    %v2176 = vunpack.c.l.b16 %v197
    %v2177 = vunpack.c.h.b16 %v197
    %v2178 = vunpack.c.l.b16 %v198
    %v2179 = vunpack.c.h.b16 %v198
    %v2180 = vunpack.c.l.b16 %v199
    %v2181 = vunpack.c.h.b16 %v199
    %v2182 = vunpack.c.l.b16 %v200
    %v2183 = vunpack.c.h.b16 %v200
    %v2184 = vunpack.c.l.b16 %v201
    %v2185 = vunpack.c.h.b16 %v201
    %v2186 = vunpack.c.l.b16 %v202
    %v2187 = vunpack.c.h.b16 %v202
    %v2188 = vunpack.c.l.b16 %v203
    %v2189 = vunpack.c.h.b16 %v203
    %v2190 = vunpack.c.l.b16 %v204
    %v2191 = vunpack.c.h.b16 %v204
    %v2192 = vunpack.c.l.b16 %v205
    %v2193 = vunpack.c.h.b16 %v205
    %v2194 = vunpack.c.l.b16 %v206
    %v2195 = vunpack.c.h.b16 %v206
    %v2196 = vunpack.c.l.b16 %v207
    %v2197 = vunpack.c.h.b16 %v207
    %v2198 = vunpack.c.l.b16 %v208
    %v2199 = vunpack.c.h.b16 %v208
    %v2200 = vunpack.c.l.b16 %v209
    %v2201 = vunpack.c.h.b16 %v209
    %v2202 = vunpack.c.l.b16 %v210
    %v2203 = vunpack.c.h.b16 %v210
    %v2204 = vunpack.c.l.b16 %v211
    %v2205 = vunpack.c.h.b16 %v211
    %v2206 = vunpack.c.l.b16 %v212
    %v2207 = vunpack.c.h.b16 %v212
    %v2208 = vunpack.c.l.b16 %v213
    %v2209 = vunpack.c.h.b16 %v213
    %v2210 = vunpack.c.l.b16 %v214
    %v2211 = vunpack.c.h.b16 %v214
    %v2212 = vunpack.c.l.b16 %v215
    %v2213 = vunpack.c.h.b16 %v215
    %v2214 = vunpack.c.l.b16 %v216
    %v2215 = vunpack.c.h.b16 %v216
    %v2216 = vunpack.c.l.b16 %v217
    %v2217 = vunpack.c.h.b16 %v217
    %v2218 = vunpack.c.l.b16 %v218
    %v2219 = vunpack.c.h.b16 %v218
    %v2220 = vunpack.c.l.b16 %v219
    %v2221 = vunpack.c.h.b16 %v219
    %v2222 = vunpack.c.l.b16 %v220
    %v2223 = vunpack.c.h.b16 %v220
    %v2224 = vunpack.c.l.b16 %v221
    %v2225 = vunpack.c.h.b16 %v221
    %v2226 = vunpack.c.l.b16 %v222
    %v2227 = vunpack.c.h.b16 %v222
    %v2228 = vunpack.c.l.b16 %v223
    %v2229 = vunpack.c.h.b16 %v223
    %v2230 = vunpack.c.l.b16 %v224
    %v2231 = vunpack.c.h.b16 %v224
    %v2232 = vunpack.c.l.b16 %v225
    %v2233 = vunpack.c.h.b16 %v225
    %v2234 = vunpack.c.l.b16 %v226
    %v2235 = vunpack.c.h.b16 %v226
    %v2236 = vunpack.c.l.b16 %v227
    %v2237 = vunpack.c.h.b16 %v227
    %v2238 = vunpack.c.l.b16 %v228
    %v2239 = vunpack.c.h.b16 %v228
    %v2240 = vunpack.c.l.b16 %v229
    %v2241 = vunpack.c.h.b16 %v229
    %v2242 = vunpack.c.l.b16 %v230
    %v2243 = vunpack.c.h.b16 %v230
    %v2244 = vunpack.c.l.b16 %v231
    %v2245 = vunpack.c.h.b16 %v231
    %v2246 = vunpack.c.l.b16 %v232
    %v2247 = vunpack.c.h.b16 %v232
    %v2248 = vunpack.c.l.b16 %v233
    %v2249 = vunpack.c.h.b16 %v233
    %v2250 = vunpack.c.l.b16 %v234
    %v2251 = vunpack.c.h.b16 %v234
    %v2252 = vunpack.c.l.b16 %v235
    %v2253 = vunpack.c.h.b16 %v235
    %v2254 = vunpack.c.l.b16 %v236
    %v2255 = vunpack.c.h.b16 %v236
    %v2256 = vunpack.c.l.b16 %v237
    %v2257 = vunpack.c.h.b16 %v237
    %v2258 = vunpack.c.l.b16 %v238
    %v2259 = vunpack.c.h.b16 %v238
    %v2260 = vunpack.c.l.b16 %v239
    %v2261 = vunpack.c.h.b16 %v239
    %v2262 = vunpack.c.l.b16 %v240
    %v2263 = vunpack.c.h.b16 %v240
    %v2264 = vunpack.c.l.b16 %v241
    %v2265 = vunpack.c.h.b16 %v241
    %v2266 = vunpack.c.l.b16 %v242
    %v2267 = vunpack.c.h.b16 %v242
    %v2268 = vunpack.c.l.b16 %v243
    %v2269 = vunpack.c.h.b16 %v243
    %v2270 = vunpack.c.l.b16 %v244
    %v2271 = vunpack.c.h.b16 %v244
    %v2272 = vunpack.c.l.b16 %v245
    %v2273 = vunpack.c.h.b16 %v245
    %v2274 = vunpack.c.l.b16 %v246
    %v2275 = vunpack.c.h.b16 %v246
    %v2276 = vunpack.c.l.b16 %v247
    %v2277 = vunpack.c.h.b16 %v247
    %v2278 = vunpack.c.l.b16 %v248
    %v2279 = vunpack.c.h.b16 %v248
    %v2280 = vunpack.c.l.b16 %v249
    %v2281 = vunpack.c.h.b16 %v249
    %v2282 = vunpack.c.l.b16 %v250
    %v2283 = vunpack.c.h.b16 %v250
    %v2284 = vunpack.c.l.b16 %v251
    %v2285 = vunpack.c.h.b16 %v251
    %v2286 = vunpack.c.l.b16 %v252
    %v2287 = vunpack.c.h.b16 %v252
    %v2288 = vunpack.c.l.b16 %v253
    %v2289 = vunpack.c.h.b16 %v253
    %v2290 = vunpack.c.l.b16 %v254
    %v2291 = vunpack.c.h.b16 %v254
    %v2292 = vunpack.c.l.b16 %v255
    %v2293 = vunpack.c.h.b16 %v255
    %v2294 = vunpack.c.l.b16 %v256
    %v2295 = vunpack.c.h.b16 %v256
    %v2296 = vunpack.c.l.b16 %v257
    %v2297 = vunpack.c.h.b16 %v257
    %v2298 = vunpack.c.l.b16 %v258
    %v2299 = vunpack.c.h.b16 %v258
    %v2300 = vunpack.c.l.b16 %v259
    %v2301 = vunpack.c.h.b16 %v259
    %v2302 = vunpack.c.l.b16 %v260
    %v2303 = vunpack.c.h.b16 %v260
    %v2304 = vunpack.c.l.b16 %v261
    %v2305 = vunpack.c.h.b16 %v261
    %v2306 = vunpack.c.l.b16 %v262
    %v2307 = vunpack.c.h.b16 %v262
    %v2308 = vunpack.c.l.b16 %v263
    %v2309 = vunpack.c.h.b16 %v263
    %v2310 = vunpack.c.l.b16 %v264
    %v2311 = vunpack.c.h.b16 %v264
    %v2312 = vunpack.c.l.b16 %v265
    %v2313 = vunpack.c.h.b16 %v265
    %v2314 = vunpack.c.l.b16 %v266
    %v2315 = vunpack.c.h.b16 %v266
    %v2316 = vunpack.c.l.b16 %v267
    %v2317 = vunpack.c.h.b16 %v267
    %v2318 = vunpack.c.l.b16 %v268
    %v2319 = vunpack.c.h.b16 %v268
    %v2320 = vunpack.c.l.b16 %v269
    %v2321 = vunpack.c.h.b16 %v269
    %v2322 = vunpack.c.l.b16 %v270
    %v2323 = vunpack.c.h.b16 %v270
    %v2324 = vunpack.c.l.b16 %v271
    %v2325 = vunpack.c.h.b16 %v271
    %v2326 = vunpack.c.l.b16 %v272
    %v2327 = vunpack.c.h.b16 %v272
    %v2328 = vunpack.c.l.b16 %v273
    %v2329 = vunpack.c.h.b16 %v273
    %v2330 = vunpack.c.l.b16 %v274
    %v2331 = vunpack.c.h.b16 %v274
    %v2332 = vunpack.c.l.b16 %v275
    %v2333 = vunpack.c.h.b16 %v275
    %v2334 = vunpack.c.l.b16 %v276
    %v2335 = vunpack.c.h.b16 %v276
    %v2336 = vunpack.c.l.b16 %v277
    %v2337 = vunpack.c.h.b16 %v277
    %v2338 = vunpack.c.l.b16 %v278
    %v2339 = vunpack.c.h.b16 %v278
    %v2340 = vunpack.c.l.b16 %v279
    %v2341 = vunpack.c.h.b16 %v279
    %v2342 = vunpack.c.l.b16 %v280
    %v2343 = vunpack.c.h.b16 %v280
    %v2344 = vunpack.c.l.b16 %v281
    %v2345 = vunpack.c.h.b16 %v281
    %v2346 = vunpack.c.l.b16 %v282
    %v2347 = vunpack.c.h.b16 %v282
    %v2348 = vunpack.c.l.b16 %v283
    %v2349 = vunpack.c.h.b16 %v283
    %v2350 = vunpack.c.l.b16 %v284
    %v2351 = vunpack.c.h.b16 %v284
    %v2352 = vunpack.c.l.b16 %v285
    %v2353 = vunpack.c.h.b16 %v285
    %v2354 = vunpack.c.l.b16 %v286
    %v2355 = vunpack.c.h.b16 %v286
    %v2356 = vunpack.c.l.b16 %v287
    %v2357 = vunpack.c.h.b16 %v287
    %v2358 = vunpack.c.l.b16 %v288
    %v2359 = vunpack.c.h.b16 %v288
    %v2360 = vunpack.c.l.b16 %v289
    %v2361 = vunpack.c.h.b16 %v289
    %v2362 = vunpack.c.l.b16 %v290
    %v2363 = vunpack.c.h.b16 %v290
    %v2364 = vunpack.c.l.b16 %v291
    %v2365 = vunpack.c.h.b16 %v291
    %v2366 = vunpack.c.l.b16 %v292
    %v2367 = vunpack.c.h.b16 %v292
    %v2368 = vunpack.c.l.b16 %v293
    %v2369 = vunpack.c.h.b16 %v293
    %v2370 = vunpack.c.l.b16 %v294
    %v2371 = vunpack.c.h.b16 %v294
    %v2372 = vunpack.c.l.b16 %v295
    %v2373 = vunpack.c.h.b16 %v295
    %v2374 = vunpack.c.l.b16 %v296
    %v2375 = vunpack.c.h.b16 %v296
    %v2376 = vunpack.c.l.b16 %v297
    %v2377 = vunpack.c.h.b16 %v297
    %v2378 = vunpack.c.l.b16 %v298
    %v2379 = vunpack.c.h.b16 %v298
    %v2380 = vunpack.c.l.b16 %v299
    %v2381 = vunpack.c.h.b16 %v299
    %v2382 = vunpack.c.l.b16 %v300
    %v2383 = vunpack.c.h.b16 %v300
    %v2384 = vunpack.c.l.b16 %v301
    %v2385 = vunpack.c.h.b16 %v301
    %v2386 = vunpack.c.l.b16 %v302
    %v2387 = vunpack.c.h.b16 %v302
    %v2388 = vunpack.c.l.b16 %v303
    %v2389 = vunpack.c.h.b16 %v303
    %v2390 = vunpack.c.l.b16 %v304
    %v2391 = vunpack.c.h.b16 %v304
    %v2392 = vunpack.c.l.b16 %v305
    %v2393 = vunpack.c.h.b16 %v305
    %v2394 = vunpack.c.l.b16 %v306
    %v2395 = vunpack.c.h.b16 %v306
    %v2396 = vunpack.c.l.b16 %v307
    %v2397 = vunpack.c.h.b16 %v307
    %v2398 = vunpack.c.l.b16 %v308
    %v2399 = vunpack.c.h.b16 %v308
    %v2400 = vunpack.c.l.b16 %v309
    %v2401 = vunpack.c.h.b16 %v309
    %v2402 = vunpack.c.l.b16 %v310
    %v2403 = vunpack.c.h.b16 %v310
    %v2404 = vunpack.c.l.b16 %v311
    %v2405 = vunpack.c.h.b16 %v311
    %v2406 = vunpack.c.l.b16 %v312
    %v2407 = vunpack.c.h.b16 %v312
    %v2408 = vunpack.c.l.b16 %v313
    %v2409 = vunpack.c.h.b16 %v313
    %v2410 = vunpack.c.l.b16 %v314
    %v2411 = vunpack.c.h.b16 %v314
    %v2412 = vunpack.c.l.b16 %v315
    %v2413 = vunpack.c.h.b16 %v315
    %v2414 = vunpack.c.l.b16 %v316
    %v2415 = vunpack.c.h.b16 %v316
    %v2416 = vunpack.c.l.b16 %v317
    %v2417 = vunpack.c.h.b16 %v317
    %v2418 = vunpack.c.l.b16 %v318
    %v2419 = vunpack.c.h.b16 %v318
    %v2420 = vunpack.c.l.b16 %v319
    %v2421 = vunpack.c.h.b16 %v319
    %v2422 = vunpack.c.l.b16 %v320
    %v2423 = vunpack.c.h.b16 %v320
    %v2424 = vunpack.c.l.b16 %v321
    %v2425 = vunpack.c.h.b16 %v321
    %v2426 = vunpack.c.l.b16 %v322
    %v2427 = vunpack.c.h.b16 %v322
    %v2428 = vunpack.c.l.b16 %v323
    %v2429 = vunpack.c.h.b16 %v323
    %v2430 = vunpack.c.l.b16 %v324
    %v2431 = vunpack.c.h.b16 %v324
    %v2432 = vunpack.c.l.b16 %v325
    %v2433 = vunpack.c.h.b16 %v325
    %v2434 = vunpack.c.l.b16 %v326
    %v2435 = vunpack.c.h.b16 %v326
    %v2436 = vunpack.c.l.b16 %v327
    %v2437 = vunpack.c.h.b16 %v327
    %v2438 = vunpack.c.l.b16 %v328
    %v2439 = vunpack.c.h.b16 %v328
    %v2440 = vunpack.c.l.b16 %v329
    %v2441 = vunpack.c.h.b16 %v329
    %v2442 = vunpack.c.l.b16 %v330
    %v2443 = vunpack.c.h.b16 %v330
    %v2444 = vunpack.c.l.b16 %v331
    %v2445 = vunpack.c.h.b16 %v331
    %v2446 = vunpack.c.l.b16 %v332
    %v2447 = vunpack.c.h.b16 %v332
    %v2448 = vunpack.c.l.b16 %v333
    %v2449 = vunpack.c.h.b16 %v333
    %v2450 = vunpack.c.l.b16 %v334
    %v2451 = vunpack.c.h.b16 %v334
    %v2452 = vunpack.c.l.b16 %v335
    %v2453 = vunpack.c.h.b16 %v335
    %v2454 = vunpack.c.l.b16 %v336
    %v2455 = vunpack.c.h.b16 %v336
    %v2456 = vunpack.c.l.b16 %v337
    %v2457 = vunpack.c.h.b16 %v337
    %v2458 = vunpack.c.l.b16 %v338
    %v2459 = vunpack.c.h.b16 %v338
    %v2460 = vunpack.c.l.b16 %v339
    %v2461 = vunpack.c.h.b16 %v339
    %v2462 = vunpack.c.l.b16 %v340
    %v2463 = vunpack.c.h.b16 %v340
    %v2464 = vunpack.c.l.b16 %v341
    %v2465 = vunpack.c.h.b16 %v341
    %v2466 = vunpack.c.l.b16 %v342
    %v2467 = vunpack.c.h.b16 %v342
    %v2468 = vunpack.c.l.b16 %v343
    %v2469 = vunpack.c.h.b16 %v343
    %v2470 = vunpack.c.l.b16 %v344
    %v2471 = vunpack.c.h.b16 %v344
    %v2472 = vunpack.c.l.b16 %v345
    %v2473 = vunpack.c.h.b16 %v345
    %v2474 = vunpack.c.l.b16 %v346
    %v2475 = vunpack.c.h.b16 %v346
    %v2476 = vunpack.c.l.b16 %v347
    %v2477 = vunpack.c.h.b16 %v347
    %v2478 = vunpack.c.l.b16 %v348
    %v2479 = vunpack.c.h.b16 %v348
    %v2480 = vunpack.c.l.b16 %v349
    %v2481 = vunpack.c.h.b16 %v349
    %v2482 = vunpack.c.l.b16 %v350
    %v2483 = vunpack.c.h.b16 %v350
    %v2484 = vunpack.c.l.b16 %v351
    %v2485 = vunpack.c.h.b16 %v351
    %v2486 = vunpack.c.l.b16 %v352
    %v2487 = vunpack.c.h.b16 %v352
    %v2488 = vunpack.c.l.b16 %v353
    %v2489 = vunpack.c.h.b16 %v353
    %v2490 = vunpack.c.l.b16 %v354
    %v2491 = vunpack.c.h.b16 %v354
    %v2492 = vunpack.c.l.b16 %v355
    %v2493 = vunpack.c.h.b16 %v355
    %v2494 = vunpack.c.l.b16 %v356
    %v2495 = vunpack.c.h.b16 %v356
    %v2496 = vunpack.c.l.b16 %v357
    %v2497 = vunpack.c.h.b16 %v357
    %v2498 = vunpack.c.l.b16 %v358
    %v2499 = vunpack.c.h.b16 %v358
    %v2500 = vunpack.c.l.b16 %v359
    %v2501 = vunpack.c.h.b16 %v359
    %v2502 = vunpack.c.l.b16 %v360
    %v2503 = vunpack.c.h.b16 %v360
    %v2504 = vunpack.c.l.b16 %v361
    %v2505 = vunpack.c.h.b16 %v361
    %v2506 = vunpack.c.l.b16 %v362
    %v2507 = vunpack.c.h.b16 %v362
    %v2508 = vunpack.c.l.b16 %v363
    %v2509 = vunpack.c.h.b16 %v363
    %v2510 = vunpack.c.l.b16 %v364
    %v2511 = vunpack.c.h.b16 %v364
    %v2512 = vunpack.c.l.b16 %v365
    %v2513 = vunpack.c.h.b16 %v365
    %v2514 = vunpack.c.l.b16 %v366
    %v2515 = vunpack.c.h.b16 %v366
    %v2516 = vunpack.c.l.b16 %v367
    %v2517 = vunpack.c.h.b16 %v367
    %v2518 = vunpack.c.l.b16 %v368
    %v2519 = vunpack.c.h.b16 %v368
    %v2520 = vunpack.c.l.b16 %v369
    %v2521 = vunpack.c.h.b16 %v369
    %v2522 = vunpack.c.l.b16 %v370
    %v2523 = vunpack.c.h.b16 %v370
    %v2524 = vunpack.c.l.b16 %v371
    %v2525 = vunpack.c.h.b16 %v371
    %v2526 = vunpack.c.l.b16 %v372
    %v2527 = vunpack.c.h.b16 %v372
    %v2528 = vunpack.c.l.b16 %v373
    %v2529 = vunpack.c.h.b16 %v373
    %v2530 = vunpack.c.l.b16 %v374
    %v2531 = vunpack.c.h.b16 %v374
    %v2532 = vunpack.c.l.b16 %v375
    %v2533 = vunpack.c.h.b16 %v375
    %v2534 = vunpack.c.l.b16 %v376
    %v2535 = vunpack.c.h.b16 %v376
    %v2536 = vunpack.c.l.b16 %v377
    %v2537 = vunpack.c.h.b16 %v377
    %v2538 = vunpack.c.l.b16 %v378
    %v2539 = vunpack.c.h.b16 %v378
    %v2540 = vunpack.c.l.b16 %v379
    %v2541 = vunpack.c.h.b16 %v379
    %v2542 = vunpack.c.l.b16 %v380
    %v2543 = vunpack.c.h.b16 %v380
    %v2544 = vunpack.c.l.b16 %v381
    %v2545 = vunpack.c.h.b16 %v381
    %v2546 = vunpack.c.l.b16 %v382
    %v2547 = vunpack.c.h.b16 %v382
    %v2548 = vunpack.c.l.b16 %v383
    %v2549 = vunpack.c.h.b16 %v383
    %v2550 = vunpack.c.l.b16 %v384
    %v2551 = vunpack.c.h.b16 %v384
    %v2552 = vunpack.c.l.b16 %v385
    %v2553 = vunpack.c.h.b16 %v385
    %v2554 = vunpack.c.l.b16 %v386
    %v2555 = vunpack.c.h.b16 %v386
    %v2556 = vunpack.c.l.b16 %v387
    %v2557 = vunpack.c.h.b16 %v387
    %v2558 = vunpack.c.l.b16 %v388
    %v2559 = vunpack.c.h.b16 %v388
    %v2560 = vunpack.c.l.b16 %v389
    %v2561 = vunpack.c.h.b16 %v389
    %v2562 = vunpack.c.l.b16 %v390
    %v2563 = vunpack.c.h.b16 %v390
    %v2564 = vunpack.c.l.b16 %v391
    %v2565 = vunpack.c.h.b16 %v391
    %v2566 = vunpack.c.l.b16 %v392
    %v2567 = vunpack.c.h.b16 %v392
    %v2568 = vunpack.c.l.b16 %v393
    %v2569 = vunpack.c.h.b16 %v393
    %v2570 = vunpack.c.l.b16 %v394
    %v2571 = vunpack.c.h.b16 %v394
    %v2572 = vunpack.c.l.b16 %v395
    %v2573 = vunpack.c.h.b16 %v395
    %v2574 = vunpack.c.l.b16 %v396
    %v2575 = vunpack.c.h.b16 %v396
    %v2576 = vunpack.c.l.b16 %v397
    %v2577 = vunpack.c.h.b16 %v397
    %v2578 = vunpack.c.l.b16 %v398
    %v2579 = vunpack.c.h.b16 %v398
    %v2580 = vunpack.c.l.b16 %v399
    %v2581 = vunpack.c.h.b16 %v399
    %v2582 = vunpack.c.l.b16 %v400
    %v2583 = vunpack.c.h.b16 %v400
    %v2584 = vunpack.c.l.b16 %v401
    %v2585 = vunpack.c.h.b16 %v401
    %v2586 = vunpack.c.l.b16 %v402
    %v2587 = vunpack.c.h.b16 %v402
    %v2588 = vunpack.c.l.b16 %v403
    %v2589 = vunpack.c.h.b16 %v403
    %v2590 = vunpack.c.l.b16 %v404
    %v2591 = vunpack.c.h.b16 %v404
    %v2592 = vunpack.c.l.b16 %v405
    %v2593 = vunpack.c.h.b16 %v405
    %v2594 = vunpack.c.l.b16 %v406
    %v2595 = vunpack.c.h.b16 %v406
    %v2596 = vunpack.c.l.b16 %v407
    %v2597 = vunpack.c.h.b16 %v407
    %v2598 = vunpack.c.l.b16 %v408
    %v2599 = vunpack.c.h.b16 %v408
    %v2600 = vunpack.c.l.b16 %v409
    %v2601 = vunpack.c.h.b16 %v409
    %v2602 = vunpack.c.l.b16 %v410
    %v2603 = vunpack.c.h.b16 %v410
    %v2604 = vunpack.c.l.b16 %v411
    %v2605 = vunpack.c.h.b16 %v411
    %v2606 = vunpack.c.l.b16 %v412
    %v2607 = vunpack.c.h.b16 %v412
    %v2608 = vunpack.c.l.b16 %v413
    %v2609 = vunpack.c.h.b16 %v413
    %v2610 = vunpack.c.l.b16 %v414
    %v2611 = vunpack.c.h.b16 %v414
    %v2612 = vunpack.c.l.b16 %v415
    %v2613 = vunpack.c.h.b16 %v415
    %v2614 = vunpack.c.l.b16 %v416
    %v2615 = vunpack.c.h.b16 %v416
    %v2616 = vunpack.c.l.b16 %v417
    %v2617 = vunpack.c.h.b16 %v417
    %v2618 = vunpack.c.l.b16 %v418
    %v2619 = vunpack.c.h.b16 %v418
    %v2620 = vunpack.c.l.b16 %v419
    %v2621 = vunpack.c.h.b16 %v419
    %v2622 = vunpack.c.l.b16 %v420
    %v2623 = vunpack.c.h.b16 %v420
    %v2624 = vunpack.c.l.b16 %v421
    %v2625 = vunpack.c.h.b16 %v421
    %v2626 = vunpack.c.l.b16 %v422
    %v2627 = vunpack.c.h.b16 %v422
    %v2628 = vunpack.c.l.b16 %v423
    %v2629 = vunpack.c.h.b16 %v423
    %v2630 = vunpack.c.l.b16 %v424
    %v2631 = vunpack.c.h.b16 %v424
    %v2632 = vunpack.c.l.b16 %v425
    %v2633 = vunpack.c.h.b16 %v425
    %v2634 = vunpack.c.l.b16 %v426
    %v2635 = vunpack.c.h.b16 %v426
    %v2636 = vunpack.c.l.b16 %v427
    %v2637 = vunpack.c.h.b16 %v427
    %v2638 = vunpack.c.l.b16 %v428
    %v2639 = vunpack.c.h.b16 %v428
    %v2640 = vunpack.c.l.b16 %v429
    %v2641 = vunpack.c.h.b16 %v429
    %v2642 = vunpack.c.l.b16 %v430
    %v2643 = vunpack.c.h.b16 %v430
    %v2644 = vunpack.c.l.b16 %v431
    %v2645 = vunpack.c.h.b16 %v431
    %v2646 = vunpack.c.l.b16 %v432
    %v2647 = vunpack.c.h.b16 %v432
    %v2648 = vunpack.c.l.b16 %v433
    %v2649 = vunpack.c.h.b16 %v433
    %v2650 = vunpack.c.l.b16 %v434
    %v2651 = vunpack.c.h.b16 %v434
    %v2652 = vunpack.c.l.b16 %v435
    %v2653 = vunpack.c.h.b16 %v435
    %v2654 = vunpack.c.l.b16 %v436
    %v2655 = vunpack.c.h.b16 %v436
    %v2656 = vunpack.c.l.b16 %v437
    %v2657 = vunpack.c.h.b16 %v437
    %v2658 = vunpack.c.l.b16 %v438
    %v2659 = vunpack.c.h.b16 %v438
    %v2660 = vunpack.c.l.b16 %v439
    %v2661 = vunpack.c.h.b16 %v439
    %v2662 = vunpack.c.l.b16 %v440
    %v2663 = vunpack.c.h.b16 %v440
    %v2664 = vunpack.c.l.b16 %v441
    %v2665 = vunpack.c.h.b16 %v441
    %v2666 = vunpack.c.l.b16 %v442
    %v2667 = vunpack.c.h.b16 %v442
    %v2668 = vunpack.c.l.b16 %v443
    %v2669 = vunpack.c.h.b16 %v443
    %v2670 = vunpack.c.l.b16 %v444
    %v2671 = vunpack.c.h.b16 %v444
    %v2672 = vunpack.c.l.b16 %v445
    %v2673 = vunpack.c.h.b16 %v445
    %v2674 = vunpack.c.l.b16 %v446
    %v2675 = vunpack.c.h.b16 %v446
    %v2676 = vunpack.c.l.b16 %v447
    %v2677 = vunpack.c.h.b16 %v447
    %v2678 = vunpack.c.l.b16 %v448
    %v2679 = vunpack.c.h.b16 %v448
    %v2680 = vunpack.c.l.b16 %v449
    %v2681 = vunpack.c.h.b16 %v449
    %v2682 = vunpack.c.l.b16 %v450
    %v2683 = vunpack.c.h.b16 %v450
    %v2684 = vunpack.c.l.b16 %v451
    %v2685 = vunpack.c.h.b16 %v451
    %v2686 = vunpack.c.l.b16 %v452
    %v2687 = vunpack.c.h.b16 %v452
    %v2688 = vunpack.c.l.b16 %v453
    %v2689 = vunpack.c.h.b16 %v453
    %v2690 = vunpack.c.l.b16 %v454
    %v2691 = vunpack.c.h.b16 %v454
    %v2692 = vunpack.c.l.b16 %v455
    %v2693 = vunpack.c.h.b16 %v455
    %v2694 = vunpack.c.l.b16 %v456
    %v2695 = vunpack.c.h.b16 %v456
    %v2696 = vunpack.c.l.b16 %v457
    %v2697 = vunpack.c.h.b16 %v457
    %v2698 = vunpack.c.l.b16 %v458
    %v2699 = vunpack.c.h.b16 %v458
    %v2700 = vunpack.c.l.b16 %v459
    %v2701 = vunpack.c.h.b16 %v459
    %v2702 = vunpack.c.l.b16 %v460
    %v2703 = vunpack.c.h.b16 %v460
    %v2704 = vunpack.c.l.b16 %v461
    %v2705 = vunpack.c.h.b16 %v461
    %v2706 = vunpack.c.l.b16 %v462
    %v2707 = vunpack.c.h.b16 %v462
    %v2708 = vunpack.c.l.b16 %v463
    %v2709 = vunpack.c.h.b16 %v463
    %v2710 = vunpack.c.l.b16 %v464
    %v2711 = vunpack.c.h.b16 %v464
    %v2712 = vunpack.c.l.b16 %v465
    %v2713 = vunpack.c.h.b16 %v465
    %v2714 = vunpack.c.l.b16 %v466
    %v2715 = vunpack.c.h.b16 %v466
    %v2716 = vunpack.c.l.b16 %v467
    %v2717 = vunpack.c.h.b16 %v467
    %v2718 = vunpack.c.l.b16 %v468
    %v2719 = vunpack.c.h.b16 %v468
    %v2720 = vunpack.c.l.b16 %v469
    %v2721 = vunpack.c.h.b16 %v469
    %v2722 = vunpack.c.l.b16 %v470
    %v2723 = vunpack.c.h.b16 %v470
    %v2724 = vunpack.c.l.b16 %v471
    %v2725 = vunpack.c.h.b16 %v471
    %v2726 = vunpack.c.l.b16 %v472
    %v2727 = vunpack.c.h.b16 %v472
    %v2728 = vunpack.c.l.b16 %v473
    %v2729 = vunpack.c.h.b16 %v473
    %v2730 = vunpack.c.l.b16 %v474
    %v2731 = vunpack.c.h.b16 %v474
    %v2732 = vunpack.c.l.b16 %v475
    %v2733 = vunpack.c.h.b16 %v475
    %v2734 = vunpack.c.l.b16 %v476
    %v2735 = vunpack.c.h.b16 %v476
    %v2736 = vunpack.c.l.b16 %v477
    %v2737 = vunpack.c.h.b16 %v477
    %v2738 = vunpack.c.l.b16 %v478
    %v2739 = vunpack.c.h.b16 %v478
    %v2740 = vunpack.c.l.b16 %v479
    %v2741 = vunpack.c.h.b16 %v479
    %v2742 = vunpack.c.l.b16 %v480
    %v2743 = vunpack.c.h.b16 %v480
    %v2744 = vunpack.c.l.b16 %v481
    %v2745 = vunpack.c.h.b16 %v481
    %v2746 = vunpack.c.l.b16 %v482
    %v2747 = vunpack.c.h.b16 %v482
    %v2748 = vunpack.c.l.b16 %v483
    %v2749 = vunpack.c.h.b16 %v483
    %v2750 = vunpack.c.l.b16 %v484
    %v2751 = vunpack.c.h.b16 %v484
    %v2752 = vunpack.c.l.b16 %v485
    %v2753 = vunpack.c.h.b16 %v485
    %v2754 = vunpack.c.l.b16 %v486
    %v2755 = vunpack.c.h.b16 %v486
    %v2756 = vunpack.c.l.b16 %v487
    %v2757 = vunpack.c.h.b16 %v487
    %v2758 = vunpack.c.l.b16 %v488
    %v2759 = vunpack.c.h.b16 %v488
    %v2760 = vunpack.c.l.b16 %v489
    %v2761 = vunpack.c.h.b16 %v489
    %v2762 = vunpack.c.l.b16 %v490
    %v2763 = vunpack.c.h.b16 %v490
    %v2764 = vunpack.c.l.b16 %v491
    %v2765 = vunpack.c.h.b16 %v491
    %v2766 = vunpack.c.l.b16 %v492
    %v2767 = vunpack.c.h.b16 %v492
    %v2768 = vunpack.c.l.b16 %v493
    %v2769 = vunpack.c.h.b16 %v493
    %v2770 = vunpack.c.l.b16 %v494
    %v2771 = vunpack.c.h.b16 %v494
    %v2772 = vunpack.c.l.b16 %v495
    %v2773 = vunpack.c.h.b16 %v495
    %v2774 = vunpack.c.l.b16 %v496
    %v2775 = vunpack.c.h.b16 %v496
    %v2776 = vunpack.c.l.b16 %v497
    %v2777 = vunpack.c.h.b16 %v497
    %v2778 = vunpack.c.l.b16 %v498
    %v2779 = vunpack.c.h.b16 %v498
    %v2780 = vunpack.c.l.b16 %v499
    %v2781 = vunpack.c.h.b16 %v499
    %v2782 = vunpack.c.l.b16 %v500
    %v2783 = vunpack.c.h.b16 %v500
    %v2784 = vunpack.c.l.b16 %v501
    %v2785 = vunpack.c.h.b16 %v501
    %v2786 = vunpack.c.l.b16 %v502
    %v2787 = vunpack.c.h.b16 %v502
    %v2788 = vunpack.c.l.b16 %v503
    %v2789 = vunpack.c.h.b16 %v503
    %v2790 = vunpack.c.l.b16 %v504
    %v2791 = vunpack.c.h.b16 %v504
    %v2792 = vunpack.c.l.b16 %v505
    %v2793 = vunpack.c.h.b16 %v505
    %v2794 = vunpack.c.l.b16 %v506
    %v2795 = vunpack.c.h.b16 %v506
    %v2796 = vunpack.c.l.b16 %v507
    %v2797 = vunpack.c.h.b16 %v507
    %v2798 = vunpack.c.l.b16 %v508
    %v2799 = vunpack.c.h.b16 %v508
    %v2800 = vunpack.c.l.b16 %v509
    %v2801 = vunpack.c.h.b16 %v509
    %v2802 = vunpack.c.l.b16 %v510
    %v2803 = vunpack.c.h.b16 %v510
    %v2804 = vunpack.c.l.b16 %v511
    %v2805 = vunpack.c.h.b16 %v511
    %v2806 = vunpack.c.l.b16 %v512
    %v2807 = vunpack.c.h.b16 %v512
    %v2808 = vunpack.c.l.b16 %v513
    %v2809 = vunpack.c.h.b16 %v513
    %v2810 = vunpack.c.l.b16 %v514
    %v2811 = vunpack.c.h.b16 %v514
    %v2812 = vunpack.c.l.b16 %v515
    %v2813 = vunpack.c.h.b16 %v515
    %v2814 = vunpack.c.l.b16 %v516
    %v2815 = vunpack.c.h.b16 %v516
    %v2816 = vunpack.c.l.b16 %v517
    %v2817 = vunpack.c.h.b16 %v517
    %v2818 = vunpack.c.l.b16 %v518
    %v2819 = vunpack.c.h.b16 %v518
    %v2820 = vunpack.c.l.b16 %v519
    %v2821 = vunpack.c.h.b16 %v519
    %v2822 = vunpack.c.l.b16 %v520
    %v2823 = vunpack.c.h.b16 %v520
    %v2824 = vunpack.c.l.b16 %v521
    %v2825 = vunpack.c.h.b16 %v521
    %v2826 = vunpack.c.l.b16 %v522
    %v2827 = vunpack.c.h.b16 %v522
    %v2828 = vunpack.c.l.b16 %v523
    %v2829 = vunpack.c.h.b16 %v523
    %v2830 = vunpack.c.l.b16 %v524
    %v2831 = vunpack.c.h.b16 %v524
    %v2832 = vunpack.c.l.b16 %v525
    %v2833 = vunpack.c.h.b16 %v525
    %v2834 = vunpack.c.l.b16 %v526
    %v2835 = vunpack.c.h.b16 %v526
    %v2836 = vunpack.c.l.b16 %v527
    %v2837 = vunpack.c.h.b16 %v527
    %v2838 = vunpack.c.l.b16 %v528
    %v2839 = vunpack.c.h.b16 %v528
    %v2840 = vunpack.c.l.b16 %v529
    %v2841 = vunpack.c.h.b16 %v529
    %v2842 = vunpack.c.l.b16 %v530
    %v2843 = vunpack.c.h.b16 %v530
    %v2844 = vunpack.c.l.b16 %v531
    %v2845 = vunpack.c.h.b16 %v531
    %v2846 = vunpack.c.l.b16 %v532
    %v2847 = vunpack.c.h.b16 %v532
    %v2848 = vunpack.c.l.b16 %v533
    %v2849 = vunpack.c.h.b16 %v533
    %v2850 = vunpack.c.l.b16 %v534
    %v2851 = vunpack.c.h.b16 %v534
    %v2852 = vunpack.c.l.b16 %v535
    %v2853 = vunpack.c.h.b16 %v535
    %v2854 = vunpack.c.l.b16 %v536
    %v2855 = vunpack.c.h.b16 %v536
    %v2856 = vunpack.c.l.b16 %v537
    %v2857 = vunpack.c.h.b16 %v537
    %v2858 = vunpack.c.l.b16 %v538
    %v2859 = vunpack.c.h.b16 %v538
    %v2860 = vunpack.c.l.b16 %v539
    %v2861 = vunpack.c.h.b16 %v539
    %v2862 = vunpack.c.l.b16 %v540
    %v2863 = vunpack.c.h.b16 %v540
    %v2864 = vunpack.c.l.b16 %v541
    %v2865 = vunpack.c.h.b16 %v541
    %v2866 = vunpack.c.l.b16 %v542
    %v2867 = vunpack.c.h.b16 %v542
    %v2868 = vunpack.c.l.b16 %v543
    %v2869 = vunpack.c.h.b16 %v543
    %v2870 = vunpack.c.l.b16 %v544
    %v2871 = vunpack.c.h.b16 %v544
    %v2872 = vunpack.c.l.b16 %v545
    %v2873 = vunpack.c.h.b16 %v545
    %v2874 = vunpack.c.l.b16 %v546
    %v2875 = vunpack.c.h.b16 %v546
    %v2876 = vunpack.c.l.b16 %v547
    %v2877 = vunpack.c.h.b16 %v547
    %v2878 = vunpack.c.l.b16 %v548
    %v2879 = vunpack.c.h.b16 %v548
    %v2880 = vunpack.c.l.b16 %v549
    %v2881 = vunpack.c.h.b16 %v549
    %v2882 = vunpack.c.l.b16 %v550
    %v2883 = vunpack.c.h.b16 %v550
    %v2884 = vunpack.c.l.b16 %v551
    %v2885 = vunpack.c.h.b16 %v551
    %v2886 = vunpack.c.l.b16 %v552
    %v2887 = vunpack.c.h.b16 %v552
    %v2888 = vunpack.c.l.b16 %v553
    %v2889 = vunpack.c.h.b16 %v553
    %v2890 = vunpack.c.l.b16 %v554
    %v2891 = vunpack.c.h.b16 %v554
    %v2892 = vunpack.c.l.b16 %v555
    %v2893 = vunpack.c.h.b16 %v555
    %v2894 = vunpack.c.l.b16 %v556
    %v2895 = vunpack.c.h.b16 %v556
    %v2896 = vunpack.c.l.b16 %v557
    %v2897 = vunpack.c.h.b16 %v557
    %v2898 = vunpack.c.l.b16 %v558
    %v2899 = vunpack.c.h.b16 %v558
    %v2900 = vunpack.c.l.b16 %v559
    %v2901 = vunpack.c.h.b16 %v559
    %v2902 = vunpack.c.l.b16 %v560
    %v2903 = vunpack.c.h.b16 %v560
    %v2904 = vunpack.c.l.b16 %v561
    %v2905 = vunpack.c.h.b16 %v561
    %v2906 = vunpack.c.l.b16 %v562
    %v2907 = vunpack.c.h.b16 %v562
    %v2908 = vunpack.c.l.b16 %v563
    %v2909 = vunpack.c.h.b16 %v563
    %v2910 = vunpack.c.l.b16 %v564
    %v2911 = vunpack.c.h.b16 %v564
    %v2912 = vunpack.c.l.b16 %v565
    %v2913 = vunpack.c.h.b16 %v565
    %v2914 = vunpack.c.l.b16 %v566
    %v2915 = vunpack.c.h.b16 %v566
    %v2916 = vunpack.c.l.b16 %v567
    %v2917 = vunpack.c.h.b16 %v567
    %v2918 = vunpack.c.l.b16 %v568
    %v2919 = vunpack.c.h.b16 %v568
    %v2920 = vunpack.c.l.b16 %v569
    %v2921 = vunpack.c.h.b16 %v569
    %v2922 = vunpack.c.l.b16 %v570
    %v2923 = vunpack.c.h.b16 %v570
    %v2924 = vunpack.c.l.b16 %v571
    %v2925 = vunpack.c.h.b16 %v571
    %v2926 = vunpack.c.l.b16 %v572
    %v2927 = vunpack.c.h.b16 %v572
    %v2928 = vunpack.c.l.b16 %v573
    %v2929 = vunpack.c.h.b16 %v573
    %v2930 = vunpack.c.l.b16 %v574
    %v2931 = vunpack.c.h.b16 %v574
    %v2932 = vunpack.c.l.b16 %v575
    %v2933 = vunpack.c.h.b16 %v575
    %v2934 = vunpack.c.l.b16 %v576
    %v2935 = vunpack.c.h.b16 %v576
    %v2936 = vunpack.c.l.b16 %v577
    %v2937 = vunpack.c.h.b16 %v577
    %v2938 = vunpack.c.l.b16 %v578
    %v2939 = vunpack.c.h.b16 %v578
    %v2940 = vunpack.c.l.b16 %v579
    %v2941 = vunpack.c.h.b16 %v579
    %v2942 = vunpack.c.l.b16 %v580
    %v2943 = vunpack.c.h.b16 %v580
    %v2944 = vunpack.c.l.b16 %v581
    %v2945 = vunpack.c.h.b16 %v581
    %v2946 = vunpack.c.l.b16 %v582
    %v2947 = vunpack.c.h.b16 %v582
    %v2948 = vunpack.c.l.b16 %v583
    %v2949 = vunpack.c.h.b16 %v583
    %v2950 = vunpack.c.l.b16 %v584
    %v2951 = vunpack.c.h.b16 %v584
    %v2952 = vunpack.c.l.b16 %v585
    %v2953 = vunpack.c.h.b16 %v585
    %v2954 = vunpack.c.l.b16 %v586
    %v2955 = vunpack.c.h.b16 %v586
    %v2956 = vunpack.c.l.b16 %v587
    %v2957 = vunpack.c.h.b16 %v587
    %v2958 = vunpack.c.l.b16 %v588
    %v2959 = vunpack.c.h.b16 %v588
    %v2960 = vunpack.c.l.b16 %v589
    %v2961 = vunpack.c.h.b16 %v589
    %v2962 = vunpack.c.l.b16 %v590
    %v2963 = vunpack.c.h.b16 %v590
    %v2964 = vunpack.c.l.b16 %v591
    %v2965 = vunpack.c.h.b16 %v591
    %v2966 = vunpack.c.l.b16 %v592
    %v2967 = vunpack.c.h.b16 %v592
    %v2968 = vunpack.c.l.b16 %v593
    %v2969 = vunpack.c.h.b16 %v593
    %v2970 = vunpack.c.l.b16 %v594
    %v2971 = vunpack.c.h.b16 %v594
    %v2972 = vunpack.c.l.b16 %v595
    %v2973 = vunpack.c.h.b16 %v595
    %v2974 = vunpack.c.l.b16 %v596
    %v2975 = vunpack.c.h.b16 %v596
    %v2976 = vunpack.c.l.b16 %v597
    %v2977 = vunpack.c.h.b16 %v597
    %v2978 = vunpack.c.l.b16 %v598
    %v2979 = vunpack.c.h.b16 %v598
    %v2980 = vunpack.c.l.b16 %v599
    %v2981 = vunpack.c.h.b16 %v599
    %v2982 = vunpack.c.l.b16 %v600
    %v2983 = vunpack.c.h.b16 %v600
    %v2984 = vunpack.c.l.b16 %v601
    %v2985 = vunpack.c.h.b16 %v601
    %v2986 = vunpack.c.l.b16 %v602
    %v2987 = vunpack.c.h.b16 %v602
    %v2988 = vunpack.c.l.b16 %v603
    %v2989 = vunpack.c.h.b16 %v603
    %v2990 = vunpack.c.l.b16 %v604
    %v2991 = vunpack.c.h.b16 %v604
    %v2992 = vunpack.c.l.b16 %v605
    %v2993 = vunpack.c.h.b16 %v605
    %v2994 = vunpack.c.l.b16 %v606
    %v2995 = vunpack.c.h.b16 %v606
    %v2996 = vunpack.c.l.b16 %v607
    %v2997 = vunpack.c.h.b16 %v607
    %v2998 = vunpack.c.l.b16 %v608
    %v2999 = vunpack.c.h.b16 %v608
    %v3000 = vunpack.c.l.b16 %v609
    %v3001 = vunpack.c.h.b16 %v609
    %v3002 = vunpack.c.l.b16 %v610
    %v3003 = vunpack.c.h.b16 %v610
    %v3004 = vunpack.c.l.b16 %v611
    %v3005 = vunpack.c.h.b16 %v611
    %v3006 = vunpack.c.l.b16 %v612
    %v3007 = vunpack.c.h.b16 %v612
    %v3008 = vunpack.c.l.b16 %v613
    %v3009 = vunpack.c.h.b16 %v613
    %v3010 = vunpack.c.l.b16 %v614
    %v3011 = vunpack.c.h.b16 %v614
    %v3012 = vunpack.c.l.b16 %v615
    %v3013 = vunpack.c.h.b16 %v615
    %v3014 = vunpack.c.l.b16 %v616
    %v3015 = vunpack.c.h.b16 %v616
    %v3016 = vunpack.c.l.b16 %v617
    %v3017 = vunpack.c.h.b16 %v617
    %v3018 = vunpack.c.l.b16 %v618
    %v3019 = vunpack.c.h.b16 %v618
    %v3020 = vunpack.c.l.b16 %v619
    %v3021 = vunpack.c.h.b16 %v619
    %v3022 = vunpack.c.l.b16 %v620
    %v3023 = vunpack.c.h.b16 %v620
    %v3024 = vunpack.c.l.b16 %v621
    %v3025 = vunpack.c.h.b16 %v621
    %v3026 = vunpack.c.l.b16 %v622
    %v3027 = vunpack.c.h.b16 %v622
    %v3028 = vunpack.c.l.b16 %v623
    %v3029 = vunpack.c.h.b16 %v623
    %v3030 = vunpack.c.l.b16 %v624
    %v3031 = vunpack.c.h.b16 %v624
    %v3032 = vunpack.c.l.b16 %v625
    %v3033 = vunpack.c.h.b16 %v625
    %v3034 = vunpack.c.l.b16 %v626
    %v3035 = vunpack.c.h.b16 %v626
    %v3036 = vunpack.c.l.b16 %v627
    %v3037 = vunpack.c.h.b16 %v627
    %v3038 = vunpack.c.l.b16 %v628
    %v3039 = vunpack.c.h.b16 %v628
    %v3040 = vunpack.c.l.b16 %v629
    %v3041 = vunpack.c.h.b16 %v629
    %v3042 = vunpack.c.l.b16 %v630
    %v3043 = vunpack.c.h.b16 %v630
    %v3044 = vunpack.c.l.b16 %v631
    %v3045 = vunpack.c.h.b16 %v631
    %v3046 = vunpack.c.l.b16 %v632
    %v3047 = vunpack.c.h.b16 %v632
    %v3048 = vunpack.c.l.b16 %v633
    %v3049 = vunpack.c.h.b16 %v633
    %v3050 = vunpack.c.l.b16 %v634
    %v3051 = vunpack.c.h.b16 %v634
    %v3052 = vunpack.c.l.b16 %v635
    %v3053 = vunpack.c.h.b16 %v635
    %v3054 = vunpack.c.l.b16 %v636
    %v3055 = vunpack.c.h.b16 %v636
    %v3056 = vunpack.c.l.b16 %v637
    %v3057 = vunpack.c.h.b16 %v637
    %v3058 = vunpack.c.l.b16 %v638
    %v3059 = vunpack.c.h.b16 %v638
    %v3060 = vunpack.c.l.b16 %v639
    %v3061 = vunpack.c.h.b16 %v639
    %v3062 = vunpack.c.l.b16 %v640
    %v3063 = vunpack.c.h.b16 %v640
    %v3064 = vunpack.c.l.b16 %v641
    %v3065 = vunpack.c.h.b16 %v641
    %v3066 = vunpack.c.l.b16 %v642
    %v3067 = vunpack.c.h.b16 %v642
    %v3068 = vunpack.c.l.b16 %v643
    %v3069 = vunpack.c.h.b16 %v643
    %v3070 = vunpack.c.l.b16 %v644
    %v3071 = vunpack.c.h.b16 %v644
    %v3072 = vunpack.c.l.b16 %v645
    %v3073 = vunpack.c.h.b16 %v645
    %v3074 = vunpack.c.l.b16 %v646
    %v3075 = vunpack.c.h.b16 %v646
    %v3076 = vunpack.c.l.b16 %v647
    %v3077 = vunpack.c.h.b16 %v647
    %v3078 = vunpack.c.l.b16 %v648
    %v3079 = vunpack.c.h.b16 %v648
    %v3080 = vunpack.c.l.b16 %v649
    %v3081 = vunpack.c.h.b16 %v649
    %v3082 = vunpack.c.l.b16 %v650
    %v3083 = vunpack.c.h.b16 %v650
    %v3084 = vunpack.c.l.b16 %v651
    %v3085 = vunpack.c.h.b16 %v651
    %v3086 = vunpack.c.l.b16 %v652
    %v3087 = vunpack.c.h.b16 %v652
    %v3088 = vunpack.c.l.b16 %v653
    %v3089 = vunpack.c.h.b16 %v653
    %v3090 = vunpack.c.l.b16 %v654
    %v3091 = vunpack.c.h.b16 %v654
    %v3092 = vunpack.c.l.b16 %v655
    %v3093 = vunpack.c.h.b16 %v655
    %v3094 = vunpack.c.l.b16 %v656
    %v3095 = vunpack.c.h.b16 %v656
    %v3096 = vunpack.c.l.b16 %v657
    %v3097 = vunpack.c.h.b16 %v657
    %v3098 = vunpack.c.l.b16 %v658
    %v3099 = vunpack.c.h.b16 %v658
    %v3100 = vunpack.c.l.b16 %v659
    %v3101 = vunpack.c.h.b16 %v659
    %v3102 = vunpack.c.l.b16 %v660
    %v3103 = vunpack.c.h.b16 %v660
    %v3104 = vunpack.c.l.b16 %v661
    %v3105 = vunpack.c.h.b16 %v661
    %v3106 = vunpack.c.l.b16 %v662
    %v3107 = vunpack.c.h.b16 %v662
    %v3108 = vunpack.c.l.b16 %v663
    %v3109 = vunpack.c.h.b16 %v663
    %v3110 = vunpack.c.l.b16 %v664
    %v3111 = vunpack.c.h.b16 %v664
    %v3112 = vunpack.c.l.b16 %v665
    %v3113 = vunpack.c.h.b16 %v665
    %v3114 = vunpack.c.l.b16 %v666
    %v3115 = vunpack.c.h.b16 %v666
    %v3116 = vunpack.c.l.b16 %v667
    %v3117 = vunpack.c.h.b16 %v667
    %v3118 = vunpack.c.l.b16 %v668
    %v3119 = vunpack.c.h.b16 %v668
    %v3120 = vunpack.c.l.b16 %v669
    %v3121 = vunpack.c.h.b16 %v669
    %v3122 = vunpack.c.l.b16 %v670
    %v3123 = vunpack.c.h.b16 %v670
    %v3124 = vunpack.c.l.b16 %v671
    %v3125 = vunpack.c.h.b16 %v671
    %v3126 = vunpack.c.l.b16 %v672
    %v3127 = vunpack.c.h.b16 %v672
    %v3128 = vunpack.c.l.b16 %v673
    %v3129 = vunpack.c.h.b16 %v673
    %v3130 = vunpack.c.l.b16 %v674
    %v3131 = vunpack.c.h.b16 %v674
    %v3132 = vunpack.c.l.b16 %v675
    %v3133 = vunpack.c.h.b16 %v675
    %v3134 = vunpack.c.l.b16 %v676
    %v3135 = vunpack.c.h.b16 %v676
    %v3136 = vunpack.c.l.b16 %v677
    %v3137 = vunpack.c.h.b16 %v677
    %v3138 = vunpack.c.l.b16 %v678
    %v3139 = vunpack.c.h.b16 %v678
    %v3140 = vunpack.c.l.b16 %v679
    %v3141 = vunpack.c.h.b16 %v679
    %v3142 = vunpack.c.l.b16 %v680
    %v3143 = vunpack.c.h.b16 %v680
    %v3144 = vunpack.c.l.b16 %v681
    %v3145 = vunpack.c.h.b16 %v681
    %v3146 = vunpack.c.l.b16 %v682
    %v3147 = vunpack.c.h.b16 %v682
    %v3148 = vunpack.c.l.b16 %v683
    %v3149 = vunpack.c.h.b16 %v683
    %v3150 = vunpack.c.l.b16 %v684
    %v3151 = vunpack.c.h.b16 %v684
    %v3152 = vunpack.c.l.b16 %v685
    %v3153 = vunpack.c.h.b16 %v685
    %v3154 = vunpack.c.l.b16 %v686
    %v3155 = vunpack.c.h.b16 %v686
    %v3156 = vunpack.c.l.b16 %v687
    %v3157 = vunpack.c.h.b16 %v687
    %v3158 = vunpack.c.l.b16 %v688
    %v3159 = vunpack.c.h.b16 %v688
    %v3160 = vunpack.c.l.b16 %v689
    %v3161 = vunpack.c.h.b16 %v689
    %v3162 = vunpack.c.l.b16 %v690
    %v3163 = vunpack.c.h.b16 %v690
    %v3164 = vunpack.c.l.b16 %v691
    %v3165 = vunpack.c.h.b16 %v691
    %v3166 = vunpack.c.l.b16 %v692
    %v3167 = vunpack.c.h.b16 %v692
    %v3168 = vunpack.c.l.b16 %v693
    %v3169 = vunpack.c.h.b16 %v693
    %v3170 = vunpack.c.l.b16 %v694
    %v3171 = vunpack.c.h.b16 %v694
    %v3172 = vunpack.c.l.b16 %v695
    %v3173 = vunpack.c.h.b16 %v695
    %v3174 = vunpack.c.l.b16 %v696
    %v3175 = vunpack.c.h.b16 %v696
    %v3176 = vunpack.c.l.b16 %v697
    %v3177 = vunpack.c.h.b16 %v697
    %v3178 = vunpack.c.l.b16 %v698
    %v3179 = vunpack.c.h.b16 %v698
    %v3180 = vunpack.c.l.b16 %v699
    %v3181 = vunpack.c.h.b16 %v699
    %v3182 = vunpack.c.l.b16 %v700
    %v3183 = vunpack.c.h.b16 %v700
    %v3184 = vunpack.c.l.b16 %v701
    %v3185 = vunpack.c.h.b16 %v701
    %v3186 = vunpack.c.l.b16 %v702
    %v3187 = vunpack.c.h.b16 %v702
    %v3188 = vunpack.c.l.b16 %v703
    %v3189 = vunpack.c.h.b16 %v703
    %v3190 = vunpack.c.l.b16 %v704
    %v3191 = vunpack.c.h.b16 %v704
    %v3192 = vunpack.c.l.b16 %v705
    %v3193 = vunpack.c.h.b16 %v705
    %v3194 = vunpack.c.l.b16 %v706
    %v3195 = vunpack.c.h.b16 %v706
    %v3196 = vunpack.c.l.b16 %v707
    %v3197 = vunpack.c.h.b16 %v707
    %v3198 = vunpack.c.l.b16 %v708
    %v3199 = vunpack.c.h.b16 %v708
    %v3200 = vunpack.c.l.b16 %v709
    %v3201 = vunpack.c.h.b16 %v709
    %v3202 = vunpack.c.l.b16 %v710
    %v3203 = vunpack.c.h.b16 %v710
    %v3204 = vunpack.c.l.b16 %v711
    %v3205 = vunpack.c.h.b16 %v711
    %v3206 = vunpack.c.l.b16 %v712
    %v3207 = vunpack.c.h.b16 %v712
    %v3208 = vunpack.c.l.b16 %v713
    %v3209 = vunpack.c.h.b16 %v713
    %v3210 = vunpack.c.l.b16 %v714
    %v3211 = vunpack.c.h.b16 %v714
    %v3212 = vunpack.c.l.b16 %v715
    %v3213 = vunpack.c.h.b16 %v715
    %v3214 = vunpack.c.l.b16 %v716
    %v3215 = vunpack.c.h.b16 %v716
    %v3216 = vunpack.c.l.b16 %v717
    %v3217 = vunpack.c.h.b16 %v717
    %v3218 = vunpack.c.l.b16 %v718
    %v3219 = vunpack.c.h.b16 %v718
    %v3220 = vunpack.c.l.b16 %v719
    %v3221 = vunpack.c.h.b16 %v719
    %v3222 = vunpack.c.l.b16 %v720
    %v3223 = vunpack.c.h.b16 %v720
    %v3224 = vunpack.c.l.b16 %v721
    %v3225 = vunpack.c.h.b16 %v721
    %v3226 = vunpack.c.l.b16 %v722
    %v3227 = vunpack.c.h.b16 %v722
    %v3228 = vunpack.c.l.b16 %v723
    %v3229 = vunpack.c.h.b16 %v723
    %v3230 = vunpack.c.l.b16 %v724
    %v3231 = vunpack.c.h.b16 %v724
    %v3232 = vunpack.c.l.b16 %v725
    %v3233 = vunpack.c.h.b16 %v725
    %v3234 = vunpack.c.l.b16 %v726
    %v3235 = vunpack.c.h.b16 %v726
    %v3236 = vunpack.c.l.b16 %v727
    %v3237 = vunpack.c.h.b16 %v727
    %v3238 = vunpack.c.l.b16 %v728
    %v3239 = vunpack.c.h.b16 %v728
    %v3240 = vunpack.c.l.b16 %v729
    %v3241 = vunpack.c.h.b16 %v729
    %v3242 = vunpack.c.l.b16 %v730
    %v3243 = vunpack.c.h.b16 %v730
    %v3244 = vunpack.c.l.b16 %v731
    %v3245 = vunpack.c.h.b16 %v731
    %v3246 = vunpack.c.l.b16 %v732
    %v3247 = vunpack.c.h.b16 %v732
    %v3248 = vunpack.c.l.b16 %v733
    %v3249 = vunpack.c.h.b16 %v733
    %v3250 = vunpack.c.l.b16 %v734
    %v3251 = vunpack.c.h.b16 %v734
    %v3252 = vunpack.c.l.b16 %v735
    %v3253 = vunpack.c.h.b16 %v735
    %v3254 = vunpack.c.l.b16 %v736
    %v3255 = vunpack.c.h.b16 %v736
    %v3256 = vunpack.c.l.b16 %v737
    %v3257 = vunpack.c.h.b16 %v737
    %v3258 = vunpack.c.l.b16 %v738
    %v3259 = vunpack.c.h.b16 %v738
    %v3260 = vunpack.c.l.b16 %v739
    %v3261 = vunpack.c.h.b16 %v739
    %v3262 = vunpack.c.l.b16 %v740
    %v3263 = vunpack.c.h.b16 %v740
    %v3264 = vunpack.c.l.b16 %v741
    %v3265 = vunpack.c.h.b16 %v741
    %v3266 = vunpack.c.l.b16 %v742
    %v3267 = vunpack.c.h.b16 %v742
    %v3268 = vunpack.c.l.b16 %v743
    %v3269 = vunpack.c.h.b16 %v743
    %v3270 = vunpack.c.l.b16 %v744
    %v3271 = vunpack.c.h.b16 %v744
    %v3272 = vunpack.c.l.b16 %v745
    %v3273 = vunpack.c.h.b16 %v745
    %v3274 = vunpack.c.l.b16 %v746
    %v3275 = vunpack.c.h.b16 %v746
    %v3276 = vunpack.c.l.b16 %v747
    %v3277 = vunpack.c.h.b16 %v747
    %v3278 = vunpack.c.l.b16 %v748
    %v3279 = vunpack.c.h.b16 %v748
    %v3280 = vunpack.c.l.b16 %v749
    %v3281 = vunpack.c.h.b16 %v749
    %v3282 = vunpack.c.l.b16 %v750
    %v3283 = vunpack.c.h.b16 %v750
    %v3284 = vunpack.c.l.b16 %v751
    %v3285 = vunpack.c.h.b16 %v751
    %v3286 = vunpack.c.l.b16 %v752
    %v3287 = vunpack.c.h.b16 %v752
    %v3288 = vunpack.c.l.b16 %v753
    %v3289 = vunpack.c.h.b16 %v753
    %v3290 = vunpack.c.l.b16 %v754
    %v3291 = vunpack.c.h.b16 %v754
    %v3292 = vunpack.c.l.b16 %v755
    %v3293 = vunpack.c.h.b16 %v755
    %v3294 = vunpack.c.l.b16 %v756
    %v3295 = vunpack.c.h.b16 %v756
    %v3296 = vunpack.c.l.b16 %v757
    %v3297 = vunpack.c.h.b16 %v757
    %v3298 = vunpack.c.l.b16 %v758
    %v3299 = vunpack.c.h.b16 %v758
    %v3300 = vunpack.c.l.b16 %v759
    %v3301 = vunpack.c.h.b16 %v759
    %v3302 = vunpack.c.l.b16 %v760
    %v3303 = vunpack.c.h.b16 %v760
    %v3304 = vunpack.c.l.b16 %v761
    %v3305 = vunpack.c.h.b16 %v761
    %v3306 = vunpack.c.l.b16 %v762
    %v3307 = vunpack.c.h.b16 %v762
    %v3308 = vunpack.c.l.b16 %v763
    %v3309 = vunpack.c.h.b16 %v763
    %v3310 = vunpack.c.l.b16 %v764
    %v3311 = vunpack.c.h.b16 %v764
    %v3312 = vunpack.c.l.b16 %v765
    %v3313 = vunpack.c.h.b16 %v765
    %v3314 = vunpack.c.l.b16 %v766
    %v3315 = vunpack.c.h.b16 %v766
    %v3316 = vunpack.c.l.b16 %v767
    %v3317 = vunpack.c.h.b16 %v767
    %v3318 = vunpack.c.l.b16 %v768
    %v3319 = vunpack.c.h.b16 %v768
    %v3320 = vunpack.c.l.b16 %v769
    %v3321 = vunpack.c.h.b16 %v769
    %v3322 = vunpack.c.l.b16 %v770
    %v3323 = vunpack.c.h.b16 %v770
    %v3324 = vunpack.c.l.b16 %v771
    %v3325 = vunpack.c.h.b16 %v771
    %v3326 = vunpack.c.l.b16 %v772
    %v3327 = vunpack.c.h.b16 %v772
    %v3328 = vunpack.c.l.b16 %v773
    %v3329 = vunpack.c.h.b16 %v773
    %v3330 = vunpack.c.l.b16 %v774
    %v3331 = vunpack.c.h.b16 %v774
    %v3332 = vunpack.c.l.b16 %v775
    %v3333 = vunpack.c.h.b16 %v775
    %v3334 = vunpack.c.l.b16 %v776
    %v3335 = vunpack.c.h.b16 %v776
    %v3336 = vunpack.c.l.b16 %v777
    %v3337 = vunpack.c.h.b16 %v777
    %v3338 = vunpack.c.l.b16 %v778
    %v3339 = vunpack.c.h.b16 %v778
    %v3340 = vunpack.c.l.b16 %v779
    %v3341 = vunpack.c.h.b16 %v779
    %v3342 = vunpack.c.l.b16 %v780
    %v3343 = vunpack.c.h.b16 %v780
    %v3344 = vunpack.c.l.b16 %v781
    %v3345 = vunpack.c.h.b16 %v781
    %v3346 = vunpack.c.l.b16 %v782
    %v3347 = vunpack.c.h.b16 %v782
    %v3348 = vunpack.c.l.b16 %v783
    %v3349 = vunpack.c.h.b16 %v783
    %v3350 = vunpack.c.l.b16 %v784
    %v3351 = vunpack.c.h.b16 %v784
    %v3352 = vunpack.c.l.b16 %v785
    %v3353 = vunpack.c.h.b16 %v785
    %v3354 = vunpack.c.l.b16 %v786
    %v3355 = vunpack.c.h.b16 %v786
    %v3356 = vunpack.c.l.b16 %v787
    %v3357 = vunpack.c.h.b16 %v787
    %v3358 = vunpack.c.l.b16 %v788
    %v3359 = vunpack.c.h.b16 %v788
    %v3360 = vunpack.c.l.b16 %v789
    %v3361 = vunpack.c.h.b16 %v789
    %v3362 = vunpack.c.l.b16 %v790
    %v3363 = vunpack.c.h.b16 %v790
    %v3364 = vunpack.c.l.b16 %v791
    %v3365 = vunpack.c.h.b16 %v791
    %v3366 = vunpack.c.l.b16 %v792
    %v3367 = vunpack.c.h.b16 %v792
    %v3368 = vunpack.c.l.b16 %v793
    %v3369 = vunpack.c.h.b16 %v793
    %v3370 = vunpack.c.l.b16 %v794
    %v3371 = vunpack.c.h.b16 %v794
    %v3372 = vunpack.c.l.b16 %v795
    %v3373 = vunpack.c.h.b16 %v795
    %v3374 = vunpack.c.l.b16 %v796
    %v3375 = vunpack.c.h.b16 %v796
    %v3376 = vunpack.c.l.b16 %v797
    %v3377 = vunpack.c.h.b16 %v797
    %v3378 = vunpack.c.l.b16 %v798
    %v3379 = vunpack.c.h.b16 %v798
    %v3380 = vunpack.c.l.b16 %v799
    %v3381 = vunpack.c.h.b16 %v799
    %v3382 = vunpack.c.l.b16 %v800
    %v3383 = vunpack.c.h.b16 %v800
    %v3384 = vunpack.c.l.b16 %v801
    %v3385 = vunpack.c.h.b16 %v801
    %v3386 = vunpack.c.l.b16 %v802
    %v3387 = vunpack.c.h.b16 %v802
    %v3388 = vunpack.c.l.b16 %v803
    %v3389 = vunpack.c.h.b16 %v803
    %v3390 = vunpack.c.l.b16 %v804
    %v3391 = vunpack.c.h.b16 %v804
    %v3392 = vunpack.c.l.b16 %v805
    %v3393 = vunpack.c.h.b16 %v805
    %v3394 = vunpack.c.l.b16 %v806
    %v3395 = vunpack.c.h.b16 %v806
    %v3396 = vunpack.c.l.b16 %v807
    %v3397 = vunpack.c.h.b16 %v807
    %v3398 = vunpack.c.l.b16 %v808
    %v3399 = vunpack.c.h.b16 %v808
    %v3400 = vunpack.c.l.b16 %v809
    %v3401 = vunpack.c.h.b16 %v809
    %v3402 = vunpack.c.l.b16 %v810
    %v3403 = vunpack.c.h.b16 %v810
    %v3404 = vunpack.c.l.b16 %v811
    %v3405 = vunpack.c.h.b16 %v811
    %v3406 = vunpack.c.l.b16 %v812
    %v3407 = vunpack.c.h.b16 %v812
    %v3408 = vunpack.c.l.b16 %v813
    %v3409 = vunpack.c.h.b16 %v813
    %v3410 = vunpack.c.l.b16 %v814
    %v3411 = vunpack.c.h.b16 %v814
    %v3412 = vunpack.c.l.b16 %v815
    %v3413 = vunpack.c.h.b16 %v815
    %v3414 = vunpack.c.l.b16 %v816
    %v3415 = vunpack.c.h.b16 %v816
    %v3416 = vunpack.c.l.b16 %v817
    %v3417 = vunpack.c.h.b16 %v817
    %v3418 = vunpack.c.l.b16 %v818
    %v3419 = vunpack.c.h.b16 %v818
    %v3420 = vunpack.c.l.b16 %v819
    %v3421 = vunpack.c.h.b16 %v819
    %v3422 = vunpack.c.l.b16 %v820
    %v3423 = vunpack.c.h.b16 %v820
    %v3424 = vunpack.c.l.b16 %v821
    %v3425 = vunpack.c.h.b16 %v821
    %v3426 = vunpack.c.l.b16 %v822
    %v3427 = vunpack.c.h.b16 %v822
    %v3428 = vunpack.c.l.b16 %v823
    %v3429 = vunpack.c.h.b16 %v823
    %v3430 = vunpack.c.l.b16 %v824
    %v3431 = vunpack.c.h.b16 %v824
    %v3432 = vunpack.c.l.b16 %v825
    %v3433 = vunpack.c.h.b16 %v825
    %v3434 = vunpack.c.l.b16 %v826
    %v3435 = vunpack.c.h.b16 %v826
    %v3436 = vunpack.c.l.b16 %v827
    %v3437 = vunpack.c.h.b16 %v827
    %v3438 = vunpack.c.l.b16 %v828
    %v3439 = vunpack.c.h.b16 %v828
    %v3440 = vunpack.c.l.b16 %v829
    %v3441 = vunpack.c.h.b16 %v829
    %v3442 = vunpack.c.l.b16 %v830
    %v3443 = vunpack.c.h.b16 %v830
    %v3444 = vunpack.c.l.b16 %v831
    %v3445 = vunpack.c.h.b16 %v831
    %v3446 = vunpack.c.l.b16 %v832
    %v3447 = vunpack.c.h.b16 %v832
    %v3448 = vunpack.c.l.b16 %v833
    %v3449 = vunpack.c.h.b16 %v833
    %v3450 = vunpack.c.l.b16 %v834
    %v3451 = vunpack.c.h.b16 %v834
    %v3452 = vunpack.c.l.b16 %v835
    %v3453 = vunpack.c.h.b16 %v835
    %v3454 = vunpack.c.l.b16 %v836
    %v3455 = vunpack.c.h.b16 %v836
    %v3456 = vunpack.c.l.b16 %v837
    %v3457 = vunpack.c.h.b16 %v837
    %v3458 = vunpack.c.l.b16 %v838
    %v3459 = vunpack.c.h.b16 %v838
    %v3460 = vunpack.c.l.b16 %v839
    %v3461 = vunpack.c.h.b16 %v839
    %v3462 = vunpack.c.l.b16 %v840
    %v3463 = vunpack.c.h.b16 %v840
    %v3464 = vunpack.c.l.b16 %v841
    %v3465 = vunpack.c.h.b16 %v841
    %v3466 = vunpack.c.l.b16 %v842
    %v3467 = vunpack.c.h.b16 %v842
    %v3468 = vunpack.c.l.b16 %v843
    %v3469 = vunpack.c.h.b16 %v843
    %v3470 = vunpack.c.l.b16 %v844
    %v3471 = vunpack.c.h.b16 %v844
    %v3472 = vunpack.c.l.b16 %v845
    %v3473 = vunpack.c.h.b16 %v845
    %v3474 = vunpack.c.l.b16 %v846
    %v3475 = vunpack.c.h.b16 %v846
    %v3476 = vunpack.c.l.b16 %v847
    %v3477 = vunpack.c.h.b16 %v847
    %v3478 = vunpack.c.l.b16 %v848
    %v3479 = vunpack.c.h.b16 %v848
    %v3480 = vunpack.c.l.b16 %v849
    %v3481 = vunpack.c.h.b16 %v849
    %v3482 = vunpack.c.l.b16 %v850
    %v3483 = vunpack.c.h.b16 %v850
    %v3484 = vunpack.c.l.b16 %v851
    %v3485 = vunpack.c.h.b16 %v851
    %v3486 = vunpack.c.l.b16 %v852
    %v3487 = vunpack.c.h.b16 %v852
    %v3488 = vunpack.c.l.b16 %v853
    %v3489 = vunpack.c.h.b16 %v853
    %v3490 = vunpack.c.l.b16 %v854
    %v3491 = vunpack.c.h.b16 %v854
    %v3492 = vunpack.c.l.b16 %v855
    %v3493 = vunpack.c.h.b16 %v855
    %v3494 = vunpack.c.l.b16 %v856
    %v3495 = vunpack.c.h.b16 %v856
    %v3496 = vunpack.c.l.b16 %v857
    %v3497 = vunpack.c.h.b16 %v857
    %v3498 = vunpack.c.l.b16 %v858
    %v3499 = vunpack.c.h.b16 %v858
    %v3500 = vunpack.c.l.b16 %v859
    %v3501 = vunpack.c.h.b16 %v859
    %v3502 = vunpack.c.l.b16 %v860
    %v3503 = vunpack.c.h.b16 %v860
    %v3504 = vunpack.c.l.b16 %v861
    %v3505 = vunpack.c.h.b16 %v861
    %v3506 = vunpack.c.l.b16 %v862
    %v3507 = vunpack.c.h.b16 %v862
    %v3508 = vunpack.c.l.b16 %v863
    %v3509 = vunpack.c.h.b16 %v863
    %v3510 = vunpack.c.l.b16 %v864
    %v3511 = vunpack.c.h.b16 %v864
    %v3512 = vunpack.c.l.b16 %v865
    %v3513 = vunpack.c.h.b16 %v865
    %v3514 = vunpack.c.l.b16 %v866
    %v3515 = vunpack.c.h.b16 %v866
    %v3516 = vunpack.c.l.b16 %v867
    %v3517 = vunpack.c.h.b16 %v867
    %v3518 = vunpack.c.l.b16 %v868
    %v3519 = vunpack.c.h.b16 %v868
    %v3520 = vunpack.c.l.b16 %v869
    %v3521 = vunpack.c.h.b16 %v869
    %v3522 = vpack.c.b16 %v1988, %v1986
    %v3523 = vpack.c.b16 %v1989, %v1987
    %v3524 = vpack.c.b16 %v1992, %v1990
    %v3525 = vpack.c.b16 %v1993, %v1991
    %v3526 = vpack.c.b16 %v1996, %v1994
    %v3527 = vpack.c.b16 %v1997, %v1995
    %v3528 = vpack.c.b16 %v2000, %v1998
    %v3529 = vpack.c.b16 %v2001, %v1999
    %v3530 = vpack.c.b16 %v2004, %v2002
    %v3531 = vpack.c.b16 %v2005, %v2003
    %v3532 = vpack.c.b16 %v2008, %v2006
    %v3533 = vpack.c.b16 %v2009, %v2007
    %v3534 = vpack.c.b16 %v2012, %v2010
    %v3535 = vpack.c.b16 %v2013, %v2011
    %v3536 = vpack.c.b16 %v2016, %v2014
    %v3537 = vpack.c.b16 %v2017, %v2015
    %v3538 = vpack.c.b16 %v2020, %v2018
    %v3539 = vpack.c.b16 %v2021, %v2019
    %v3540 = vpack.c.b16 %v2024, %v2022
    %v3541 = vpack.c.b16 %v2025, %v2023
    %v3542 = vpack.c.b16 %v2028, %v2026
    %v3543 = vpack.c.b16 %v2029, %v2027
    %v3544 = vpack.c.b16 %v2032, %v2030
    %v3545 = vpack.c.b16 %v2033, %v2031
    %v3546 = vpack.c.b16 %v2036, %v2034
    %v3547 = vpack.c.b16 %v2037, %v2035
    %v3548 = vpack.c.b16 %v2040, %v2038
    %v3549 = vpack.c.b16 %v2041, %v2039
    %v3550 = vpack.c.b16 %v2044, %v2042
    %v3551 = vpack.c.b16 %v2045, %v2043
    %v3552 = vpack.c.b16 %v2048, %v2046
    %v3553 = vpack.c.b16 %v2049, %v2047
    %v3554 = vpack.c.b16 %v2052, %v2050
    %v3555 = vpack.c.b16 %v2053, %v2051
    %v3556 = vpack.c.b16 %v2056, %v2054
    %v3557 = vpack.c.b16 %v2057, %v2055
    %v3558 = vpack.c.b16 %v2060, %v2058
    %v3559 = vpack.c.b16 %v2061, %v2059
    %v3560 = vpack.c.b16 %v2064, %v2062
    %v3561 = vpack.c.b16 %v2065, %v2063
    %v3562 = vpack.c.b16 %v2068, %v2066
    %v3563 = vpack.c.b16 %v2069, %v2067
    %v3564 = vpack.c.b16 %v2072, %v2070
    %v3565 = vpack.c.b16 %v2073, %v2071
    %v3566 = vpack.c.b16 %v2076, %v2074
    %v3567 = vpack.c.b16 %v2077, %v2075
    %v3568 = vpack.c.b16 %v2080, %v2078
    %v3569 = vpack.c.b16 %v2081, %v2079
    %v3570 = vpack.c.b16 %v2084, %v2082
    %v3571 = vpack.c.b16 %v2085, %v2083
    %v3572 = vpack.c.b16 %v2088, %v2086
    %v3573 = vpack.c.b16 %v2089, %v2087
    %v3574 = vpack.c.b16 %v2092, %v2090
    %v3575 = vpack.c.b16 %v2093, %v2091
    %v3576 = vpack.c.b16 %v2096, %v2094
    %v3577 = vpack.c.b16 %v2097, %v2095
    %v3578 = vpack.c.b16 %v2100, %v2098
    %v3579 = vpack.c.b16 %v2101, %v2099
    %v3580 = vpack.c.b16 %v2104, %v2102
    %v3581 = vpack.c.b16 %v2105, %v2103
    %v3582 = vpack.c.b16 %v2108, %v2106
    %v3583 = vpack.c.b16 %v2109, %v2107
    %v3584 = vpack.c.b16 %v2112, %v2110
    %v3585 = vpack.c.b16 %v2113, %v2111
    %v3586 = vpack.c.b16 %v2116, %v2114
    %v3587 = vpack.c.b16 %v2117, %v2115
    %v3588 = vpack.c.b16 %v2120, %v2118
    %v3589 = vpack.c.b16 %v2121, %v2119
    %v3590 = vpack.c.b16 %v2124, %v2122
    %v3591 = vpack.c.b16 %v2125, %v2123
    %v3592 = vpack.c.b16 %v2128, %v2126
    %v3593 = vpack.c.b16 %v2129, %v2127
    %v3594 = vpack.c.b16 %v2132, %v2130
    %v3595 = vpack.c.b16 %v2133, %v2131
    %v3596 = vpack.c.b16 %v2136, %v2134
    %v3597 = vpack.c.b16 %v2137, %v2135
    %v3598 = vpack.c.b16 %v2140, %v2138
    %v3599 = vpack.c.b16 %v2141, %v2139
    %v3600 = vpack.c.b16 %v2144, %v2142
    %v3601 = vpack.c.b16 %v2145, %v2143
    %v3602 = vpack.c.b16 %v2148, %v2146
    %v3603 = vpack.c.b16 %v2149, %v2147
    %v3604 = vpack.c.b16 %v2152, %v2150
    %v3605 = vpack.c.b16 %v2153, %v2151
    %v3606 = vpack.c.b16 %v2156, %v2154
    %v3607 = vpack.c.b16 %v2157, %v2155
    %v3608 = vpack.c.b16 %v2160, %v2158
    %v3609 = vpack.c.b16 %v2161, %v2159
    %v3610 = vpack.c.b16 %v2164, %v2162
    %v3611 = vpack.c.b16 %v2165, %v2163
    %v3612 = vpack.c.b16 %v2168, %v2166
    %v3613 = vpack.c.b16 %v2169, %v2167
    %v3614 = vpack.c.b16 %v2172, %v2170
    %v3615 = vpack.c.b16 %v2173, %v2171
    %v3616 = vpack.c.b16 %v2176, %v2174
    %v3617 = vpack.c.b16 %v2177, %v2175
    %v3618 = vpack.c.b16 %v2180, %v2178
    %v3619 = vpack.c.b16 %v2181, %v2179
    %v3620 = vpack.c.b16 %v2184, %v2182
    %v3621 = vpack.c.b16 %v2185, %v2183
    %v3622 = vpack.c.b16 %v2188, %v2186
    %v3623 = vpack.c.b16 %v2189, %v2187
    %v3624 = vpack.c.b16 %v2192, %v2190
    %v3625 = vpack.c.b16 %v2193, %v2191
    %v3626 = vpack.c.b16 %v2196, %v2194
    %v3627 = vpack.c.b16 %v2197, %v2195
    %v3628 = vpack.c.b16 %v2200, %v2198
    %v3629 = vpack.c.b16 %v2201, %v2199
    %v3630 = vpack.c.b16 %v2204, %v2202
    %v3631 = vpack.c.b16 %v2205, %v2203
    %v3632 = vpack.c.b16 %v2208, %v2206
    %v3633 = vpack.c.b16 %v2209, %v2207
    %v3634 = vpack.c.b16 %v2212, %v2210
    %v3635 = vpack.c.b16 %v2213, %v2211
    %v3636 = vpack.c.b16 %v2216, %v2214
    %v3637 = vpack.c.b16 %v2217, %v2215
    %v3638 = vpack.c.b16 %v2220, %v2218
    %v3639 = vpack.c.b16 %v2221, %v2219
    %v3640 = vpack.c.b16 %v2224, %v2222
    %v3641 = vpack.c.b16 %v2225, %v2223
    %v3642 = vpack.c.b16 %v2228, %v2226
    %v3643 = vpack.c.b16 %v2229, %v2227
    %v3644 = vpack.c.b16 %v2232, %v2230
    %v3645 = vpack.c.b16 %v2233, %v2231
    %v3646 = vpack.c.b16 %v2236, %v2234
    %v3647 = vpack.c.b16 %v2237, %v2235
    %v3648 = vpack.c.b16 %v2240, %v2238
    %v3649 = vpack.c.b16 %v2241, %v2239
    %v3650 = vpack.c.b16 %v2244, %v2242
    %v3651 = vpack.c.b16 %v2245, %v2243
    %v3652 = vpack.c.b16 %v2248, %v2246
    %v3653 = vpack.c.b16 %v2249, %v2247
    %v3654 = vpack.c.b16 %v2252, %v2250
    %v3655 = vpack.c.b16 %v2253, %v2251
    %v3656 = vpack.c.b16 %v2256, %v2254
    %v3657 = vpack.c.b16 %v2257, %v2255
    %v3658 = vpack.c.b16 %v2260, %v2258
    %v3659 = vpack.c.b16 %v2261, %v2259
    %v3660 = vpack.c.b16 %v2264, %v2262
    %v3661 = vpack.c.b16 %v2265, %v2263
    %v3662 = vpack.c.b16 %v2268, %v2266
    %v3663 = vpack.c.b16 %v2269, %v2267
    %v3664 = vpack.c.b16 %v2272, %v2270
    %v3665 = vpack.c.b16 %v2273, %v2271
    %v3666 = vpack.c.b16 %v2276, %v2274
    %v3667 = vpack.c.b16 %v2277, %v2275
    %v3668 = vpack.c.b16 %v2280, %v2278
    %v3669 = vpack.c.b16 %v2281, %v2279
    %v3670 = vpack.c.b16 %v2284, %v2282
    %v3671 = vpack.c.b16 %v2285, %v2283
    %v3672 = vpack.c.b16 %v2288, %v2286
    %v3673 = vpack.c.b16 %v2289, %v2287
    %v3674 = vpack.c.b16 %v2292, %v2290
    %v3675 = vpack.c.b16 %v2293, %v2291
    %v3676 = vpack.c.b16 %v2296, %v2294
    %v3677 = vpack.c.b16 %v2297, %v2295
    %v3678 = vpack.c.b16 %v2300, %v2298
    %v3679 = vpack.c.b16 %v2301, %v2299
    %v3680 = vpack.c.b16 %v2304, %v2302
    %v3681 = vpack.c.b16 %v2305, %v2303
    %v3682 = vpack.c.b16 %v2308, %v2306
    %v3683 = vpack.c.b16 %v2309, %v2307
    %v3684 = vpack.c.b16 %v2312, %v2310
    %v3685 = vpack.c.b16 %v2313, %v2311
    %v3686 = vpack.c.b16 %v2316, %v2314
    %v3687 = vpack.c.b16 %v2317, %v2315
    %v3688 = vpack.c.b16 %v2320, %v2318
    %v3689 = vpack.c.b16 %v2321, %v2319
    %v3690 = vpack.c.b16 %v2324, %v2322
    %v3691 = vpack.c.b16 %v2325, %v2323
    %v3692 = vpack.c.b16 %v2328, %v2326
    %v3693 = vpack.c.b16 %v2329, %v2327
    %v3694 = vpack.c.b16 %v2332, %v2330
    %v3695 = vpack.c.b16 %v2333, %v2331
    %v3696 = vpack.c.b16 %v2336, %v2334
    %v3697 = vpack.c.b16 %v2337, %v2335
    %v3698 = vpack.c.b16 %v2340, %v2338
    %v3699 = vpack.c.b16 %v2341, %v2339
    %v3700 = vpack.c.b16 %v2344, %v2342
    %v3701 = vpack.c.b16 %v2345, %v2343
    %v3702 = vpack.c.b16 %v2348, %v2346
    %v3703 = vpack.c.b16 %v2349, %v2347
    %v3704 = vpack.c.b16 %v2352, %v2350
    %v3705 = vpack.c.b16 %v2353, %v2351
    %v3706 = vpack.c.b16 %v2356, %v2354
    %v3707 = vpack.c.b16 %v2357, %v2355
    %v3708 = vpack.c.b16 %v2360, %v2358
    %v3709 = vpack.c.b16 %v2361, %v2359
    %v3710 = vpack.c.b16 %v2364, %v2362
    %v3711 = vpack.c.b16 %v2365, %v2363
    %v3712 = vpack.c.b16 %v2368, %v2366
    %v3713 = vpack.c.b16 %v2369, %v2367
    %v3714 = vpack.c.b16 %v2372, %v2370
    %v3715 = vpack.c.b16 %v2373, %v2371
    %v3716 = vpack.c.b16 %v2376, %v2374
    %v3717 = vpack.c.b16 %v2377, %v2375
    %v3718 = vpack.c.b16 %v2380, %v2378
    %v3719 = vpack.c.b16 %v2381, %v2379
    %v3720 = vpack.c.b16 %v2384, %v2382
    %v3721 = vpack.c.b16 %v2385, %v2383
    %v3722 = vpack.c.b16 %v2388, %v2386
    %v3723 = vpack.c.b16 %v2389, %v2387
    %v3724 = vpack.c.b16 %v2392, %v2390
    %v3725 = vpack.c.b16 %v2393, %v2391
    %v3726 = vpack.c.b16 %v2396, %v2394
    %v3727 = vpack.c.b16 %v2397, %v2395
    %v3728 = vpack.c.b16 %v2400, %v2398
    %v3729 = vpack.c.b16 %v2401, %v2399
    %v3730 = vpack.c.b16 %v2404, %v2402
    %v3731 = vpack.c.b16 %v2405, %v2403
    %v3732 = vpack.c.b16 %v2408, %v2406
    %v3733 = vpack.c.b16 %v2409, %v2407
    %v3734 = vpack.c.b16 %v2412, %v2410
    %v3735 = vpack.c.b16 %v2413, %v2411
    %v3736 = vpack.c.b16 %v2416, %v2414
    %v3737 = vpack.c.b16 %v2417, %v2415
    %v3738 = vpack.c.b16 %v2420, %v2418
    %v3739 = vpack.c.b16 %v2421, %v2419
    %v3740 = vpack.c.b16 %v2424, %v2422
    %v3741 = vpack.c.b16 %v2425, %v2423
    %v3742 = vpack.c.b16 %v2428, %v2426
    %v3743 = vpack.c.b16 %v2429, %v2427
    %v3744 = vpack.c.b16 %v2432, %v2430
    %v3745 = vpack.c.b16 %v2433, %v2431
    %v3746 = vpack.c.b16 %v2436, %v2434
    %v3747 = vpack.c.b16 %v2437, %v2435
    %v3748 = vpack.c.b16 %v2440, %v2438
    %v3749 = vpack.c.b16 %v2441, %v2439
    %v3750 = vpack.c.b16 %v2444, %v2442
    %v3751 = vpack.c.b16 %v2445, %v2443
    %v3752 = vpack.c.b16 %v2448, %v2446
    %v3753 = vpack.c.b16 %v2449, %v2447
    %v3754 = vpack.c.b16 %v2452, %v2450
    %v3755 = vpack.c.b16 %v2453, %v2451
    %v3756 = vpack.c.b16 %v2456, %v2454
    %v3757 = vpack.c.b16 %v2457, %v2455
    %v3758 = vpack.c.b16 %v2460, %v2458
    %v3759 = vpack.c.b16 %v2461, %v2459
    %v3760 = vpack.c.b16 %v2464, %v2462
    %v3761 = vpack.c.b16 %v2465, %v2463
    %v3762 = vpack.c.b16 %v2468, %v2466
    %v3763 = vpack.c.b16 %v2469, %v2467
    %v3764 = vpack.c.b16 %v2472, %v2470
    %v3765 = vpack.c.b16 %v2473, %v2471
    %v3766 = vpack.c.b16 %v2476, %v2474
    %v3767 = vpack.c.b16 %v2477, %v2475
    %v3768 = vpack.c.b16 %v2480, %v2478
    %v3769 = vpack.c.b16 %v2481, %v2479
    %v3770 = vpack.c.b16 %v2484, %v2482
    %v3771 = vpack.c.b16 %v2485, %v2483
    %v3772 = vpack.c.b16 %v2488, %v2486
    %v3773 = vpack.c.b16 %v2489, %v2487
    %v3774 = vpack.c.b16 %v2492, %v2490
    %v3775 = vpack.c.b16 %v2493, %v2491
    %v3776 = vpack.c.b16 %v2496, %v2494
    %v3777 = vpack.c.b16 %v2497, %v2495
    %v3778 = vpack.c.b16 %v2500, %v2498
    %v3779 = vpack.c.b16 %v2501, %v2499
    %v3780 = vpack.c.b16 %v2504, %v2502
    %v3781 = vpack.c.b16 %v2505, %v2503
    %v3782 = vpack.c.b16 %v2508, %v2506
    %v3783 = vpack.c.b16 %v2509, %v2507
    %v3784 = vpack.c.b16 %v2512, %v2510
    %v3785 = vpack.c.b16 %v2513, %v2511
    %v3786 = vpack.c.b16 %v2516, %v2514
    %v3787 = vpack.c.b16 %v2517, %v2515
    %v3788 = vpack.c.b16 %v2520, %v2518
    %v3789 = vpack.c.b16 %v2521, %v2519
    %v3790 = vpack.c.b16 %v2524, %v2522
    %v3791 = vpack.c.b16 %v2525, %v2523
    %v3792 = vpack.c.b16 %v2528, %v2526
    %v3793 = vpack.c.b16 %v2529, %v2527
    %v3794 = vpack.c.b16 %v2532, %v2530
    %v3795 = vpack.c.b16 %v2533, %v2531
    %v3796 = vpack.c.b16 %v2536, %v2534
    %v3797 = vpack.c.b16 %v2537, %v2535
    %v3798 = vpack.c.b16 %v2540, %v2538
    %v3799 = vpack.c.b16 %v2541, %v2539
    %v3800 = vpack.c.b16 %v2544, %v2542
    %v3801 = vpack.c.b16 %v2545, %v2543
    %v3802 = vpack.c.b16 %v2548, %v2546
    %v3803 = vpack.c.b16 %v2549, %v2547
    %v3804 = vpack.c.b16 %v2552, %v2550
    %v3805 = vpack.c.b16 %v2553, %v2551
    %v3806 = vpack.c.b16 %v2556, %v2554
    %v3807 = vpack.c.b16 %v2557, %v2555
    %v3808 = vpack.c.b16 %v2560, %v2558
    %v3809 = vpack.c.b16 %v2561, %v2559
    %v3810 = vpack.c.b16 %v2564, %v2562
    %v3811 = vpack.c.b16 %v2565, %v2563
    %v3812 = vpack.c.b16 %v2568, %v2566
    %v3813 = vpack.c.b16 %v2569, %v2567
    %v3814 = vpack.c.b16 %v2572, %v2570
    %v3815 = vpack.c.b16 %v2573, %v2571
    %v3816 = vpack.c.b16 %v2576, %v2574
    %v3817 = vpack.c.b16 %v2577, %v2575
    %v3818 = vpack.c.b16 %v2580, %v2578
    %v3819 = vpack.c.b16 %v2581, %v2579
    %v3820 = vpack.c.b16 %v2584, %v2582
    %v3821 = vpack.c.b16 %v2585, %v2583
    %v3822 = vpack.c.b16 %v2588, %v2586
    %v3823 = vpack.c.b16 %v2589, %v2587
    %v3824 = vpack.c.b16 %v2592, %v2590
    %v3825 = vpack.c.b16 %v2593, %v2591
    %v3826 = vpack.c.b16 %v2596, %v2594
    %v3827 = vpack.c.b16 %v2597, %v2595
    %v3828 = vpack.c.b16 %v2600, %v2598
    %v3829 = vpack.c.b16 %v2601, %v2599
    %v3830 = vpack.c.b16 %v2604, %v2602
    %v3831 = vpack.c.b16 %v2605, %v2603
    %v3832 = vpack.c.b16 %v2608, %v2606
    %v3833 = vpack.c.b16 %v2609, %v2607
    %v3834 = vpack.c.b16 %v2612, %v2610
    %v3835 = vpack.c.b16 %v2613, %v2611
    %v3836 = vpack.c.b16 %v2616, %v2614
    %v3837 = vpack.c.b16 %v2617, %v2615
    %v3838 = vpack.c.b16 %v2620, %v2618
    %v3839 = vpack.c.b16 %v2621, %v2619
    %v3840 = vpack.c.b16 %v2624, %v2622
    %v3841 = vpack.c.b16 %v2625, %v2623
    %v3842 = vpack.c.b16 %v2628, %v2626
    %v3843 = vpack.c.b16 %v2629, %v2627
    %v3844 = vpack.c.b16 %v2632, %v2630
    %v3845 = vpack.c.b16 %v2633, %v2631
    %v3846 = vpack.c.b16 %v2636, %v2634
    %v3847 = vpack.c.b16 %v2637, %v2635
    %v3848 = vpack.c.b16 %v2640, %v2638
    %v3849 = vpack.c.b16 %v2641, %v2639
    %v3850 = vpack.c.b16 %v2644, %v2642
    %v3851 = vpack.c.b16 %v2645, %v2643
    %v3852 = vpack.c.b16 %v2648, %v2646
    %v3853 = vpack.c.b16 %v2649, %v2647
    %v3854 = vpack.c.b16 %v2652, %v2650
    %v3855 = vpack.c.b16 %v2653, %v2651
    %v3856 = vpack.c.b16 %v2656, %v2654
    %v3857 = vpack.c.b16 %v2657, %v2655
    %v3858 = vpack.c.b16 %v2660, %v2658
    %v3859 = vpack.c.b16 %v2661, %v2659
    %v3860 = vpack.c.b16 %v2664, %v2662
    %v3861 = vpack.c.b16 %v2665, %v2663
    %v3862 = vpack.c.b16 %v2668, %v2666
    %v3863 = vpack.c.b16 %v2669, %v2667
    %v3864 = vpack.c.b16 %v2672, %v2670
    %v3865 = vpack.c.b16 %v2673, %v2671
    %v3866 = vpack.c.b16 %v2676, %v2674
    %v3867 = vpack.c.b16 %v2677, %v2675
    %v3868 = vpack.c.b16 %v2680, %v2678
    %v3869 = vpack.c.b16 %v2681, %v2679
    %v3870 = vpack.c.b16 %v2684, %v2682
    %v3871 = vpack.c.b16 %v2685, %v2683
    %v3872 = vpack.c.b16 %v2688, %v2686
    %v3873 = vpack.c.b16 %v2689, %v2687
    %v3874 = vpack.c.b16 %v2692, %v2690
    %v3875 = vpack.c.b16 %v2693, %v2691
    %v3876 = vpack.c.b16 %v2696, %v2694
    %v3877 = vpack.c.b16 %v2697, %v2695
    %v3878 = vpack.c.b16 %v2700, %v2698
    %v3879 = vpack.c.b16 %v2701, %v2699
    %v3880 = vpack.c.b16 %v2704, %v2702
    %v3881 = vpack.c.b16 %v2705, %v2703
    %v3882 = vpack.c.b16 %v2708, %v2706
    %v3883 = vpack.c.b16 %v2709, %v2707
    %v3884 = vpack.c.b16 %v2712, %v2710
    %v3885 = vpack.c.b16 %v2713, %v2711
    %v3886 = vpack.c.b16 %v2716, %v2714
    %v3887 = vpack.c.b16 %v2717, %v2715
    %v3888 = vpack.c.b16 %v2720, %v2718
    %v3889 = vpack.c.b16 %v2721, %v2719
    %v3890 = vpack.c.b16 %v2724, %v2722
    %v3891 = vpack.c.b16 %v2725, %v2723
    %v3892 = vpack.c.b16 %v2728, %v2726
    %v3893 = vpack.c.b16 %v2729, %v2727
    %v3894 = vpack.c.b16 %v2732, %v2730
    %v3895 = vpack.c.b16 %v2733, %v2731
    %v3896 = vpack.c.b16 %v2736, %v2734
    %v3897 = vpack.c.b16 %v2737, %v2735
    %v3898 = vpack.c.b16 %v2740, %v2738
    %v3899 = vpack.c.b16 %v2741, %v2739
    %v3900 = vpack.c.b16 %v2744, %v2742
    %v3901 = vpack.c.b16 %v2745, %v2743
    %v3902 = vpack.c.b16 %v2748, %v2746
    %v3903 = vpack.c.b16 %v2749, %v2747
    %v3904 = vpack.c.b16 %v2752, %v2750
    %v3905 = vpack.c.b16 %v2753, %v2751
    %v3906 = vpack.c.b16 %v2756, %v2754
    %v3907 = vpack.c.b16 %v2757, %v2755
    %v3908 = vpack.c.b16 %v2760, %v2758
    %v3909 = vpack.c.b16 %v2761, %v2759
    %v3910 = vpack.c.b16 %v2764, %v2762
    %v3911 = vpack.c.b16 %v2765, %v2763
    %v3912 = vpack.c.b16 %v2768, %v2766
    %v3913 = vpack.c.b16 %v2769, %v2767
    %v3914 = vpack.c.b16 %v2772, %v2770
    %v3915 = vpack.c.b16 %v2773, %v2771
    %v3916 = vpack.c.b16 %v2776, %v2774
    %v3917 = vpack.c.b16 %v2777, %v2775
    %v3918 = vpack.c.b16 %v2780, %v2778
    %v3919 = vpack.c.b16 %v2781, %v2779
    %v3920 = vpack.c.b16 %v2784, %v2782
    %v3921 = vpack.c.b16 %v2785, %v2783
    %v3922 = vpack.c.b16 %v2788, %v2786
    %v3923 = vpack.c.b16 %v2789, %v2787
    %v3924 = vpack.c.b16 %v2792, %v2790
    %v3925 = vpack.c.b16 %v2793, %v2791
    %v3926 = vpack.c.b16 %v2796, %v2794
    %v3927 = vpack.c.b16 %v2797, %v2795
    %v3928 = vpack.c.b16 %v2800, %v2798
    %v3929 = vpack.c.b16 %v2801, %v2799
    %v3930 = vpack.c.b16 %v2804, %v2802
    %v3931 = vpack.c.b16 %v2805, %v2803
    %v3932 = vpack.c.b16 %v2808, %v2806
    %v3933 = vpack.c.b16 %v2809, %v2807
    %v3934 = vpack.c.b16 %v2812, %v2810
    %v3935 = vpack.c.b16 %v2813, %v2811
    %v3936 = vpack.c.b16 %v2816, %v2814
    %v3937 = vpack.c.b16 %v2817, %v2815
    %v3938 = vpack.c.b16 %v2820, %v2818
    %v3939 = vpack.c.b16 %v2821, %v2819
    %v3940 = vpack.c.b16 %v2824, %v2822
    %v3941 = vpack.c.b16 %v2825, %v2823
    %v3942 = vpack.c.b16 %v2828, %v2826
    %v3943 = vpack.c.b16 %v2829, %v2827
    %v3944 = vpack.c.b16 %v2832, %v2830
    %v3945 = vpack.c.b16 %v2833, %v2831
    %v3946 = vpack.c.b16 %v2836, %v2834
    %v3947 = vpack.c.b16 %v2837, %v2835
    %v3948 = vpack.c.b16 %v2840, %v2838
    %v3949 = vpack.c.b16 %v2841, %v2839
    %v3950 = vpack.c.b16 %v2844, %v2842
    %v3951 = vpack.c.b16 %v2845, %v2843
    %v3952 = vpack.c.b16 %v2848, %v2846
    %v3953 = vpack.c.b16 %v2849, %v2847
    %v3954 = vpack.c.b16 %v2852, %v2850
    %v3955 = vpack.c.b16 %v2853, %v2851
    %v3956 = vpack.c.b16 %v2856, %v2854
    %v3957 = vpack.c.b16 %v2857, %v2855
    %v3958 = vpack.c.b16 %v2860, %v2858
    %v3959 = vpack.c.b16 %v2861, %v2859
    %v3960 = vpack.c.b16 %v2864, %v2862
    %v3961 = vpack.c.b16 %v2865, %v2863
    %v3962 = vpack.c.b16 %v2868, %v2866
    %v3963 = vpack.c.b16 %v2869, %v2867
    %v3964 = vpack.c.b16 %v2872, %v2870
    %v3965 = vpack.c.b16 %v2873, %v2871
    %v3966 = vpack.c.b16 %v2876, %v2874
    %v3967 = vpack.c.b16 %v2877, %v2875
    %v3968 = vpack.c.b16 %v2880, %v2878
    %v3969 = vpack.c.b16 %v2881, %v2879
    %v3970 = vpack.c.b16 %v2884, %v2882
    %v3971 = vpack.c.b16 %v2885, %v2883
    %v3972 = vpack.c.b16 %v2888, %v2886
    %v3973 = vpack.c.b16 %v2889, %v2887
    %v3974 = vpack.c.b16 %v2892, %v2890
    %v3975 = vpack.c.b16 %v2893, %v2891
    %v3976 = vpack.c.b16 %v2896, %v2894
    %v3977 = vpack.c.b16 %v2897, %v2895
    %v3978 = vpack.c.b16 %v2900, %v2898
    %v3979 = vpack.c.b16 %v2901, %v2899
    %v3980 = vpack.c.b16 %v2904, %v2902
    %v3981 = vpack.c.b16 %v2905, %v2903
    %v3982 = vpack.c.b16 %v2908, %v2906
    %v3983 = vpack.c.b16 %v2909, %v2907
    %v3984 = vpack.c.b16 %v2912, %v2910
    %v3985 = vpack.c.b16 %v2913, %v2911
    %v3986 = vpack.c.b16 %v2916, %v2914
    %v3987 = vpack.c.b16 %v2917, %v2915
    %v3988 = vpack.c.b16 %v2920, %v2918
    %v3989 = vpack.c.b16 %v2921, %v2919
    %v3990 = vpack.c.b16 %v2924, %v2922
    %v3991 = vpack.c.b16 %v2925, %v2923
    %v3992 = vpack.c.b16 %v2928, %v2926
    %v3993 = vpack.c.b16 %v2929, %v2927
    %v3994 = vpack.c.b16 %v2932, %v2930
    %v3995 = vpack.c.b16 %v2933, %v2931
    %v3996 = vpack.c.b16 %v2936, %v2934
    %v3997 = vpack.c.b16 %v2937, %v2935
    %v3998 = vpack.c.b16 %v2940, %v2938
    %v3999 = vpack.c.b16 %v2941, %v2939
    %v4000 = vpack.c.b16 %v2944, %v2942
    %v4001 = vpack.c.b16 %v2945, %v2943
    %v4002 = vpack.c.b16 %v2948, %v2946
    %v4003 = vpack.c.b16 %v2949, %v2947
    %v4004 = vpack.c.b16 %v2952, %v2950
    %v4005 = vpack.c.b16 %v2953, %v2951
    %v4006 = vpack.c.b16 %v2956, %v2954
    %v4007 = vpack.c.b16 %v2957, %v2955
    %v4008 = vpack.c.b16 %v2960, %v2958
    %v4009 = vpack.c.b16 %v2961, %v2959
    %v4010 = vpack.c.b16 %v2964, %v2962
    %v4011 = vpack.c.b16 %v2965, %v2963
    %v4012 = vpack.c.b16 %v2968, %v2966
    %v4013 = vpack.c.b16 %v2969, %v2967
    %v4014 = vpack.c.b16 %v2972, %v2970
    %v4015 = vpack.c.b16 %v2973, %v2971
    %v4016 = vpack.c.b16 %v2976, %v2974
    %v4017 = vpack.c.b16 %v2977, %v2975
    %v4018 = vpack.c.b16 %v2980, %v2978
    %v4019 = vpack.c.b16 %v2981, %v2979
    %v4020 = vpack.c.b16 %v2984, %v2982
    %v4021 = vpack.c.b16 %v2985, %v2983
    %v4022 = vpack.c.b16 %v2988, %v2986
    %v4023 = vpack.c.b16 %v2989, %v2987
    %v4024 = vpack.c.b16 %v2992, %v2990
    %v4025 = vpack.c.b16 %v2993, %v2991
    %v4026 = vpack.c.b16 %v2996, %v2994
    %v4027 = vpack.c.b16 %v2997, %v2995
    %v4028 = vpack.c.b16 %v3000, %v2998
    %v4029 = vpack.c.b16 %v3001, %v2999
    %v4030 = vpack.c.b16 %v3004, %v3002
    %v4031 = vpack.c.b16 %v3005, %v3003
    %v4032 = vpack.c.b16 %v3008, %v3006
    %v4033 = vpack.c.b16 %v3009, %v3007
    %v4034 = vpack.c.b16 %v3012, %v3010
    %v4035 = vpack.c.b16 %v3013, %v3011
    %v4036 = vpack.c.b16 %v3016, %v3014
    %v4037 = vpack.c.b16 %v3017, %v3015
    %v4038 = vpack.c.b16 %v3020, %v3018
    %v4039 = vpack.c.b16 %v3021, %v3019
    %v4040 = vpack.c.b16 %v3024, %v3022
    %v4041 = vpack.c.b16 %v3025, %v3023
    %v4042 = vpack.c.b16 %v3028, %v3026
    %v4043 = vpack.c.b16 %v3029, %v3027
    %v4044 = vpack.c.b16 %v3032, %v3030
    %v4045 = vpack.c.b16 %v3033, %v3031
    %v4046 = vpack.c.b16 %v3036, %v3034
    %v4047 = vpack.c.b16 %v3037, %v3035
    %v4048 = vpack.c.b16 %v3040, %v3038
    %v4049 = vpack.c.b16 %v3041, %v3039
    %v4050 = vpack.c.b16 %v3044, %v3042
    %v4051 = vpack.c.b16 %v3045, %v3043
    %v4052 = vpack.c.b16 %v3048, %v3046
    %v4053 = vpack.c.b16 %v3049, %v3047
    %v4054 = vpack.c.b16 %v3052, %v3050
    %v4055 = vpack.c.b16 %v3053, %v3051
    %v4056 = vpack.c.b16 %v3056, %v3054
    %v4057 = vpack.c.b16 %v3057, %v3055
    %v4058 = vpack.c.b16 %v3060, %v3058
    %v4059 = vpack.c.b16 %v3061, %v3059
    %v4060 = vpack.c.b16 %v3064, %v3062
    %v4061 = vpack.c.b16 %v3065, %v3063
    %v4062 = vpack.c.b16 %v3068, %v3066
    %v4063 = vpack.c.b16 %v3069, %v3067
    %v4064 = vpack.c.b16 %v3072, %v3070
    %v4065 = vpack.c.b16 %v3073, %v3071
    %v4066 = vpack.c.b16 %v3076, %v3074
    %v4067 = vpack.c.b16 %v3077, %v3075
    %v4068 = vpack.c.b16 %v3080, %v3078
    %v4069 = vpack.c.b16 %v3081, %v3079
    %v4070 = vpack.c.b16 %v3084, %v3082
    %v4071 = vpack.c.b16 %v3085, %v3083
    %v4072 = vpack.c.b16 %v3088, %v3086
    %v4073 = vpack.c.b16 %v3089, %v3087
    %v4074 = vpack.c.b16 %v3092, %v3090
    %v4075 = vpack.c.b16 %v3093, %v3091
    %v4076 = vpack.c.b16 %v3096, %v3094
    %v4077 = vpack.c.b16 %v3097, %v3095
    %v4078 = vpack.c.b16 %v3100, %v3098
    %v4079 = vpack.c.b16 %v3101, %v3099
    %v4080 = vpack.c.b16 %v3104, %v3102
    %v4081 = vpack.c.b16 %v3105, %v3103
    %v4082 = vpack.c.b16 %v3108, %v3106
    %v4083 = vpack.c.b16 %v3109, %v3107
    %v4084 = vpack.c.b16 %v3112, %v3110
    %v4085 = vpack.c.b16 %v3113, %v3111
    %v4086 = vpack.c.b16 %v3116, %v3114
    %v4087 = vpack.c.b16 %v3117, %v3115
    %v4088 = vpack.c.b16 %v3120, %v3118
    %v4089 = vpack.c.b16 %v3121, %v3119
    %v4090 = vpack.c.b16 %v3124, %v3122
    %v4091 = vpack.c.b16 %v3125, %v3123
    %v4092 = vpack.c.b16 %v3128, %v3126
    %v4093 = vpack.c.b16 %v3129, %v3127
    %v4094 = vpack.c.b16 %v3132, %v3130
    %v4095 = vpack.c.b16 %v3133, %v3131
    %v4096 = vpack.c.b16 %v3136, %v3134
    %v4097 = vpack.c.b16 %v3137, %v3135
    %v4098 = vpack.c.b16 %v3140, %v3138
    %v4099 = vpack.c.b16 %v3141, %v3139
    %v4100 = vpack.c.b16 %v3144, %v3142
    %v4101 = vpack.c.b16 %v3145, %v3143
    %v4102 = vpack.c.b16 %v3148, %v3146
    %v4103 = vpack.c.b16 %v3149, %v3147
    %v4104 = vpack.c.b16 %v3152, %v3150
    %v4105 = vpack.c.b16 %v3153, %v3151
    %v4106 = vpack.c.b16 %v3156, %v3154
    %v4107 = vpack.c.b16 %v3157, %v3155
    %v4108 = vpack.c.b16 %v3160, %v3158
    %v4109 = vpack.c.b16 %v3161, %v3159
    %v4110 = vpack.c.b16 %v3164, %v3162
    %v4111 = vpack.c.b16 %v3165, %v3163
    %v4112 = vpack.c.b16 %v3168, %v3166
    %v4113 = vpack.c.b16 %v3169, %v3167
    %v4114 = vpack.c.b16 %v3172, %v3170
    %v4115 = vpack.c.b16 %v3173, %v3171
    %v4116 = vpack.c.b16 %v3176, %v3174
    %v4117 = vpack.c.b16 %v3177, %v3175
    %v4118 = vpack.c.b16 %v3180, %v3178
    %v4119 = vpack.c.b16 %v3181, %v3179
    %v4120 = vpack.c.b16 %v3184, %v3182
    %v4121 = vpack.c.b16 %v3185, %v3183
    %v4122 = vpack.c.b16 %v3188, %v3186
    %v4123 = vpack.c.b16 %v3189, %v3187
    %v4124 = vpack.c.b16 %v3192, %v3190
    %v4125 = vpack.c.b16 %v3193, %v3191
    %v4126 = vpack.c.b16 %v3196, %v3194
    %v4127 = vpack.c.b16 %v3197, %v3195
    %v4128 = vpack.c.b16 %v3200, %v3198
    %v4129 = vpack.c.b16 %v3201, %v3199
    %v4130 = vpack.c.b16 %v3204, %v3202
    %v4131 = vpack.c.b16 %v3205, %v3203
    %v4132 = vpack.c.b16 %v3208, %v3206
    %v4133 = vpack.c.b16 %v3209, %v3207
    %v4134 = vpack.c.b16 %v3212, %v3210
    %v4135 = vpack.c.b16 %v3213, %v3211
    %v4136 = vpack.c.b16 %v3216, %v3214
    %v4137 = vpack.c.b16 %v3217, %v3215
    %v4138 = vpack.c.b16 %v3220, %v3218
    %v4139 = vpack.c.b16 %v3221, %v3219
    %v4140 = vpack.c.b16 %v3224, %v3222
    %v4141 = vpack.c.b16 %v3225, %v3223
    %v4142 = vpack.c.b16 %v3228, %v3226
    %v4143 = vpack.c.b16 %v3229, %v3227
    %v4144 = vpack.c.b16 %v3232, %v3230
    %v4145 = vpack.c.b16 %v3233, %v3231
    %v4146 = vpack.c.b16 %v3236, %v3234
    %v4147 = vpack.c.b16 %v3237, %v3235
    %v4148 = vpack.c.b16 %v3240, %v3238
    %v4149 = vpack.c.b16 %v3241, %v3239
    %v4150 = vpack.c.b16 %v3244, %v3242
    %v4151 = vpack.c.b16 %v3245, %v3243
    %v4152 = vpack.c.b16 %v3248, %v3246
    %v4153 = vpack.c.b16 %v3249, %v3247
    %v4154 = vpack.c.b16 %v3252, %v3250
    %v4155 = vpack.c.b16 %v3253, %v3251
    %v4156 = vpack.c.b16 %v3256, %v3254
    %v4157 = vpack.c.b16 %v3257, %v3255
    %v4158 = vpack.c.b16 %v3260, %v3258
    %v4159 = vpack.c.b16 %v3261, %v3259
    %v4160 = vpack.c.b16 %v3264, %v3262
    %v4161 = vpack.c.b16 %v3265, %v3263
    %v4162 = vpack.c.b16 %v3268, %v3266
    %v4163 = vpack.c.b16 %v3269, %v3267
    %v4164 = vpack.c.b16 %v3272, %v3270
    %v4165 = vpack.c.b16 %v3273, %v3271
    %v4166 = vpack.c.b16 %v3276, %v3274
    %v4167 = vpack.c.b16 %v3277, %v3275
    %v4168 = vpack.c.b16 %v3280, %v3278
    %v4169 = vpack.c.b16 %v3281, %v3279
    %v4170 = vpack.c.b16 %v3284, %v3282
    %v4171 = vpack.c.b16 %v3285, %v3283
    %v4172 = vpack.c.b16 %v3288, %v3286
    %v4173 = vpack.c.b16 %v3289, %v3287
    %v4174 = vpack.c.b16 %v3292, %v3290
    %v4175 = vpack.c.b16 %v3293, %v3291
    %v4176 = vpack.c.b16 %v3296, %v3294
    %v4177 = vpack.c.b16 %v3297, %v3295
    %v4178 = vpack.c.b16 %v3300, %v3298
    %v4179 = vpack.c.b16 %v3301, %v3299
    %v4180 = vpack.c.b16 %v3304, %v3302
    %v4181 = vpack.c.b16 %v3305, %v3303
    %v4182 = vpack.c.b16 %v3308, %v3306
    %v4183 = vpack.c.b16 %v3309, %v3307
    %v4184 = vpack.c.b16 %v3312, %v3310
    %v4185 = vpack.c.b16 %v3313, %v3311
    %v4186 = vpack.c.b16 %v3316, %v3314
    %v4187 = vpack.c.b16 %v3317, %v3315
    %v4188 = vpack.c.b16 %v3320, %v3318
    %v4189 = vpack.c.b16 %v3321, %v3319
    %v4190 = vpack.c.b16 %v3324, %v3322
    %v4191 = vpack.c.b16 %v3325, %v3323
    %v4192 = vpack.c.b16 %v3328, %v3326
    %v4193 = vpack.c.b16 %v3329, %v3327
    %v4194 = vpack.c.b16 %v3332, %v3330
    %v4195 = vpack.c.b16 %v3333, %v3331
    %v4196 = vpack.c.b16 %v3336, %v3334
    %v4197 = vpack.c.b16 %v3337, %v3335
    %v4198 = vpack.c.b16 %v3340, %v3338
    %v4199 = vpack.c.b16 %v3341, %v3339
    %v4200 = vpack.c.b16 %v3344, %v3342
    %v4201 = vpack.c.b16 %v3345, %v3343
    %v4202 = vpack.c.b16 %v3348, %v3346
    %v4203 = vpack.c.b16 %v3349, %v3347
    %v4204 = vpack.c.b16 %v3352, %v3350
    %v4205 = vpack.c.b16 %v3353, %v3351
    %v4206 = vpack.c.b16 %v3356, %v3354
    %v4207 = vpack.c.b16 %v3357, %v3355
    %v4208 = vpack.c.b16 %v3360, %v3358
    %v4209 = vpack.c.b16 %v3361, %v3359
    %v4210 = vpack.c.b16 %v3364, %v3362
    %v4211 = vpack.c.b16 %v3365, %v3363
    %v4212 = vpack.c.b16 %v3368, %v3366
    %v4213 = vpack.c.b16 %v3369, %v3367
    %v4214 = vpack.c.b16 %v3372, %v3370
    %v4215 = vpack.c.b16 %v3373, %v3371
    %v4216 = vpack.c.b16 %v3376, %v3374
    %v4217 = vpack.c.b16 %v3377, %v3375
    %v4218 = vpack.c.b16 %v3380, %v3378
    %v4219 = vpack.c.b16 %v3381, %v3379
    %v4220 = vpack.c.b16 %v3384, %v3382
    %v4221 = vpack.c.b16 %v3385, %v3383
    %v4222 = vpack.c.b16 %v3388, %v3386
    %v4223 = vpack.c.b16 %v3389, %v3387
    %v4224 = vpack.c.b16 %v3392, %v3390
    %v4225 = vpack.c.b16 %v3393, %v3391
    %v4226 = vpack.c.b16 %v3396, %v3394
    %v4227 = vpack.c.b16 %v3397, %v3395
    %v4228 = vpack.c.b16 %v3400, %v3398
    %v4229 = vpack.c.b16 %v3401, %v3399
    %v4230 = vpack.c.b16 %v3404, %v3402
    %v4231 = vpack.c.b16 %v3405, %v3403
    %v4232 = vpack.c.b16 %v3408, %v3406
    %v4233 = vpack.c.b16 %v3409, %v3407
    %v4234 = vpack.c.b16 %v3412, %v3410
    %v4235 = vpack.c.b16 %v3413, %v3411
    %v4236 = vpack.c.b16 %v3416, %v3414
    %v4237 = vpack.c.b16 %v3417, %v3415
    %v4238 = vpack.c.b16 %v3420, %v3418
    %v4239 = vpack.c.b16 %v3421, %v3419
    %v4240 = vpack.c.b16 %v3424, %v3422
    %v4241 = vpack.c.b16 %v3425, %v3423
    %v4242 = vpack.c.b16 %v3428, %v3426
    %v4243 = vpack.c.b16 %v3429, %v3427
    %v4244 = vpack.c.b16 %v3432, %v3430
    %v4245 = vpack.c.b16 %v3433, %v3431
    %v4246 = vpack.c.b16 %v3436, %v3434
    %v4247 = vpack.c.b16 %v3437, %v3435
    %v4248 = vpack.c.b16 %v3440, %v3438
    %v4249 = vpack.c.b16 %v3441, %v3439
    %v4250 = vpack.c.b16 %v3444, %v3442
    %v4251 = vpack.c.b16 %v3445, %v3443
    %v4252 = vpack.c.b16 %v3448, %v3446
    %v4253 = vpack.c.b16 %v3449, %v3447
    %v4254 = vpack.c.b16 %v3452, %v3450
    %v4255 = vpack.c.b16 %v3453, %v3451
    %v4256 = vpack.c.b16 %v3456, %v3454
    %v4257 = vpack.c.b16 %v3457, %v3455
    %v4258 = vpack.c.b16 %v3460, %v3458
    %v4259 = vpack.c.b16 %v3461, %v3459
    %v4260 = vpack.c.b16 %v3464, %v3462
    %v4261 = vpack.c.b16 %v3465, %v3463
    %v4262 = vpack.c.b16 %v3468, %v3466
    %v4263 = vpack.c.b16 %v3469, %v3467
    %v4264 = vpack.c.b16 %v3472, %v3470
    %v4265 = vpack.c.b16 %v3473, %v3471
    %v4266 = vpack.c.b16 %v3476, %v3474
    %v4267 = vpack.c.b16 %v3477, %v3475
    %v4268 = vpack.c.b16 %v3480, %v3478
    %v4269 = vpack.c.b16 %v3481, %v3479
    %v4270 = vpack.c.b16 %v3484, %v3482
    %v4271 = vpack.c.b16 %v3485, %v3483
    %v4272 = vpack.c.b16 %v3488, %v3486
    %v4273 = vpack.c.b16 %v3489, %v3487
    %v4274 = vpack.c.b16 %v3492, %v3490
    %v4275 = vpack.c.b16 %v3493, %v3491
    %v4276 = vpack.c.b16 %v3496, %v3494
    %v4277 = vpack.c.b16 %v3497, %v3495
    %v4278 = vpack.c.b16 %v3500, %v3498
    %v4279 = vpack.c.b16 %v3501, %v3499
    %v4280 = vpack.c.b16 %v3504, %v3502
    %v4281 = vpack.c.b16 %v3505, %v3503
    %v4282 = vpack.c.b16 %v3508, %v3506
    %v4283 = vpack.c.b16 %v3509, %v3507
    %v4284 = vpack.c.b16 %v3512, %v3510
    %v4285 = vpack.c.b16 %v3513, %v3511
    %v4286 = vpack.c.b16 %v3516, %v3514
    %v4287 = vpack.c.b16 %v3517, %v3515
    %v4288 = vpack.c.b16 %v3520, %v3518
    %v4289 = vpack.c.b16 %v3521, %v3519
    %5058 = vmatprep.subr.bf16.mxu0 %v3523
    %5059 = vmatpush1.bf16.msra.mxu0 %v3522
    %5060 = vmatprep.subr.bf16.mxu0 %v3525
    %5061 = vmatpush1.bf16.msra.mxu0 %v3524
    %5062 = vmatprep.subr.bf16.mxu0 %v3527
    %5063 = vmatpush1.bf16.msra.mxu0 %v3526
    %5064 = vmatprep.subr.bf16.mxu0 %v3529
    %5065 = vmatpush1.bf16.msra.mxu0 %v3528
    %5066 = vmatprep.subr.bf16.mxu0 %v3531
    %5067 = vmatpush1.bf16.msra.mxu0 %v3530
    %5068 = vmatprep.subr.bf16.mxu0 %v3533
    %5069 = vmatpush1.bf16.msra.mxu0 %v3532
    %5070 = vmatprep.subr.bf16.mxu0 %v3535
    %5071 = vmatpush1.bf16.msra.mxu0 %v3534
    %5072 = vmatprep.subr.bf16.mxu0 %v3537
    %5073 = vmatpush1.bf16.msra.mxu0 %v3536
    %5074 = vmatprep.subr.bf16.mxu0 %v3539
    %5075 = vmatpush1.bf16.msra.mxu0 %v3538
    %5076 = vmatprep.subr.bf16.mxu0 %v3541
    %5077 = vmatpush1.bf16.msra.mxu0 %v3540
    %5078 = vmatprep.subr.bf16.mxu0 %v3543
    %5079 = vmatpush1.bf16.msra.mxu0 %v3542
    %5080 = vmatprep.subr.bf16.mxu0 %v3545
    %5081 = vmatpush1.bf16.msra.mxu0 %v3544
    %5082 = vmatprep.subr.bf16.mxu0 %v3547
    %5083 = vmatpush1.bf16.msra.mxu0 %v3546
    %5084 = vmatprep.subr.bf16.mxu0 %v3549
    %5085 = vmatpush1.bf16.msra.mxu0 %v3548
    %5086 = vmatprep.subr.bf16.mxu0 %v3551
    %5087 = vmatpush1.bf16.msra.mxu0 %v3550
    %5088 = vmatprep.subr.bf16.mxu0 %v3553
    %5089 = vmatpush1.bf16.msra.mxu0 %v3552
    %5090 = vmatprep.mubr.bf16.mxu0 %v913
    %5091 = vmatmul.mubr.bf16.gmra.mrb[0].mxu0 %v899
    %v5092 = vpop.f32.mrb[0].mxu0
    %v5093 = vadd.f32 0.0, %v5092
    %v5094 = vpop.f32.mrb[0].mxu0
    %v5095 = vadd.f32 0.0, %v5094
    %v5096 = vpop.f32.mrb[0].mxu0
    %v5097 = vpop.f32.mrb[0].mxu0
    %5098 = vdwg.mxu0
    %5099 = vmatprep.subr.bf16.mxu0 %v3555
    %5100 = vmatpush1.bf16.msra.mxu0 %v3554
    %5101 = vmatprep.subr.bf16.mxu0 %v3557
    %5102 = vmatpush1.bf16.msra.mxu0 %v3556
    %5103 = vmatprep.subr.bf16.mxu0 %v3559
    %5104 = vmatpush1.bf16.msra.mxu0 %v3558
    %5105 = vmatprep.subr.bf16.mxu0 %v3561
    %5106 = vmatpush1.bf16.msra.mxu0 %v3560
    %5107 = vmatprep.subr.bf16.mxu0 %v3563
    %5108 = vmatpush1.bf16.msra.mxu0 %v3562
    %5109 = vmatprep.subr.bf16.mxu0 %v3565
    %5110 = vmatpush1.bf16.msra.mxu0 %v3564
    %5111 = vmatprep.subr.bf16.mxu0 %v3567
    %5112 = vmatpush1.bf16.msra.mxu0 %v3566
    %5113 = vmatprep.subr.bf16.mxu0 %v3569
    %5114 = vmatpush1.bf16.msra.mxu0 %v3568
    %5115 = vmatprep.subr.bf16.mxu0 %v3571
    %5116 = vmatpush1.bf16.msra.mxu0 %v3570
    %5117 = vmatprep.subr.bf16.mxu0 %v3573
    %5118 = vmatpush1.bf16.msra.mxu0 %v3572
    %5119 = vmatprep.subr.bf16.mxu0 %v3575
    %5120 = vmatpush1.bf16.msra.mxu0 %v3574
    %5121 = vmatprep.subr.bf16.mxu0 %v3577
    %5122 = vmatpush1.bf16.msra.mxu0 %v3576
    %5123 = vmatprep.subr.bf16.mxu0 %v3579
    %5124 = vmatpush1.bf16.msra.mxu0 %v3578
    %5125 = vmatprep.subr.bf16.mxu0 %v3581
    %5126 = vmatpush1.bf16.msra.mxu0 %v3580
    %5127 = vmatprep.subr.bf16.mxu0 %v3583
    %5128 = vmatpush1.bf16.msra.mxu0 %v3582
    %5129 = vmatprep.subr.bf16.mxu0 %v3585
    %5130 = vmatpush1.bf16.msra.mxu0 %v3584
    %5131 = vmatprep.mubr.bf16.mxu0 %v923
    %5132 = vmatmul.mubr.bf16.gmra.mrb[0].mxu0 %v921
    %v5133 = vpop.f32.mrb[0].mxu0
    %v5134 = vadd.f32 %v5093, %v5133
    %v5135 = vpop.f32.mrb[0].mxu0
    %v5136 = vadd.f32 %v5095, %v5135
    %v5137 = vpop.f32.mrb[0].mxu0
    %v5138 = vpop.f32.mrb[0].mxu0
    %5139 = vdwg.mxu0
    %5140 = vmatprep.subr.bf16.mxu0 %v3587
    %5141 = vmatpush1.bf16.msra.mxu0 %v3586
    %5142 = vmatprep.subr.bf16.mxu0 %v3589
    %5143 = vmatpush1.bf16.msra.mxu0 %v3588
    %5144 = vmatprep.subr.bf16.mxu0 %v3591
    %5145 = vmatpush1.bf16.msra.mxu0 %v3590
    %5146 = vmatprep.subr.bf16.mxu0 %v3593
    %5147 = vmatpush1.bf16.msra.mxu0 %v3592
    %5148 = vmatprep.subr.bf16.mxu0 %v3595
    %5149 = vmatpush1.bf16.msra.mxu0 %v3594
    %5150 = vmatprep.subr.bf16.mxu0 %v3597
    %5151 = vmatpush1.bf16.msra.mxu0 %v3596
    %5152 = vmatprep.subr.bf16.mxu0 %v3599
    %5153 = vmatpush1.bf16.msra.mxu0 %v3598
    %5154 = vmatprep.subr.bf16.mxu0 %v3601
    %5155 = vmatpush1.bf16.msra.mxu0 %v3600
    %5156 = vmatprep.subr.bf16.mxu0 %v3603
    %5157 = vmatpush1.bf16.msra.mxu0 %v3602
    %5158 = vmatprep.subr.bf16.mxu0 %v3605
    %5159 = vmatpush1.bf16.msra.mxu0 %v3604
    %5160 = vmatprep.subr.bf16.mxu0 %v3607
    %5161 = vmatpush1.bf16.msra.mxu0 %v3606
    %5162 = vmatprep.subr.bf16.mxu0 %v3609
    %5163 = vmatpush1.bf16.msra.mxu0 %v3608
    %5164 = vmatprep.subr.bf16.mxu0 %v3611
    %5165 = vmatpush1.bf16.msra.mxu0 %v3610
    %5166 = vmatprep.subr.bf16.mxu0 %v3613
    %5167 = vmatpush1.bf16.msra.mxu0 %v3612
    %5168 = vmatprep.subr.bf16.mxu0 %v3615
    %5169 = vmatpush1.bf16.msra.mxu0 %v3614
    %5170 = vmatprep.subr.bf16.mxu0 %v3617
    %5171 = vmatpush1.bf16.msra.mxu0 %v3616
    %5172 = vmatprep.mubr.bf16.mxu0 %v920
    %5173 = vmatmul.mubr.bf16.gmra.mrb[0].mxu0 %v906
    %v5174 = vpop.f32.mrb[0].mxu0
    %v5175 = vadd.f32 %v5134, %v5174
    %v5176 = vpop.f32.mrb[0].mxu0
    %v5177 = vadd.f32 %v5136, %v5176
    %v5178 = vpop.f32.mrb[0].mxu0
    %v5179 = vpop.f32.mrb[0].mxu0
    %5180 = vdwg.mxu0
    %5181 = vmatprep.subr.bf16.mxu0 %v3619
    %5182 = vmatpush1.bf16.msra.mxu0 %v3618
    %5183 = vmatprep.subr.bf16.mxu0 %v3621
    %5184 = vmatpush1.bf16.msra.mxu0 %v3620
    %5185 = vmatprep.subr.bf16.mxu0 %v3623
    %5186 = vmatpush1.bf16.msra.mxu0 %v3622
    %5187 = vmatprep.subr.bf16.mxu0 %v3625
    %5188 = vmatpush1.bf16.msra.mxu0 %v3624
    %5189 = vmatprep.subr.bf16.mxu0 %v3627
    %5190 = vmatpush1.bf16.msra.mxu0 %v3626
    %5191 = vmatprep.subr.bf16.mxu0 %v3629
    %5192 = vmatpush1.bf16.msra.mxu0 %v3628
    %5193 = vmatprep.subr.bf16.mxu0 %v3631
    %5194 = vmatpush1.bf16.msra.mxu0 %v3630
    %5195 = vmatprep.subr.bf16.mxu0 %v3633
    %5196 = vmatpush1.bf16.msra.mxu0 %v3632
    %5197 = vmatprep.subr.bf16.mxu0 %v3635
    %5198 = vmatpush1.bf16.msra.mxu0 %v3634
    %5199 = vmatprep.subr.bf16.mxu0 %v3637
    %5200 = vmatpush1.bf16.msra.mxu0 %v3636
    %5201 = vmatprep.subr.bf16.mxu0 %v3639
    %5202 = vmatpush1.bf16.msra.mxu0 %v3638
    %5203 = vmatprep.subr.bf16.mxu0 %v3641
    %5204 = vmatpush1.bf16.msra.mxu0 %v3640
    %5205 = vmatprep.subr.bf16.mxu0 %v3643
    %5206 = vmatpush1.bf16.msra.mxu0 %v3642
    %5207 = vmatprep.subr.bf16.mxu0 %v3645
    %5208 = vmatpush1.bf16.msra.mxu0 %v3644
    %5209 = vmatprep.subr.bf16.mxu0 %v3647
    %5210 = vmatpush1.bf16.msra.mxu0 %v3646
    %5211 = vmatprep.subr.bf16.mxu0 %v3649
    %5212 = vmatpush1.bf16.msra.mxu0 %v3648
    %5213 = vmatprep.mubr.bf16.mxu0 %v924
    %5214 = vmatmul.mubr.bf16.gmra.mrb[0].mxu0 %v922
    %v5215 = vpop.f32.mrb[0].mxu0
    %v5216 = vadd.f32 %v5175, %v5215
    %v5217 = vpop.f32.mrb[0].mxu0
    %v5218 = vadd.f32 %v5177, %v5217
    %v5219 = vpop.f32.mrb[0].mxu0
    %v5220 = vpop.f32.mrb[0].mxu0
    %5221 = vdwg.mxu0
    %5222 = vmatprep.subr.bf16.mxu0 %v3651
    %5223 = vmatpush1.bf16.msra.mxu0 %v3650
    %5224 = vmatprep.subr.bf16.mxu0 %v3653
    %5225 = vmatpush1.bf16.msra.mxu0 %v3652
    %5226 = vmatprep.subr.bf16.mxu0 %v3655
    %5227 = vmatpush1.bf16.msra.mxu0 %v3654
    %5228 = vmatprep.subr.bf16.mxu0 %v3657
    %5229 = vmatpush1.bf16.msra.mxu0 %v3656
    %5230 = vmatprep.subr.bf16.mxu0 %v3659
    %5231 = vmatpush1.bf16.msra.mxu0 %v3658
    %5232 = vmatprep.subr.bf16.mxu0 %v3661
    %5233 = vmatpush1.bf16.msra.mxu0 %v3660
    %5234 = vmatprep.subr.bf16.mxu0 %v3663
    %5235 = vmatpush1.bf16.msra.mxu0 %v3662
    %5236 = vmatprep.subr.bf16.mxu0 %v3665
    %5237 = vmatpush1.bf16.msra.mxu0 %v3664
    %5238 = vmatprep.subr.bf16.mxu0 %v3667
    %5239 = vmatpush1.bf16.msra.mxu0 %v3666
    %5240 = vmatprep.subr.bf16.mxu0 %v3669
    %5241 = vmatpush1.bf16.msra.mxu0 %v3668
    %5242 = vmatprep.subr.bf16.mxu0 %v3671
    %5243 = vmatpush1.bf16.msra.mxu0 %v3670
    %5244 = vmatprep.subr.bf16.mxu0 %v3673
    %5245 = vmatpush1.bf16.msra.mxu0 %v3672
    %5246 = vmatprep.subr.bf16.mxu0 %v3675
    %5247 = vmatpush1.bf16.msra.mxu0 %v3674
    %5248 = vmatprep.subr.bf16.mxu0 %v3677
    %5249 = vmatpush1.bf16.msra.mxu0 %v3676
    %5250 = vmatprep.subr.bf16.mxu0 %v3679
    %5251 = vmatpush1.bf16.msra.mxu0 %v3678
    %5252 = vmatprep.subr.bf16.mxu0 %v3681
    %5253 = vmatpush1.bf16.msra.mxu0 %v3680
    %5254 = vmatprep.mubr.bf16.mxu0 %v962
    %5255 = vmatmul.mubr.bf16.gmra.mrb[0].mxu0 %v948
    %v5256 = vpop.f32.mrb[0].mxu0
    %v5257 = vadd.f32 %v5216, %v5256
    %v5258 = vpop.f32.mrb[0].mxu0
    %v5259 = vadd.f32 %v5218, %v5258
    %v5260 = vpop.f32.mrb[0].mxu0
    %v5261 = vpop.f32.mrb[0].mxu0
    %5262 = vdwg.mxu0
    %5263 = vmatprep.subr.bf16.mxu0 %v3683
    %5264 = vmatpush1.bf16.msra.mxu0 %v3682
    %5265 = vmatprep.subr.bf16.mxu0 %v3685
    %5266 = vmatpush1.bf16.msra.mxu0 %v3684
    %5267 = vmatprep.subr.bf16.mxu0 %v3687
    %5268 = vmatpush1.bf16.msra.mxu0 %v3686
    %5269 = vmatprep.subr.bf16.mxu0 %v3689
    %5270 = vmatpush1.bf16.msra.mxu0 %v3688
    %5271 = vmatprep.subr.bf16.mxu0 %v3691
    %5272 = vmatpush1.bf16.msra.mxu0 %v3690
    %5273 = vmatprep.subr.bf16.mxu0 %v3693
    %5274 = vmatpush1.bf16.msra.mxu0 %v3692
    %5275 = vmatprep.subr.bf16.mxu0 %v3695
    %5276 = vmatpush1.bf16.msra.mxu0 %v3694
    %5277 = vmatprep.subr.bf16.mxu0 %v3697
    %5278 = vmatpush1.bf16.msra.mxu0 %v3696
    %5279 = vmatprep.subr.bf16.mxu0 %v3699
    %5280 = vmatpush1.bf16.msra.mxu0 %v3698
    %5281 = vmatprep.subr.bf16.mxu0 %v3701
    %5282 = vmatpush1.bf16.msra.mxu0 %v3700
    %5283 = vmatprep.subr.bf16.mxu0 %v3703
    %5284 = vmatpush1.bf16.msra.mxu0 %v3702
    %5285 = vmatprep.subr.bf16.mxu0 %v3705
    %5286 = vmatpush1.bf16.msra.mxu0 %v3704
    %5287 = vmatprep.subr.bf16.mxu0 %v3707
    %5288 = vmatpush1.bf16.msra.mxu0 %v3706
    %5289 = vmatprep.subr.bf16.mxu0 %v3709
    %5290 = vmatpush1.bf16.msra.mxu0 %v3708
    %5291 = vmatprep.subr.bf16.mxu0 %v3711
    %5292 = vmatpush1.bf16.msra.mxu0 %v3710
    %5293 = vmatprep.subr.bf16.mxu0 %v3713
    %5294 = vmatpush1.bf16.msra.mxu0 %v3712
    %5295 = vmatprep.mubr.bf16.mxu0 %v972
    %5296 = vmatmul.mubr.bf16.gmra.mrb[0].mxu0 %v970
    %v5297 = vpop.f32.mrb[0].mxu0
    %v5298 = vadd.f32 %v5257, %v5297
    %v5299 = vpop.f32.mrb[0].mxu0
    %v5300 = vadd.f32 %v5259, %v5299
    %v5301 = vpop.f32.mrb[0].mxu0
    %v5302 = vpop.f32.mrb[0].mxu0
    %5303 = vdwg.mxu0
    %5304 = vmatprep.subr.bf16.mxu0 %v3715
    %5305 = vmatpush1.bf16.msra.mxu0 %v3714
    %5306 = vmatprep.subr.bf16.mxu0 %v3717
    %5307 = vmatpush1.bf16.msra.mxu0 %v3716
    %5308 = vmatprep.subr.bf16.mxu0 %v3719
    %5309 = vmatpush1.bf16.msra.mxu0 %v3718
    %5310 = vmatprep.subr.bf16.mxu0 %v3721
    %5311 = vmatpush1.bf16.msra.mxu0 %v3720
    %5312 = vmatprep.subr.bf16.mxu0 %v3723
    %5313 = vmatpush1.bf16.msra.mxu0 %v3722
    %5314 = vmatprep.subr.bf16.mxu0 %v3725
    %5315 = vmatpush1.bf16.msra.mxu0 %v3724
    %5316 = vmatprep.subr.bf16.mxu0 %v3727
    %5317 = vmatpush1.bf16.msra.mxu0 %v3726
    %5318 = vmatprep.subr.bf16.mxu0 %v3729
    %5319 = vmatpush1.bf16.msra.mxu0 %v3728
    %5320 = vmatprep.subr.bf16.mxu0 %v3731
    %5321 = vmatpush1.bf16.msra.mxu0 %v3730
    %5322 = vmatprep.subr.bf16.mxu0 %v3733
    %5323 = vmatpush1.bf16.msra.mxu0 %v3732
    %5324 = vmatprep.subr.bf16.mxu0 %v3735
    %5325 = vmatpush1.bf16.msra.mxu0 %v3734
    %5326 = vmatprep.subr.bf16.mxu0 %v3737
    %5327 = vmatpush1.bf16.msra.mxu0 %v3736
    %5328 = vmatprep.subr.bf16.mxu0 %v3739
    %5329 = vmatpush1.bf16.msra.mxu0 %v3738
    %5330 = vmatprep.subr.bf16.mxu0 %v3741
    %5331 = vmatpush1.bf16.msra.mxu0 %v3740
    %5332 = vmatprep.subr.bf16.mxu0 %v3743
    %5333 = vmatpush1.bf16.msra.mxu0 %v3742
    %5334 = vmatprep.subr.bf16.mxu0 %v3745
    %5335 = vmatpush1.bf16.msra.mxu0 %v3744
    %5336 = vmatprep.mubr.bf16.mxu0 %v969
    %5337 = vmatmul.mubr.bf16.gmra.mrb[0].mxu0 %v955
    %v5338 = vpop.f32.mrb[0].mxu0
    %v5339 = vadd.f32 %v5298, %v5338
    %v5340 = vpop.f32.mrb[0].mxu0
    %v5341 = vadd.f32 %v5300, %v5340
    %v5342 = vpop.f32.mrb[0].mxu0
    %v5343 = vpop.f32.mrb[0].mxu0
    %5344 = vdwg.mxu0
    %5345 = vmatprep.subr.bf16.mxu0 %v3747
    %5346 = vmatpush1.bf16.msra.mxu0 %v3746
    %5347 = vmatprep.subr.bf16.mxu0 %v3749
    %5348 = vmatpush1.bf16.msra.mxu0 %v3748
    %5349 = vmatprep.subr.bf16.mxu0 %v3751
    %5350 = vmatpush1.bf16.msra.mxu0 %v3750
    %5351 = vmatprep.subr.bf16.mxu0 %v3753
    %5352 = vmatpush1.bf16.msra.mxu0 %v3752
    %5353 = vmatprep.subr.bf16.mxu0 %v3755
    %5354 = vmatpush1.bf16.msra.mxu0 %v3754
    %5355 = vmatprep.subr.bf16.mxu0 %v3757
    %5356 = vmatpush1.bf16.msra.mxu0 %v3756
    %5357 = vmatprep.subr.bf16.mxu0 %v3759
    %5358 = vmatpush1.bf16.msra.mxu0 %v3758
    %5359 = vmatprep.subr.bf16.mxu0 %v3761
    %5360 = vmatpush1.bf16.msra.mxu0 %v3760
    %5361 = vmatprep.subr.bf16.mxu0 %v3763
    %5362 = vmatpush1.bf16.msra.mxu0 %v3762
    %5363 = vmatprep.subr.bf16.mxu0 %v3765
    %5364 = vmatpush1.bf16.msra.mxu0 %v3764
    %5365 = vmatprep.subr.bf16.mxu0 %v3767
    %5366 = vmatpush1.bf16.msra.mxu0 %v3766
    %5367 = vmatprep.subr.bf16.mxu0 %v3769
    %5368 = vmatpush1.bf16.msra.mxu0 %v3768
    %5369 = vmatprep.subr.bf16.mxu0 %v3771
    %5370 = vmatpush1.bf16.msra.mxu0 %v3770
    %5371 = vmatprep.subr.bf16.mxu0 %v3773
    %5372 = vmatpush1.bf16.msra.mxu0 %v3772
    %5373 = vmatprep.subr.bf16.mxu0 %v3775
    %5374 = vmatpush1.bf16.msra.mxu0 %v3774
    %5375 = vmatprep.subr.bf16.mxu0 %v3777
    %5376 = vmatpush1.bf16.msra.mxu0 %v3776
    %5377 = vmatprep.mubr.bf16.mxu0 %v973
    %5378 = vmatmul.mubr.bf16.gmra.mrb[0].mxu0 %v971
    %v5379 = vpop.f32.mrb[0].mxu0
    %v5380 = vadd.f32 %v5339, %v5379
    %v5381 = vpop.f32.mrb[0].mxu0
    %v5382 = vadd.f32 %v5341, %v5381
    %v5383 = vpop.f32.mrb[0].mxu0
    %v5384 = vpop.f32.mrb[0].mxu0
    %5385 = vdwg.mxu0
    %5386 = vmatprep.subr.bf16.mxu0 %v3779
    %5387 = vmatpush1.bf16.msra.mxu0 %v3778
    %5388 = vmatprep.subr.bf16.mxu0 %v3781
    %5389 = vmatpush1.bf16.msra.mxu0 %v3780
    %5390 = vmatprep.subr.bf16.mxu0 %v3783
    %5391 = vmatpush1.bf16.msra.mxu0 %v3782
    %5392 = vmatprep.subr.bf16.mxu0 %v3785
    %5393 = vmatpush1.bf16.msra.mxu0 %v3784
    %5394 = vmatprep.subr.bf16.mxu0 %v3787
    %5395 = vmatpush1.bf16.msra.mxu0 %v3786
    %5396 = vmatprep.subr.bf16.mxu0 %v3789
    %5397 = vmatpush1.bf16.msra.mxu0 %v3788
    %5398 = vmatprep.subr.bf16.mxu0 %v3791
    %5399 = vmatpush1.bf16.msra.mxu0 %v3790
    %5400 = vmatprep.subr.bf16.mxu0 %v3793
    %5401 = vmatpush1.bf16.msra.mxu0 %v3792
    %5402 = vmatprep.subr.bf16.mxu0 %v3795
    %5403 = vmatpush1.bf16.msra.mxu0 %v3794
    %5404 = vmatprep.subr.bf16.mxu0 %v3797
    %5405 = vmatpush1.bf16.msra.mxu0 %v3796
    %5406 = vmatprep.subr.bf16.mxu0 %v3799
    %5407 = vmatpush1.bf16.msra.mxu0 %v3798
    %5408 = vmatprep.subr.bf16.mxu0 %v3801
    %5409 = vmatpush1.bf16.msra.mxu0 %v3800
    %5410 = vmatprep.subr.bf16.mxu0 %v3803
    %5411 = vmatpush1.bf16.msra.mxu0 %v3802
    %5412 = vmatprep.subr.bf16.mxu0 %v3805
    %5413 = vmatpush1.bf16.msra.mxu0 %v3804
    %5414 = vmatprep.subr.bf16.mxu0 %v3807
    %5415 = vmatpush1.bf16.msra.mxu0 %v3806
    %5416 = vmatprep.subr.bf16.mxu0 %v3809
    %5417 = vmatpush1.bf16.msra.mxu0 %v3808
    %5418 = vmatprep.mubr.bf16.mxu0 %v1011
    %5419 = vmatmul.mubr.bf16.gmra.mrb[0].mxu0 %v997
    %v5420 = vpop.f32.mrb[0].mxu0
    %v5421 = vadd.f32 %v5380, %v5420
    %v5422 = vpop.f32.mrb[0].mxu0
    %v5423 = vadd.f32 %v5382, %v5422
    %v5424 = vpop.f32.mrb[0].mxu0
    %v5425 = vpop.f32.mrb[0].mxu0
    %5426 = vdwg.mxu0
    %5427 = vmatprep.subr.bf16.mxu0 %v3811
    %5428 = vmatpush1.bf16.msra.mxu0 %v3810
    %5429 = vmatprep.subr.bf16.mxu0 %v3813
    %5430 = vmatpush1.bf16.msra.mxu0 %v3812
    %5431 = vmatprep.subr.bf16.mxu0 %v3815
    %5432 = vmatpush1.bf16.msra.mxu0 %v3814
    %5433 = vmatprep.subr.bf16.mxu0 %v3817
    %5434 = vmatpush1.bf16.msra.mxu0 %v3816
    %5435 = vmatprep.subr.bf16.mxu0 %v3819
    %5436 = vmatpush1.bf16.msra.mxu0 %v3818
    %5437 = vmatprep.subr.bf16.mxu0 %v3821
    %5438 = vmatpush1.bf16.msra.mxu0 %v3820
    %5439 = vmatprep.subr.bf16.mxu0 %v3823
    %5440 = vmatpush1.bf16.msra.mxu0 %v3822
    %5441 = vmatprep.subr.bf16.mxu0 %v3825
    %5442 = vmatpush1.bf16.msra.mxu0 %v3824
    %5443 = vmatprep.subr.bf16.mxu0 %v3827
    %5444 = vmatpush1.bf16.msra.mxu0 %v3826
    %5445 = vmatprep.subr.bf16.mxu0 %v3829
    %5446 = vmatpush1.bf16.msra.mxu0 %v3828
    %5447 = vmatprep.subr.bf16.mxu0 %v3831
    %5448 = vmatpush1.bf16.msra.mxu0 %v3830
    %5449 = vmatprep.subr.bf16.mxu0 %v3833
    %5450 = vmatpush1.bf16.msra.mxu0 %v3832
    %5451 = vmatprep.subr.bf16.mxu0 %v3835
    %5452 = vmatpush1.bf16.msra.mxu0 %v3834
    %5453 = vmatprep.subr.bf16.mxu0 %v3837
    %5454 = vmatpush1.bf16.msra.mxu0 %v3836
    %5455 = vmatprep.subr.bf16.mxu0 %v3839
    %5456 = vmatpush1.bf16.msra.mxu0 %v3838
    %5457 = vmatprep.subr.bf16.mxu0 %v3841
    %5458 = vmatpush1.bf16.msra.mxu0 %v3840
    %5459 = vmatprep.mubr.bf16.mxu0 %v1021
    %5460 = vmatmul.mubr.bf16.gmra.mrb[0].mxu0 %v1019
    %v5461 = vpop.f32.mrb[0].mxu0
    %v5462 = vadd.f32 %v5421, %v5461
    %v5463 = vpop.f32.mrb[0].mxu0
    %v5464 = vadd.f32 %v5423, %v5463
    %v5465 = vpop.f32.mrb[0].mxu0
    %v5466 = vpop.f32.mrb[0].mxu0
    %5467 = vdwg.mxu0
    %5468 = vmatprep.subr.bf16.mxu0 %v3843
    %5469 = vmatpush1.bf16.msra.mxu0 %v3842
    %5470 = vmatprep.subr.bf16.mxu0 %v3845
    %5471 = vmatpush1.bf16.msra.mxu0 %v3844
    %5472 = vmatprep.subr.bf16.mxu0 %v3847
    %5473 = vmatpush1.bf16.msra.mxu0 %v3846
    %5474 = vmatprep.subr.bf16.mxu0 %v3849
    %5475 = vmatpush1.bf16.msra.mxu0 %v3848
    %5476 = vmatprep.subr.bf16.mxu0 %v3851
    %5477 = vmatpush1.bf16.msra.mxu0 %v3850
    %5478 = vmatprep.subr.bf16.mxu0 %v3853
    %5479 = vmatpush1.bf16.msra.mxu0 %v3852
    %5480 = vmatprep.subr.bf16.mxu0 %v3855
    %5481 = vmatpush1.bf16.msra.mxu0 %v3854
    %5482 = vmatprep.subr.bf16.mxu0 %v3857
    %5483 = vmatpush1.bf16.msra.mxu0 %v3856
    %5484 = vmatprep.subr.bf16.mxu0 %v3859
    %5485 = vmatpush1.bf16.msra.mxu0 %v3858
    %5486 = vmatprep.subr.bf16.mxu0 %v3861
    %5487 = vmatpush1.bf16.msra.mxu0 %v3860
    %5488 = vmatprep.subr.bf16.mxu0 %v3863
    %5489 = vmatpush1.bf16.msra.mxu0 %v3862
    %5490 = vmatprep.subr.bf16.mxu0 %v3865
    %5491 = vmatpush1.bf16.msra.mxu0 %v3864
    %5492 = vmatprep.subr.bf16.mxu0 %v3867
    %5493 = vmatpush1.bf16.msra.mxu0 %v3866
    %5494 = vmatprep.subr.bf16.mxu0 %v3869
    %5495 = vmatpush1.bf16.msra.mxu0 %v3868
    %5496 = vmatprep.subr.bf16.mxu0 %v3871
    %5497 = vmatpush1.bf16.msra.mxu0 %v3870
    %5498 = vmatprep.subr.bf16.mxu0 %v3873
    %5499 = vmatpush1.bf16.msra.mxu0 %v3872
    %5500 = vmatprep.mubr.bf16.mxu0 %v1018
    %5501 = vmatmul.mubr.bf16.gmra.mrb[0].mxu0 %v1004
    %v5502 = vpop.f32.mrb[0].mxu0
    %v5503 = vadd.f32 %v5462, %v5502
    %v5504 = vpop.f32.mrb[0].mxu0
    %v5505 = vadd.f32 %v5464, %v5504
    %v5506 = vpop.f32.mrb[0].mxu0
    %v5507 = vpop.f32.mrb[0].mxu0
    %5508 = vdwg.mxu0
    %5509 = vmatprep.subr.bf16.mxu0 %v3875
    %5510 = vmatpush1.bf16.msra.mxu0 %v3874
    %5511 = vmatprep.subr.bf16.mxu0 %v3877
    %5512 = vmatpush1.bf16.msra.mxu0 %v3876
    %5513 = vmatprep.subr.bf16.mxu0 %v3879
    %5514 = vmatpush1.bf16.msra.mxu0 %v3878
    %5515 = vmatprep.subr.bf16.mxu0 %v3881
    %5516 = vmatpush1.bf16.msra.mxu0 %v3880
    %5517 = vmatprep.subr.bf16.mxu0 %v3883
    %5518 = vmatpush1.bf16.msra.mxu0 %v3882
    %5519 = vmatprep.subr.bf16.mxu0 %v3885
    %5520 = vmatpush1.bf16.msra.mxu0 %v3884
    %5521 = vmatprep.subr.bf16.mxu0 %v3887
    %5522 = vmatpush1.bf16.msra.mxu0 %v3886
    %5523 = vmatprep.subr.bf16.mxu0 %v3889
    %5524 = vmatpush1.bf16.msra.mxu0 %v3888
    %5525 = vmatprep.subr.bf16.mxu0 %v3891
    %5526 = vmatpush1.bf16.msra.mxu0 %v3890
    %5527 = vmatprep.subr.bf16.mxu0 %v3893
    %5528 = vmatpush1.bf16.msra.mxu0 %v3892
    %5529 = vmatprep.subr.bf16.mxu0 %v3895
    %5530 = vmatpush1.bf16.msra.mxu0 %v3894
    %5531 = vmatprep.subr.bf16.mxu0 %v3897
    %5532 = vmatpush1.bf16.msra.mxu0 %v3896
    %5533 = vmatprep.subr.bf16.mxu0 %v3899
    %5534 = vmatpush1.bf16.msra.mxu0 %v3898
    %5535 = vmatprep.subr.bf16.mxu0 %v3901
    %5536 = vmatpush1.bf16.msra.mxu0 %v3900
    %5537 = vmatprep.subr.bf16.mxu0 %v3903
    %5538 = vmatpush1.bf16.msra.mxu0 %v3902
    %5539 = vmatprep.subr.bf16.mxu0 %v3905
    %5540 = vmatpush1.bf16.msra.mxu0 %v3904
    %5541 = vmatprep.mubr.bf16.mxu0 %v1022
    %5542 = vmatmul.mubr.bf16.gmra.mrb[0].mxu0 %v1020
    %v5543 = vpop.f32.mrb[0].mxu0
    %v5544 = vadd.f32 %v5503, %v5543
    %v5545 = vpop.f32.mrb[0].mxu0
    %v5546 = vadd.f32 %v5505, %v5545
    %v5547 = vpop.f32.mrb[0].mxu0
    %v5548 = vpop.f32.mrb[0].mxu0
    %5549 = vdwg.mxu0
    %5550 = vmatprep.subr.bf16.mxu0 %v3907
    %5551 = vmatpush1.bf16.msra.mxu0 %v3906
    %5552 = vmatprep.subr.bf16.mxu0 %v3909
    %5553 = vmatpush1.bf16.msra.mxu0 %v3908
    %5554 = vmatprep.subr.bf16.mxu0 %v3911
    %5555 = vmatpush1.bf16.msra.mxu0 %v3910
    %5556 = vmatprep.subr.bf16.mxu0 %v3913
    %5557 = vmatpush1.bf16.msra.mxu0 %v3912
    %5558 = vmatprep.subr.bf16.mxu0 %v3915
    %5559 = vmatpush1.bf16.msra.mxu0 %v3914
    %5560 = vmatprep.subr.bf16.mxu0 %v3917
    %5561 = vmatpush1.bf16.msra.mxu0 %v3916
    %5562 = vmatprep.subr.bf16.mxu0 %v3919
    %5563 = vmatpush1.bf16.msra.mxu0 %v3918
    %5564 = vmatprep.subr.bf16.mxu0 %v3921
    %5565 = vmatpush1.bf16.msra.mxu0 %v3920
    %5566 = vmatprep.subr.bf16.mxu0 %v3923
    %5567 = vmatpush1.bf16.msra.mxu0 %v3922
    %5568 = vmatprep.subr.bf16.mxu0 %v3925
    %5569 = vmatpush1.bf16.msra.mxu0 %v3924
    %5570 = vmatprep.subr.bf16.mxu0 %v3927
    %5571 = vmatpush1.bf16.msra.mxu0 %v3926
    %5572 = vmatprep.subr.bf16.mxu0 %v3929
    %5573 = vmatpush1.bf16.msra.mxu0 %v3928
    %5574 = vmatprep.subr.bf16.mxu0 %v3931
    %5575 = vmatpush1.bf16.msra.mxu0 %v3930
    %5576 = vmatprep.subr.bf16.mxu0 %v3933
    %5577 = vmatpush1.bf16.msra.mxu0 %v3932
    %5578 = vmatprep.subr.bf16.mxu0 %v3935
    %5579 = vmatpush1.bf16.msra.mxu0 %v3934
    %5580 = vmatprep.subr.bf16.mxu0 %v3937
    %5581 = vmatpush1.bf16.msra.mxu0 %v3936
    %5582 = vmatprep.mubr.bf16.mxu0 %v1060
    %5583 = vmatmul.mubr.bf16.gmra.mrb[0].mxu0 %v1046
    %v5584 = vpop.f32.mrb[0].mxu0
    %v5585 = vadd.f32 %v5544, %v5584
    %v5586 = vpop.f32.mrb[0].mxu0
    %v5587 = vadd.f32 %v5546, %v5586
    %v5588 = vpop.f32.mrb[0].mxu0
    %v5589 = vpop.f32.mrb[0].mxu0
    %5590 = vdwg.mxu0
    %5591 = vmatprep.subr.bf16.mxu0 %v3939
    %5592 = vmatpush1.bf16.msra.mxu0 %v3938
    %5593 = vmatprep.subr.bf16.mxu0 %v3941
    %5594 = vmatpush1.bf16.msra.mxu0 %v3940
    %5595 = vmatprep.subr.bf16.mxu0 %v3943
    %5596 = vmatpush1.bf16.msra.mxu0 %v3942
    %5597 = vmatprep.subr.bf16.mxu0 %v3945
    %5598 = vmatpush1.bf16.msra.mxu0 %v3944
    %5599 = vmatprep.subr.bf16.mxu0 %v3947
    %5600 = vmatpush1.bf16.msra.mxu0 %v3946
    %5601 = vmatprep.subr.bf16.mxu0 %v3949
    %5602 = vmatpush1.bf16.msra.mxu0 %v3948
    %5603 = vmatprep.subr.bf16.mxu0 %v3951
    %5604 = vmatpush1.bf16.msra.mxu0 %v3950
    %5605 = vmatprep.subr.bf16.mxu0 %v3953
    %5606 = vmatpush1.bf16.msra.mxu0 %v3952
    %5607 = vmatprep.subr.bf16.mxu0 %v3955
    %5608 = vmatpush1.bf16.msra.mxu0 %v3954
    %5609 = vmatprep.subr.bf16.mxu0 %v3957
    %5610 = vmatpush1.bf16.msra.mxu0 %v3956
    %5611 = vmatprep.subr.bf16.mxu0 %v3959
    %5612 = vmatpush1.bf16.msra.mxu0 %v3958
    %5613 = vmatprep.subr.bf16.mxu0 %v3961
    %5614 = vmatpush1.bf16.msra.mxu0 %v3960
    %5615 = vmatprep.subr.bf16.mxu0 %v3963
    %5616 = vmatpush1.bf16.msra.mxu0 %v3962
    %5617 = vmatprep.subr.bf16.mxu0 %v3965
    %5618 = vmatpush1.bf16.msra.mxu0 %v3964
    %5619 = vmatprep.subr.bf16.mxu0 %v3967
    %5620 = vmatpush1.bf16.msra.mxu0 %v3966
    %5621 = vmatprep.subr.bf16.mxu0 %v3969
    %5622 = vmatpush1.bf16.msra.mxu0 %v3968
    %5623 = vmatprep.mubr.bf16.mxu0 %v1070
    %5624 = vmatmul.mubr.bf16.gmra.mrb[0].mxu0 %v1068
    %v5625 = vpop.f32.mrb[0].mxu0
    %v5626 = vadd.f32 %v5585, %v5625
    %v5627 = vpop.f32.mrb[0].mxu0
    %v5628 = vadd.f32 %v5587, %v5627
    %v5629 = vpop.f32.mrb[0].mxu0
    %v5630 = vpop.f32.mrb[0].mxu0
    %5631 = vdwg.mxu0
    %5632 = vmatprep.subr.bf16.mxu0 %v3971
    %5633 = vmatpush1.bf16.msra.mxu0 %v3970
    %5634 = vmatprep.subr.bf16.mxu0 %v3973
    %5635 = vmatpush1.bf16.msra.mxu0 %v3972
    %5636 = vmatprep.subr.bf16.mxu0 %v3975
    %5637 = vmatpush1.bf16.msra.mxu0 %v3974
    %5638 = vmatprep.subr.bf16.mxu0 %v3977
    %5639 = vmatpush1.bf16.msra.mxu0 %v3976
    %5640 = vmatprep.subr.bf16.mxu0 %v3979
    %5641 = vmatpush1.bf16.msra.mxu0 %v3978
    %5642 = vmatprep.subr.bf16.mxu0 %v3981
    %5643 = vmatpush1.bf16.msra.mxu0 %v3980
    %5644 = vmatprep.subr.bf16.mxu0 %v3983
    %5645 = vmatpush1.bf16.msra.mxu0 %v3982
    %5646 = vmatprep.subr.bf16.mxu0 %v3985
    %5647 = vmatpush1.bf16.msra.mxu0 %v3984
    %5648 = vmatprep.subr.bf16.mxu0 %v3987
    %5649 = vmatpush1.bf16.msra.mxu0 %v3986
    %5650 = vmatprep.subr.bf16.mxu0 %v3989
    %5651 = vmatpush1.bf16.msra.mxu0 %v3988
    %5652 = vmatprep.subr.bf16.mxu0 %v3991
    %5653 = vmatpush1.bf16.msra.mxu0 %v3990
    %5654 = vmatprep.subr.bf16.mxu0 %v3993
    %5655 = vmatpush1.bf16.msra.mxu0 %v3992
    %5656 = vmatprep.subr.bf16.mxu0 %v3995
    %5657 = vmatpush1.bf16.msra.mxu0 %v3994
    %5658 = vmatprep.subr.bf16.mxu0 %v3997
    %5659 = vmatpush1.bf16.msra.mxu0 %v3996
    %5660 = vmatprep.subr.bf16.mxu0 %v3999
    %5661 = vmatpush1.bf16.msra.mxu0 %v3998
    %5662 = vmatprep.subr.bf16.mxu0 %v4001
    %5663 = vmatpush1.bf16.msra.mxu0 %v4000
    %5664 = vmatprep.mubr.bf16.mxu0 %v1067
    %5665 = vmatmul.mubr.bf16.gmra.mrb[0].mxu0 %v1053
    %v5666 = vpop.f32.mrb[0].mxu0
    %v5667 = vadd.f32 %v5626, %v5666
    %v5668 = vpop.f32.mrb[0].mxu0
    %v5669 = vadd.f32 %v5628, %v5668
    %v5670 = vpop.f32.mrb[0].mxu0
    %v5671 = vpop.f32.mrb[0].mxu0
    %5672 = vdwg.mxu0
    %5673 = vmatprep.subr.bf16.mxu0 %v4003
    %5674 = vmatpush1.bf16.msra.mxu0 %v4002
    %5675 = vmatprep.subr.bf16.mxu0 %v4005
    %5676 = vmatpush1.bf16.msra.mxu0 %v4004
    %5677 = vmatprep.subr.bf16.mxu0 %v4007
    %5678 = vmatpush1.bf16.msra.mxu0 %v4006
    %5679 = vmatprep.subr.bf16.mxu0 %v4009
    %5680 = vmatpush1.bf16.msra.mxu0 %v4008
    %5681 = vmatprep.subr.bf16.mxu0 %v4011
    %5682 = vmatpush1.bf16.msra.mxu0 %v4010
    %5683 = vmatprep.subr.bf16.mxu0 %v4013
    %5684 = vmatpush1.bf16.msra.mxu0 %v4012
    %5685 = vmatprep.subr.bf16.mxu0 %v4015
    %5686 = vmatpush1.bf16.msra.mxu0 %v4014
    %5687 = vmatprep.subr.bf16.mxu0 %v4017
    %5688 = vmatpush1.bf16.msra.mxu0 %v4016
    %5689 = vmatprep.subr.bf16.mxu0 %v4019
    %5690 = vmatpush1.bf16.msra.mxu0 %v4018
    %5691 = vmatprep.subr.bf16.mxu0 %v4021
    %5692 = vmatpush1.bf16.msra.mxu0 %v4020
    %5693 = vmatprep.subr.bf16.mxu0 %v4023
    %5694 = vmatpush1.bf16.msra.mxu0 %v4022
    %5695 = vmatprep.subr.bf16.mxu0 %v4025
    %5696 = vmatpush1.bf16.msra.mxu0 %v4024
    %5697 = vmatprep.subr.bf16.mxu0 %v4027
    %5698 = vmatpush1.bf16.msra.mxu0 %v4026
    %5699 = vmatprep.subr.bf16.mxu0 %v4029
    %5700 = vmatpush1.bf16.msra.mxu0 %v4028
    %5701 = vmatprep.subr.bf16.mxu0 %v4031
    %5702 = vmatpush1.bf16.msra.mxu0 %v4030
    %5703 = vmatprep.subr.bf16.mxu0 %v4033
    %5704 = vmatpush1.bf16.msra.mxu0 %v4032
    %5705 = vmatprep.mubr.bf16.mxu0 %v1071
    %5706 = vmatmul.mubr.bf16.gmra.mrb[0].mxu0 %v1069
    %v5707 = vpop.f32.mrb[0].mxu0
    %v5708 = vadd.f32 %v5667, %v5707
    %v5709 = vpop.f32.mrb[0].mxu0
    %v5710 = vadd.f32 %v5669, %v5709
    %v5711 = vpop.f32.mrb[0].mxu0
    %v5712 = vpop.f32.mrb[0].mxu0
    %5713 = vdwg.mxu0
    %5714 = vmatprep.subr.bf16.mxu0 %v4035
    %5715 = vmatpush1.bf16.msra.mxu0 %v4034
    %5716 = vmatprep.subr.bf16.mxu0 %v4037
    %5717 = vmatpush1.bf16.msra.mxu0 %v4036
    %5718 = vmatprep.subr.bf16.mxu0 %v4039
    %5719 = vmatpush1.bf16.msra.mxu0 %v4038
    %5720 = vmatprep.subr.bf16.mxu0 %v4041
    %5721 = vmatpush1.bf16.msra.mxu0 %v4040
    %5722 = vmatprep.subr.bf16.mxu0 %v4043
    %5723 = vmatpush1.bf16.msra.mxu0 %v4042
    %5724 = vmatprep.subr.bf16.mxu0 %v4045
    %5725 = vmatpush1.bf16.msra.mxu0 %v4044
    %5726 = vmatprep.subr.bf16.mxu0 %v4047
    %5727 = vmatpush1.bf16.msra.mxu0 %v4046
    %5728 = vmatprep.subr.bf16.mxu0 %v4049
    %5729 = vmatpush1.bf16.msra.mxu0 %v4048
    %5730 = vmatprep.subr.bf16.mxu0 %v4051
    %5731 = vmatpush1.bf16.msra.mxu0 %v4050
    %5732 = vmatprep.subr.bf16.mxu0 %v4053
    %5733 = vmatpush1.bf16.msra.mxu0 %v4052
    %5734 = vmatprep.subr.bf16.mxu0 %v4055
    %5735 = vmatpush1.bf16.msra.mxu0 %v4054
    %5736 = vmatprep.subr.bf16.mxu0 %v4057
    %5737 = vmatpush1.bf16.msra.mxu0 %v4056
    %5738 = vmatprep.subr.bf16.mxu0 %v4059
    %5739 = vmatpush1.bf16.msra.mxu0 %v4058
    %5740 = vmatprep.subr.bf16.mxu0 %v4061
    %5741 = vmatpush1.bf16.msra.mxu0 %v4060
    %5742 = vmatprep.subr.bf16.mxu0 %v4063
    %5743 = vmatpush1.bf16.msra.mxu0 %v4062
    %5744 = vmatprep.subr.bf16.mxu0 %v4065
    %5745 = vmatpush1.bf16.msra.mxu0 %v4064
    %5746 = vmatprep.mubr.bf16.mxu0 %v1109
    %5747 = vmatmul.mubr.bf16.gmra.mrb[0].mxu0 %v1095
    %v5748 = vpop.f32.mrb[0].mxu0
    %v5749 = vadd.f32 %v5708, %v5748
    %v5750 = vpop.f32.mrb[0].mxu0
    %v5751 = vadd.f32 %v5710, %v5750
    %v5752 = vpop.f32.mrb[0].mxu0
    %v5753 = vpop.f32.mrb[0].mxu0
    %5754 = vdwg.mxu0
    %5755 = vmatprep.subr.bf16.mxu0 %v4067
    %5756 = vmatpush1.bf16.msra.mxu0 %v4066
    %5757 = vmatprep.subr.bf16.mxu0 %v4069
    %5758 = vmatpush1.bf16.msra.mxu0 %v4068
    %5759 = vmatprep.subr.bf16.mxu0 %v4071
    %5760 = vmatpush1.bf16.msra.mxu0 %v4070
    %5761 = vmatprep.subr.bf16.mxu0 %v4073
    %5762 = vmatpush1.bf16.msra.mxu0 %v4072
    %5763 = vmatprep.subr.bf16.mxu0 %v4075
    %5764 = vmatpush1.bf16.msra.mxu0 %v4074
    %5765 = vmatprep.subr.bf16.mxu0 %v4077
    %5766 = vmatpush1.bf16.msra.mxu0 %v4076
    %5767 = vmatprep.subr.bf16.mxu0 %v4079
    %5768 = vmatpush1.bf16.msra.mxu0 %v4078
    %5769 = vmatprep.subr.bf16.mxu0 %v4081
    %5770 = vmatpush1.bf16.msra.mxu0 %v4080
    %5771 = vmatprep.subr.bf16.mxu0 %v4083
    %5772 = vmatpush1.bf16.msra.mxu0 %v4082
    %5773 = vmatprep.subr.bf16.mxu0 %v4085
    %5774 = vmatpush1.bf16.msra.mxu0 %v4084
    %5775 = vmatprep.subr.bf16.mxu0 %v4087
    %5776 = vmatpush1.bf16.msra.mxu0 %v4086
    %5777 = vmatprep.subr.bf16.mxu0 %v4089
    %5778 = vmatpush1.bf16.msra.mxu0 %v4088
    %5779 = vmatprep.subr.bf16.mxu0 %v4091
    %5780 = vmatpush1.bf16.msra.mxu0 %v4090
    %5781 = vmatprep.subr.bf16.mxu0 %v4093
    %5782 = vmatpush1.bf16.msra.mxu0 %v4092
    %5783 = vmatprep.subr.bf16.mxu0 %v4095
    %5784 = vmatpush1.bf16.msra.mxu0 %v4094
    %5785 = vmatprep.subr.bf16.mxu0 %v4097
    %5786 = vmatpush1.bf16.msra.mxu0 %v4096
    %5787 = vmatprep.mubr.bf16.mxu0 %v1119
    %5788 = vmatmul.mubr.bf16.gmra.mrb[0].mxu0 %v1117
    %v5789 = vpop.f32.mrb[0].mxu0
    %v5790 = vadd.f32 %v5749, %v5789
    %v5791 = vpop.f32.mrb[0].mxu0
    %v5792 = vadd.f32 %v5751, %v5791
    %v5793 = vpop.f32.mrb[0].mxu0
    %v5794 = vpop.f32.mrb[0].mxu0
    %5795 = vdwg.mxu0
    %5796 = vmatprep.subr.bf16.mxu0 %v4099
    %5797 = vmatpush1.bf16.msra.mxu0 %v4098
    %5798 = vmatprep.subr.bf16.mxu0 %v4101
    %5799 = vmatpush1.bf16.msra.mxu0 %v4100
    %5800 = vmatprep.subr.bf16.mxu0 %v4103
    %5801 = vmatpush1.bf16.msra.mxu0 %v4102
    %5802 = vmatprep.subr.bf16.mxu0 %v4105
    %5803 = vmatpush1.bf16.msra.mxu0 %v4104
    %5804 = vmatprep.subr.bf16.mxu0 %v4107
    %5805 = vmatpush1.bf16.msra.mxu0 %v4106
    %5806 = vmatprep.subr.bf16.mxu0 %v4109
    %5807 = vmatpush1.bf16.msra.mxu0 %v4108
    %5808 = vmatprep.subr.bf16.mxu0 %v4111
    %5809 = vmatpush1.bf16.msra.mxu0 %v4110
    %5810 = vmatprep.subr.bf16.mxu0 %v4113
    %5811 = vmatpush1.bf16.msra.mxu0 %v4112
    %5812 = vmatprep.subr.bf16.mxu0 %v4115
    %5813 = vmatpush1.bf16.msra.mxu0 %v4114
    %5814 = vmatprep.subr.bf16.mxu0 %v4117
    %5815 = vmatpush1.bf16.msra.mxu0 %v4116
    %5816 = vmatprep.subr.bf16.mxu0 %v4119
    %5817 = vmatpush1.bf16.msra.mxu0 %v4118
    %5818 = vmatprep.subr.bf16.mxu0 %v4121
    %5819 = vmatpush1.bf16.msra.mxu0 %v4120
    %5820 = vmatprep.subr.bf16.mxu0 %v4123
    %5821 = vmatpush1.bf16.msra.mxu0 %v4122
    %5822 = vmatprep.subr.bf16.mxu0 %v4125
    %5823 = vmatpush1.bf16.msra.mxu0 %v4124
    %5824 = vmatprep.subr.bf16.mxu0 %v4127
    %5825 = vmatpush1.bf16.msra.mxu0 %v4126
    %5826 = vmatprep.subr.bf16.mxu0 %v4129
    %5827 = vmatpush1.bf16.msra.mxu0 %v4128
    %5828 = vmatprep.mubr.bf16.mxu0 %v1116
    %5829 = vmatmul.mubr.bf16.gmra.mrb[0].mxu0 %v1102
    %v5830 = vpop.f32.mrb[0].mxu0
    %v5831 = vadd.f32 %v5790, %v5830
    %v5832 = vpop.f32.mrb[0].mxu0
    %v5833 = vadd.f32 %v5792, %v5832
    %v5834 = vpop.f32.mrb[0].mxu0
    %v5835 = vpop.f32.mrb[0].mxu0
    %5836 = vdwg.mxu0
    %5837 = vmatprep.subr.bf16.mxu0 %v4131
    %5838 = vmatpush1.bf16.msra.mxu0 %v4130
    %5839 = vmatprep.subr.bf16.mxu0 %v4133
    %5840 = vmatpush1.bf16.msra.mxu0 %v4132
    %5841 = vmatprep.subr.bf16.mxu0 %v4135
    %5842 = vmatpush1.bf16.msra.mxu0 %v4134
    %5843 = vmatprep.subr.bf16.mxu0 %v4137
    %5844 = vmatpush1.bf16.msra.mxu0 %v4136
    %5845 = vmatprep.subr.bf16.mxu0 %v4139
    %5846 = vmatpush1.bf16.msra.mxu0 %v4138
    %5847 = vmatprep.subr.bf16.mxu0 %v4141
    %5848 = vmatpush1.bf16.msra.mxu0 %v4140
    %5849 = vmatprep.subr.bf16.mxu0 %v4143
    %5850 = vmatpush1.bf16.msra.mxu0 %v4142
    %5851 = vmatprep.subr.bf16.mxu0 %v4145
    %5852 = vmatpush1.bf16.msra.mxu0 %v4144
    %5853 = vmatprep.subr.bf16.mxu0 %v4147
    %5854 = vmatpush1.bf16.msra.mxu0 %v4146
    %5855 = vmatprep.subr.bf16.mxu0 %v4149
    %5856 = vmatpush1.bf16.msra.mxu0 %v4148
    %5857 = vmatprep.subr.bf16.mxu0 %v4151
    %5858 = vmatpush1.bf16.msra.mxu0 %v4150
    %5859 = vmatprep.subr.bf16.mxu0 %v4153
    %5860 = vmatpush1.bf16.msra.mxu0 %v4152
    %5861 = vmatprep.subr.bf16.mxu0 %v4155
    %5862 = vmatpush1.bf16.msra.mxu0 %v4154
    %5863 = vmatprep.subr.bf16.mxu0 %v4157
    %5864 = vmatpush1.bf16.msra.mxu0 %v4156
    %5865 = vmatprep.subr.bf16.mxu0 %v4159
    %5866 = vmatpush1.bf16.msra.mxu0 %v4158
    %5867 = vmatprep.subr.bf16.mxu0 %v4161
    %5868 = vmatpush1.bf16.msra.mxu0 %v4160
    %5869 = vmatprep.mubr.bf16.mxu0 %v1120
    %5870 = vmatmul.mubr.bf16.gmra.mrb[0].mxu0 %v1118
    %v5871 = vpop.f32.mrb[0].mxu0
    %v5872 = vadd.f32 %v5831, %v5871
    %v5873 = vpop.f32.mrb[0].mxu0
    %v5874 = vadd.f32 %v5833, %v5873
    %v5875 = vpop.f32.mrb[0].mxu0
    %v5876 = vpop.f32.mrb[0].mxu0
    %5877 = vdwg.mxu0
    %5878 = vmatprep.subr.bf16.mxu0 %v4163
    %5879 = vmatpush1.bf16.msra.mxu0 %v4162
    %5880 = vmatprep.subr.bf16.mxu0 %v4165
    %5881 = vmatpush1.bf16.msra.mxu0 %v4164
    %5882 = vmatprep.subr.bf16.mxu0 %v4167
    %5883 = vmatpush1.bf16.msra.mxu0 %v4166
    %5884 = vmatprep.subr.bf16.mxu0 %v4169
    %5885 = vmatpush1.bf16.msra.mxu0 %v4168
    %5886 = vmatprep.subr.bf16.mxu0 %v4171
    %5887 = vmatpush1.bf16.msra.mxu0 %v4170
    %5888 = vmatprep.subr.bf16.mxu0 %v4173
    %5889 = vmatpush1.bf16.msra.mxu0 %v4172
    %5890 = vmatprep.subr.bf16.mxu0 %v4175
    %5891 = vmatpush1.bf16.msra.mxu0 %v4174
    %5892 = vmatprep.subr.bf16.mxu0 %v4177
    %5893 = vmatpush1.bf16.msra.mxu0 %v4176
    %5894 = vmatprep.subr.bf16.mxu0 %v4179
    %5895 = vmatpush1.bf16.msra.mxu0 %v4178
    %5896 = vmatprep.subr.bf16.mxu0 %v4181
    %5897 = vmatpush1.bf16.msra.mxu0 %v4180
    %5898 = vmatprep.subr.bf16.mxu0 %v4183
    %5899 = vmatpush1.bf16.msra.mxu0 %v4182
    %5900 = vmatprep.subr.bf16.mxu0 %v4185
    %5901 = vmatpush1.bf16.msra.mxu0 %v4184
    %5902 = vmatprep.subr.bf16.mxu0 %v4187
    %5903 = vmatpush1.bf16.msra.mxu0 %v4186
    %5904 = vmatprep.subr.bf16.mxu0 %v4189
    %5905 = vmatpush1.bf16.msra.mxu0 %v4188
    %5906 = vmatprep.subr.bf16.mxu0 %v4191
    %5907 = vmatpush1.bf16.msra.mxu0 %v4190
    %5908 = vmatprep.subr.bf16.mxu0 %v4193
    %5909 = vmatpush1.bf16.msra.mxu0 %v4192
    %5910 = vmatprep.mubr.bf16.mxu0 %v1158
    %5911 = vmatmul.mubr.bf16.gmra.mrb[0].mxu0 %v1144
    %v5912 = vpop.f32.mrb[0].mxu0
    %v5913 = vadd.f32 %v5872, %v5912
    %v5914 = vpop.f32.mrb[0].mxu0
    %v5915 = vadd.f32 %v5874, %v5914
    %v5916 = vpop.f32.mrb[0].mxu0
    %v5917 = vpop.f32.mrb[0].mxu0
    %5918 = vdwg.mxu0
    %5919 = vmatprep.subr.bf16.mxu0 %v4195
    %5920 = vmatpush1.bf16.msra.mxu0 %v4194
    %5921 = vmatprep.subr.bf16.mxu0 %v4197
    %5922 = vmatpush1.bf16.msra.mxu0 %v4196
    %5923 = vmatprep.subr.bf16.mxu0 %v4199
    %5924 = vmatpush1.bf16.msra.mxu0 %v4198
    %5925 = vmatprep.subr.bf16.mxu0 %v4201
    %5926 = vmatpush1.bf16.msra.mxu0 %v4200
    %5927 = vmatprep.subr.bf16.mxu0 %v4203
    %5928 = vmatpush1.bf16.msra.mxu0 %v4202
    %5929 = vmatprep.subr.bf16.mxu0 %v4205
    %5930 = vmatpush1.bf16.msra.mxu0 %v4204
    %5931 = vmatprep.subr.bf16.mxu0 %v4207
    %5932 = vmatpush1.bf16.msra.mxu0 %v4206
    %5933 = vmatprep.subr.bf16.mxu0 %v4209
    %5934 = vmatpush1.bf16.msra.mxu0 %v4208
    %5935 = vmatprep.subr.bf16.mxu0 %v4211
    %5936 = vmatpush1.bf16.msra.mxu0 %v4210
    %5937 = vmatprep.subr.bf16.mxu0 %v4213
    %5938 = vmatpush1.bf16.msra.mxu0 %v4212
    %5939 = vmatprep.subr.bf16.mxu0 %v4215
    %5940 = vmatpush1.bf16.msra.mxu0 %v4214
    %5941 = vmatprep.subr.bf16.mxu0 %v4217
    %5942 = vmatpush1.bf16.msra.mxu0 %v4216
    %5943 = vmatprep.subr.bf16.mxu0 %v4219
    %5944 = vmatpush1.bf16.msra.mxu0 %v4218
    %5945 = vmatprep.subr.bf16.mxu0 %v4221
    %5946 = vmatpush1.bf16.msra.mxu0 %v4220
    %5947 = vmatprep.subr.bf16.mxu0 %v4223
    %5948 = vmatpush1.bf16.msra.mxu0 %v4222
    %5949 = vmatprep.subr.bf16.mxu0 %v4225
    %5950 = vmatpush1.bf16.msra.mxu0 %v4224
    %5951 = vmatprep.mubr.bf16.mxu0 %v1168
    %5952 = vmatmul.mubr.bf16.gmra.mrb[0].mxu0 %v1166
    %v5953 = vpop.f32.mrb[0].mxu0
    %v5954 = vadd.f32 %v5913, %v5953
    %v5955 = vpop.f32.mrb[0].mxu0
    %v5956 = vadd.f32 %v5915, %v5955
    %v5957 = vpop.f32.mrb[0].mxu0
    %v5958 = vpop.f32.mrb[0].mxu0
    %5959 = vdwg.mxu0
    %5960 = vmatprep.subr.bf16.mxu0 %v4227
    %5961 = vmatpush1.bf16.msra.mxu0 %v4226
    %5962 = vmatprep.subr.bf16.mxu0 %v4229
    %5963 = vmatpush1.bf16.msra.mxu0 %v4228
    %5964 = vmatprep.subr.bf16.mxu0 %v4231
    %5965 = vmatpush1.bf16.msra.mxu0 %v4230
    %5966 = vmatprep.subr.bf16.mxu0 %v4233
    %5967 = vmatpush1.bf16.msra.mxu0 %v4232
    %5968 = vmatprep.subr.bf16.mxu0 %v4235
    %5969 = vmatpush1.bf16.msra.mxu0 %v4234
    %5970 = vmatprep.subr.bf16.mxu0 %v4237
    %5971 = vmatpush1.bf16.msra.mxu0 %v4236
    %5972 = vmatprep.subr.bf16.mxu0 %v4239
    %5973 = vmatpush1.bf16.msra.mxu0 %v4238
    %5974 = vmatprep.subr.bf16.mxu0 %v4241
    %5975 = vmatpush1.bf16.msra.mxu0 %v4240
    %5976 = vmatprep.subr.bf16.mxu0 %v4243
    %5977 = vmatpush1.bf16.msra.mxu0 %v4242
    %5978 = vmatprep.subr.bf16.mxu0 %v4245
    %5979 = vmatpush1.bf16.msra.mxu0 %v4244
    %5980 = vmatprep.subr.bf16.mxu0 %v4247
    %5981 = vmatpush1.bf16.msra.mxu0 %v4246
    %5982 = vmatprep.subr.bf16.mxu0 %v4249
    %5983 = vmatpush1.bf16.msra.mxu0 %v4248
    %5984 = vmatprep.subr.bf16.mxu0 %v4251
    %5985 = vmatpush1.bf16.msra.mxu0 %v4250
    %5986 = vmatprep.subr.bf16.mxu0 %v4253
    %5987 = vmatpush1.bf16.msra.mxu0 %v4252
    %5988 = vmatprep.subr.bf16.mxu0 %v4255
    %5989 = vmatpush1.bf16.msra.mxu0 %v4254
    %5990 = vmatprep.subr.bf16.mxu0 %v4257
    %5991 = vmatpush1.bf16.msra.mxu0 %v4256
    %5992 = vmatprep.mubr.bf16.mxu0 %v1165
    %5993 = vmatmul.mubr.bf16.gmra.mrb[0].mxu0 %v1151
    %v5994 = vpop.f32.mrb[0].mxu0
    %v5995 = vadd.f32 %v5954, %v5994
    %v5996 = vpop.f32.mrb[0].mxu0
    %v5997 = vadd.f32 %v5956, %v5996
    %v5998 = vpop.f32.mrb[0].mxu0
    %v5999 = vpop.f32.mrb[0].mxu0
    %6000 = vdwg.mxu0
    %6001 = vmatprep.subr.bf16.mxu0 %v4259
    %6002 = vmatpush1.bf16.msra.mxu0 %v4258
    %6003 = vmatprep.subr.bf16.mxu0 %v4261
    %6004 = vmatpush1.bf16.msra.mxu0 %v4260
    %6005 = vmatprep.subr.bf16.mxu0 %v4263
    %6006 = vmatpush1.bf16.msra.mxu0 %v4262
    %6007 = vmatprep.subr.bf16.mxu0 %v4265
    %6008 = vmatpush1.bf16.msra.mxu0 %v4264
    %6009 = vmatprep.subr.bf16.mxu0 %v4267
    %6010 = vmatpush1.bf16.msra.mxu0 %v4266
    %6011 = vmatprep.subr.bf16.mxu0 %v4269
    %6012 = vmatpush1.bf16.msra.mxu0 %v4268
    %6013 = vmatprep.subr.bf16.mxu0 %v4271
    %6014 = vmatpush1.bf16.msra.mxu0 %v4270
    %6015 = vmatprep.subr.bf16.mxu0 %v4273
    %6016 = vmatpush1.bf16.msra.mxu0 %v4272
    %6017 = vmatprep.subr.bf16.mxu0 %v4275
    %6018 = vmatpush1.bf16.msra.mxu0 %v4274
    %6019 = vmatprep.subr.bf16.mxu0 %v4277
    %6020 = vmatpush1.bf16.msra.mxu0 %v4276
    %6021 = vmatprep.subr.bf16.mxu0 %v4279
    %6022 = vmatpush1.bf16.msra.mxu0 %v4278
    %6023 = vmatprep.subr.bf16.mxu0 %v4281
    %6024 = vmatpush1.bf16.msra.mxu0 %v4280
    %6025 = vmatprep.subr.bf16.mxu0 %v4283
    %6026 = vmatpush1.bf16.msra.mxu0 %v4282
    %6027 = vmatprep.subr.bf16.mxu0 %v4285
    %6028 = vmatpush1.bf16.msra.mxu0 %v4284
    %6029 = vmatprep.subr.bf16.mxu0 %v4287
    %6030 = vmatpush1.bf16.msra.mxu0 %v4286
    %6031 = vmatprep.subr.bf16.mxu0 %v4289
    %6032 = vmatpush1.bf16.msra.mxu0 %v4288
    %6033 = vmatprep.mubr.bf16.mxu0 %v1169
    %6034 = vmatmul.mubr.bf16.gmra.mrb[0].mxu0 %v1167
    %v6035 = vpop.f32.mrb[0].mxu0
    %v6036 = vadd.f32 %v5995, %v6035
    %v6037 = vpop.f32.mrb[0].mxu0
    %v6038 = vadd.f32 %v5997, %v6037
    %v6039 = vpop.f32.mrb[0].mxu0
    %v6040 = vpop.f32.mrb[0].mxu0
    %6041 = vdwg.mxu0
    %v6044 = vcombine.low %v6036, %v6038
    %v6046 = vunpack.c.l.s4 1983009808
    %v6047 = vunpack.c.0.s8 %v6046
    %v6048 = vlaneseq
    %v6049 = vshrl.u32 %v6048, 7
    %v6050 = vsub.s32 %v6047, %v6049
    %v6051 = vrot.slane %v6044, %v6050
    %v6053 = vadd.f32 %v95, %v6051
    %6054 = vst [vmem:[#allocation2] sm:$0xf] %v6053
    // Predicated region
    $region54: #{mlp_forward_fused.1} parent=1 // pred_check
      %p6055 = pneg %p90
    $region55: #{mlp_forward_fused.1} parent=1 // pred_check_branch
      %6057 = sbr.rel (%p6055) target = $region57
    $region56: #{mlp_forward_fused.1} parent=1 // pred_region
      %v6058 = vld [vmem:[#allocation2] sm:$0xf]
      %v6059 = vld [vmem:[#allocation6] sm:$0x3]
      %v6061 = vlaneseq
      %v6062 = vshrl.u32 %v6061, 7
      %v6063 = vsub.s32 0, %v6062
      %v6064 = vrot.slane %v6059, %v6063
      %v6065 = vlaneseq
      %v6066 = vshrl.u32 %v6065, 7
      %v6067 = vsub.s32 1, %v6066
      %v6068 = vrot.slane %v6059, %v6067
      %v6069 = vcombine.low %v6064, %v6068
      %v6071 = vunpack.c.l.s4 1983009808
      %v6072 = vunpack.c.0.s8 %v6071
      %v6073 = vlaneseq
      %v6074 = vshrl.u32 %v6073, 7
      %v6075 = vsub.s32 %v6072, %v6074
      %v6076 = vrot.slane %v6069, %v6075
      %v6078 = vadd.f32 %v6058, %v6076
      %v6079 = vmax.f32 %v6078, 0.0
      %v6082 = vunpack.c.l.s4 1983009808
      %v6083 = vunpack.c.0.s8 %v6082
      %v6084 = vlaneseq
      %v6085 = vshrl.u32 %v6084, 7
      %v6086 = vsub.s32 %v6083, %v6085
      %v6087 = vrot.slane %v6079, %v6086
      %v6088 = vcombine.high %v6087, %v6087
      %v6091 = vpack.c.bf16 %v6087, %v6087
      %v6092 = vpack.c.bf16 %v6088, %v6088
      %v6093 = vld [vmem:[#allocation8] sm:$0xf]
      %v6094 = vld [vmem:[#allocation8 + $0x4] sm:$0xf]
      %v6095 = vld [vmem:[#allocation8 + $0x8] sm:$0xf]
      %v6096 = vld [vmem:[#allocation8 + $0xc] sm:$0xf]
      %v6097 = vld [vmem:[#allocation8 + $0x10] sm:$0xf]
      %v6098 = vld [vmem:[#allocation8 + $0x14] sm:$0xf]
      %v6099 = vld [vmem:[#allocation8 + $0x18] sm:$0xf]
      %v6100 = vld [vmem:[#allocation8 + $0x1c] sm:$0xf]
      %v6101 = vld [vmem:[#allocation8 + $0x20] sm:$0xf]
      %v6102 = vld [vmem:[#allocation8 + $0x24] sm:$0xf]
      %v6103 = vld [vmem:[#allocation8 + $0x28] sm:$0xf]
      %v6104 = vld [vmem:[#allocation8 + $0x2c] sm:$0xf]
      %v6105 = vld [vmem:[#allocation8 + $0x30] sm:$0xf]
      %v6106 = vld [vmem:[#allocation8 + $0x34] sm:$0xf]
      %v6107 = vld [vmem:[#allocation8 + $0x38] sm:$0xf]
      %v6108 = vld [vmem:[#allocation8 + $0x3c] sm:$0xf]
      %v6109 = vld [vmem:[#allocation8 + $0x40] sm:$0xf]
      %v6110 = vld [vmem:[#allocation8 + $0x44] sm:$0xf]
      %v6111 = vld [vmem:[#allocation8 + $0x48] sm:$0xf]
      %v6112 = vld [vmem:[#allocation8 + $0x4c] sm:$0xf]
      %v6113 = vld [vmem:[#allocation8 + $0x50] sm:$0xf]
      %v6114 = vld [vmem:[#allocation8 + $0x54] sm:$0xf]
      %v6115 = vld [vmem:[#allocation8 + $0x58] sm:$0xf]
      %v6116 = vld [vmem:[#allocation8 + $0x5c] sm:$0xf]
      %v6117 = vld [vmem:[#allocation8 + $0x60] sm:$0xf]
      %v6118 = vld [vmem:[#allocation8 + $0x64] sm:$0xf]
      %v6119 = vld [vmem:[#allocation8 + $0x68] sm:$0xf]
      %v6120 = vld [vmem:[#allocation8 + $0x6c] sm:$0xf]
      %v6121 = vld [vmem:[#allocation8 + $0x70] sm:$0xf]
      %v6122 = vld [vmem:[#allocation8 + $0x74] sm:$0xf]
      %v6123 = vld [vmem:[#allocation8 + $0x78] sm:$0xf]
      %v6124 = vld [vmem:[#allocation8 + $0x7c] sm:$0xf]
      %v6125 = vld [vmem:[#allocation9] sm:$0x1]
      %v6127 = vlaneseq
      %v6128 = vshrl.u32 %v6127, 7
      %v6129 = vsub.s32 0, %v6128
      %v6130 = vrot.slane %v6125, %v6129
      %v6164 = vunpack.c.l.b16 %v6093
      %v6165 = vunpack.c.l.b16 %v6094
      %v6166 = vunpack.c.l.b16 %v6095
      %v6167 = vunpack.c.l.b16 %v6096
      %v6168 = vunpack.c.l.b16 %v6097
      %v6169 = vunpack.c.l.b16 %v6098
      %v6170 = vunpack.c.l.b16 %v6099
      %v6171 = vunpack.c.l.b16 %v6100
      %v6172 = vunpack.c.l.b16 %v6101
      %v6173 = vunpack.c.l.b16 %v6102
      %v6174 = vunpack.c.l.b16 %v6103
      %v6175 = vunpack.c.l.b16 %v6104
      %v6176 = vunpack.c.l.b16 %v6105
      %v6177 = vunpack.c.l.b16 %v6106
      %v6178 = vunpack.c.l.b16 %v6107
      %v6179 = vunpack.c.l.b16 %v6108
      %v6180 = vunpack.c.l.b16 %v6109
      %v6181 = vunpack.c.l.b16 %v6110
      %v6182 = vunpack.c.l.b16 %v6111
      %v6183 = vunpack.c.l.b16 %v6112
      %v6184 = vunpack.c.l.b16 %v6113
      %v6185 = vunpack.c.l.b16 %v6114
      %v6186 = vunpack.c.l.b16 %v6115
      %v6187 = vunpack.c.l.b16 %v6116
      %v6188 = vunpack.c.l.b16 %v6117
      %v6189 = vunpack.c.l.b16 %v6118
      %v6190 = vunpack.c.l.b16 %v6119
      %v6191 = vunpack.c.l.b16 %v6120
      %v6192 = vunpack.c.l.b16 %v6121
      %v6193 = vunpack.c.l.b16 %v6122
      %v6194 = vunpack.c.l.b16 %v6123
      %v6195 = vunpack.c.l.b16 %v6124
      %v6196 = vpack.c.b16 %v6165, %v6164
      %v6197 = vpack.c.b16 %v6167, %v6166
      %v6198 = vpack.c.b16 %v6169, %v6168
      %v6199 = vpack.c.b16 %v6171, %v6170
      %v6200 = vpack.c.b16 %v6173, %v6172
      %v6201 = vpack.c.b16 %v6175, %v6174
      %v6202 = vpack.c.b16 %v6177, %v6176
      %v6203 = vpack.c.b16 %v6179, %v6178
      %v6204 = vpack.c.b16 %v6181, %v6180
      %v6205 = vpack.c.b16 %v6183, %v6182
      %v6206 = vpack.c.b16 %v6185, %v6184
      %v6207 = vpack.c.b16 %v6187, %v6186
      %v6208 = vpack.c.b16 %v6189, %v6188
      %v6209 = vpack.c.b16 %v6191, %v6190
      %v6210 = vpack.c.b16 %v6193, %v6192
      %v6211 = vpack.c.b16 %v6195, %v6194
      %6228 = vmatprep.subr.bf16.mxu0 0
      %6229 = vmatpush1.bf16.msra.mxu0 %v6196
      %6230 = vmatprep.subr.bf16.mxu0 0
      %6231 = vmatpush1.bf16.msra.mxu0 %v6197
      %6232 = vmatprep.subr.bf16.mxu0 0
      %6233 = vmatpush1.bf16.msra.mxu0 %v6198
      %6234 = vmatprep.subr.bf16.mxu0 0
      %6235 = vmatpush1.bf16.msra.mxu0 %v6199
      %6236 = vmatprep.subr.bf16.mxu0 0
      %6237 = vmatpush1.bf16.msra.mxu0 %v6200
      %6238 = vmatprep.subr.bf16.mxu0 0
      %6239 = vmatpush1.bf16.msra.mxu0 %v6201
      %6240 = vmatprep.subr.bf16.mxu0 0
      %6241 = vmatpush1.bf16.msra.mxu0 %v6202
      %6242 = vmatprep.subr.bf16.mxu0 0
      %6243 = vmatpush1.bf16.msra.mxu0 %v6203
      %6244 = vmatprep.subr.bf16.mxu0 0
      %6245 = vmatpush1.bf16.msra.mxu0 %v6204
      %6246 = vmatprep.subr.bf16.mxu0 0
      %6247 = vmatpush1.bf16.msra.mxu0 %v6205
      %6248 = vmatprep.subr.bf16.mxu0 0
      %6249 = vmatpush1.bf16.msra.mxu0 %v6206
      %6250 = vmatprep.subr.bf16.mxu0 0
      %6251 = vmatpush1.bf16.msra.mxu0 %v6207
      %6252 = vmatprep.subr.bf16.mxu0 0
      %6253 = vmatpush1.bf16.msra.mxu0 %v6208
      %6254 = vmatprep.subr.bf16.mxu0 0
      %6255 = vmatpush1.bf16.msra.mxu0 %v6209
      %6256 = vmatprep.subr.bf16.mxu0 0
      %6257 = vmatpush1.bf16.msra.mxu0 %v6210
      %6258 = vmatprep.subr.bf16.mxu0 0
      %6259 = vmatpush1.bf16.msra.mxu0 %v6211
      %6260 = vmatprep.mubr.bf16.mxu0 %v6092
      %6261 = vmatmul.mubr.bf16.gmra.mrb[0].mxu0 %v6091
      %v6262 = vpop.f32.mrb[0].mxu0
      %v6263 = vadd.f32 %v6130, %v6262
      %v6264 = vpop.f32.mrb[0].mxu0
      %v6265 = vpop.f32.mrb[0].mxu0
      %v6266 = vpop.f32.mrb[0].mxu0
      %6267 = vdwg.mxu0
      %v6268 = vmax.f32 %v6263, 0.0
      %v6269 = vpack.c.bf16 %v6268, %v6268
      %v6270 = vld [vmem:[%s5] sm:$0xf]
      %v6271 = vld [vmem:[%s5 + $0x4] sm:$0xf]
      %v6272 = vld [vmem:[%s5 + $0x8] sm:$0xf]
      %v6273 = vld [vmem:[%s5 + $0xc] sm:$0xf]
      %v6274 = vld [vmem:[%s5 + $0x10] sm:$0xf]
      %v6275 = vld [vmem:[%s5 + $0x14] sm:$0xf]
      %v6276 = vld [vmem:[%s5 + $0x18] sm:$0xf]
      %v6277 = vld [vmem:[%s5 + $0x1c] sm:$0xf]
      %v6278 = vld [vmem:[%s5 + $0x20] sm:$0xf]
      %v6279 = vld [vmem:[%s5 + $0x24] sm:$0xf]
      %v6280 = vld [vmem:[%s5 + $0x28] sm:$0xf]
      %v6281 = vld [vmem:[%s5 + $0x2c] sm:$0xf]
      %v6282 = vld [vmem:[%s5 + $0x30] sm:$0xf]
      %v6283 = vld [vmem:[%s5 + $0x34] sm:$0xf]
      %v6284 = vld [vmem:[%s5 + $0x38] sm:$0xf]
      %v6285 = vld [vmem:[%s5 + $0x3c] sm:$0xf]
      %v6286 = vld [vmem:[#allocation11] sm:$0x1]
      %v6288 = vlaneseq
      %v6289 = vshrl.u32 %v6288, 7
      %v6290 = vsub.s32 0, %v6289
      %v6291 = vrot.slane %v6286, %v6290
      %v6309 = vunpack.c.l.b16 %v6270
      %v6310 = vunpack.c.l.b16 %v6271
      %v6311 = vunpack.c.l.b16 %v6272
      %v6312 = vunpack.c.l.b16 %v6273
      %v6313 = vunpack.c.l.b16 %v6274
      %v6314 = vunpack.c.l.b16 %v6275
      %v6315 = vunpack.c.l.b16 %v6276
      %v6316 = vunpack.c.l.b16 %v6277
      %v6317 = vunpack.c.l.b16 %v6278
      %v6318 = vunpack.c.l.b16 %v6279
      %v6319 = vunpack.c.l.b16 %v6280
      %v6320 = vunpack.c.l.b16 %v6281
      %v6321 = vunpack.c.l.b16 %v6282
      %v6322 = vunpack.c.l.b16 %v6283
      %v6323 = vunpack.c.l.b16 %v6284
      %v6324 = vunpack.c.l.b16 %v6285
      %v6325 = vpack.c.b16 %v6310, %v6309
      %v6326 = vpack.c.b16 %v6312, %v6311
      %v6327 = vpack.c.b16 %v6314, %v6313
      %v6328 = vpack.c.b16 %v6316, %v6315
      %v6329 = vpack.c.b16 %v6318, %v6317
      %v6330 = vpack.c.b16 %v6320, %v6319
      %v6331 = vpack.c.b16 %v6322, %v6321
      %v6332 = vpack.c.b16 %v6324, %v6323
      %6341 = vmatprep.subr.bf16.mxu0 0
      %6342 = vmatpush1.bf16.msra.mxu0 %v6325
      %6343 = vmatprep.subr.bf16.mxu0 0
      %6344 = vmatpush1.bf16.msra.mxu0 %v6326
      %6345 = vmatprep.subr.bf16.mxu0 0
      %6346 = vmatpush1.bf16.msra.mxu0 %v6327
      %6347 = vmatprep.subr.bf16.mxu0 0
      %6348 = vmatpush1.bf16.msra.mxu0 %v6328
      %6349 = vmatprep.subr.bf16.mxu0 0
      %6350 = vmatpush1.bf16.msra.mxu0 %v6329
      %6351 = vmatprep.subr.bf16.mxu0 0
      %6352 = vmatpush1.bf16.msra.mxu0 %v6330
      %6353 = vmatprep.subr.bf16.mxu0 0
      %6354 = vmatpush1.bf16.msra.mxu0 %v6331
      %6355 = vmatprep.subr.bf16.mxu0 0
      %6356 = vmatpush1.bf16.msra.mxu0 %v6332
      %6357 = vmatprep.subr.bf16.mxu0 0
      %6358 = vmatpush1.bf16.msra.mxu0 0
      %6359 = vmatprep.subr.bf16.mxu0 0
      %6360 = vmatpush1.bf16.msra.mxu0 0
      %6361 = vmatprep.subr.bf16.mxu0 0
      %6362 = vmatpush1.bf16.msra.mxu0 0
      %6363 = vmatprep.subr.bf16.mxu0 0
      %6364 = vmatpush1.bf16.msra.mxu0 0
      %6365 = vmatprep.subr.bf16.mxu0 0
      %6366 = vmatpush1.bf16.msra.mxu0 0
      %6367 = vmatprep.subr.bf16.mxu0 0
      %6368 = vmatpush1.bf16.msra.mxu0 0
      %6369 = vmatprep.subr.bf16.mxu0 0
      %6370 = vmatpush1.bf16.msra.mxu0 0
      %6371 = vmatprep.subr.bf16.mxu0 0
      %6372 = vmatpush1.bf16.msra.mxu0 0
      %6373 = vmatprep.mubr.bf16.mxu0 0
      %6374 = vmatmul.mubr.bf16.gmra.mrb[0].mxu0 %v6269
      %v6375 = vpop.f32.mrb[0].mxu0
      %v6376 = vadd.f32 %v6291, %v6375
      %v6377 = vpop.f32.mrb[0].mxu0
      %v6378 = vpop.f32.mrb[0].mxu0
      %v6379 = vpop.f32.mrb[0].mxu0
      %6380 = vdwg.mxu0
      %vm6381 = vcmask 123904
      %6382 = vst.msk [vmem:[#allocation12] sm:$0x3] %vm6381, %v6376
    $region57: #{mlp_forward_fused.1} parent=1 // pred_fallthru
      _
    // Predicated region
    $region58: #{mlp_forward_fused.1} parent=1 // pred_check
      _
    $region59: #{mlp_forward_fused.1} parent=1 // pred_check_branch
      %6384 = sbr.rel (0) target = $region61
    $region60: #{mlp_forward_fused.1} parent=1 // pred_region
      %s6386 = ssub.s32 32, 32
      %6387 = vsyncadd [#allocation5], %s6386
      %s6389 = sshll.u32 [#allocation12], 4
      %s6390 = int_to_ptr.vmem [resolvable:$true] %s6389
      %6392 = dma.vmem_to_hbm [thread:$0]  %s6390, 32, %s7, [#allocation5]
    $region61: #{mlp_forward_fused.1} parent=1 // pred_fallthru
      _
    // Predicated region
    $region62: #{mlp_forward_fused.1} parent=1 // pred_check
      _
    $region63: #{mlp_forward_fused.1} parent=1 // pred_check_branch
      %6394 = sbr.rel (0) target = $region65
    $region64: #{mlp_forward_fused.1} parent=1 // pred_region
      %6395 = dma.done [#allocation5], 32
    $region65: #{mlp_forward_fused.1} parent=1 // pred_fallthru
      _
    %6396 = vsyncpa [#allocation4], 1
    %6397 = vsyncpa [#allocation7], 1
    %6398 = vsyncpa [#allocation10], 1
    %6399 = vsyncpa [#allocation5], 1

</llo_original>
